<compile_context>
chip_gen: v7x
topology: tpu7x:2x2x1
jax: 0.10.0
libtpu: 0.0.40
codegen_flags: <defaults>
</compile_context>

<pallas_src>
import functools

import jax
import jax.numpy as jnp
from jax.experimental import pallas as pl
from jax.experimental.pallas import tpu as pltpu


def gelu(x):
    # Gelu(x) = x * sigmoid(1.702 * x)  (matches the torch helper)
    return x * jax.nn.sigmoid(1.702 * x)


# Module constants fixed by the PyTorch definition:
#   conv1: Conv2d(1, 10, (4, 1)) over rows [s_item, x_t, x_hat, x_com]
#   conv2: Conv2d(10, 5, (1, 1))
C1_K = 4      # conv1 kernel height == number of stacked input rows
C1_OUT = 10   # conv1 output channels
C2_OUT = 5    # conv2 output channels
# Packed SMEM coefficient-table offsets: [w1 (10*4)] [b1 (10)] [w2 (5*10)] [b2 (5)]
W1_OFF = 0
B1_OFF = W1_OFF + C1_OUT * C1_K          # 40
W2_OFF = B1_OFF + C1_OUT                 # 50
B2_OFF = W2_OFF + C2_OUT * C1_OUT        # 100
COEF_LEN = B2_OFF + C2_OUT               # 105


def _view_segments(n_channels, n_lanes, row_len):
    """Static segment list implementing the row-major reshape
    (n_channels, n_lanes) -> (rows, row_len) of the same flat vector.

    Returns tuples (src_channel, src_col, dst_row, dst_col, length); every
    segment is lane-contiguous in BOTH source and destination.
    """
    segs = []
    for c in range(n_channels):
        f = c * n_lanes
        f_end = f + n_lanes
        while f < f_end:
            dst_row, dst_col = divmod(f, row_len)
            length = min(f_end - f, row_len - dst_col)
            segs.append((c, f - c * n_lanes, dst_row, dst_col, length))
            f += length
    return tuple(segs)


# ---------------------------------------------------------------------------
# Fused kernel (one batch block of TB samples per grid step):
#   fc_source_item -> x_com -> conv1 -> Gelu -> conv2 -> (.view) -> Gelu
#   -> fc1 -> Gelu -> fc2
# ---------------------------------------------------------------------------
def _fused_kernel(coef_ref,                              # SMEM (105,) f32
                  x_t_ref, x_hat_ref, s_in_ref,          # activation blocks
                  w_si_ref, b_si_ref,
                  w_fc1_ref, b_fc1_ref, w_fc2_ref, b_fc2_ref,
                  out_ref, z_ref,
                  *, tb, out_dim, row_len, segments):
    # fc_source_item: (TB, S_in) @ (S_in, N) + (1, N)   (bf16 x bf16 -> f32)
    s_proj = jnp.dot(s_in_ref[...], w_si_ref[...],
                     preferred_element_type=jnp.float32) + b_si_ref[...]     # (TB, N)
    xt = x_t_ref[...]                                                        # (TB, N)
    xh = x_hat_ref[...]                                                      # (TB, N)

    # x_com = x_t * x_hat * s_proj / sqrt(sum(x_t**2))   (per sample)
    inv_norm = jax.lax.rsqrt(jnp.sum(xt * xt, axis=-1, keepdims=True))       # (TB, 1)
    x_com = xt * xh * s_proj * inv_norm                                      # (TB, N)

    # conv1 (4->10, (4,1) kernel) + Gelu + conv2 (10->5, 1x1), fused on the VPU.
    # Channel-mix coefficients are SMEM scalars; each channel slab is a lane-
    # dense (TB, N) f32 value, so every MAC is amortized over the batch block.
    g = [None] * C2_OUT
    for c in range(C1_OUT):
        t = (coef_ref[W1_OFF + c * C1_K + 0] * s_proj
             + coef_ref[W1_OFF + c * C1_K + 1] * xt
             + coef_ref[W1_OFF + c * C1_K + 2] * xh
             + coef_ref[W1_OFF + c * C1_K + 3] * x_com
             + coef_ref[B1_OFF + c])
        t = gelu(t)
        for o in range(C2_OUT):
            contrib = coef_ref[W2_OFF + o * C1_OUT + c] * t
            g[o] = contrib if g[o] is None else g[o] + contrib
    for o in range(C2_OUT):
        g[o] = gelu(g[o] + coef_ref[B2_OFF + o])                             # (TB, N)
    # (Gelu commutes with the .view reshape since it is elementwise.)

    # torch .view(-1, input_dim*5): static lane-contiguous segment copies into
    # the z scratch.  Each copy moves a (TB, len) slab; the segments tile z
    # exactly, so no zero-fill is needed.  z layout: (out_dim, TB, row_len) so
    # every store hits a contiguous sublane range of the scratch.
    for (sc_ch, sc_off, dst_r, dst_off, ln) in segments:
        z_ref[dst_r:dst_r + 1, :, dst_off:dst_off + ln] = (
            g[sc_ch][None, :, sc_off:sc_off + ln])

    # fc1 -> Gelu -> fc2   (MXU, M = out_dim * TB rows, bf16 operands, f32 acc)
    z = z_ref[...].reshape(out_dim * tb, row_len).astype(jnp.bfloat16)       # (M, 80)
    h2 = jnp.dot(z, w_fc1_ref[...],
                 preferred_element_type=jnp.float32) + b_fc1_ref[...]        # (M, 512)
    h2 = gelu(h2)
    out2 = jnp.dot(h2.astype(jnp.bfloat16), w_fc2_ref[...],
                   preferred_element_type=jnp.float32) + b_fc2_ref[...]      # (M, out_dim)
    out_ref[...] = out2.reshape(out_dim, tb, out_dim).astype(out_ref.dtype)


# ---------------------------------------------------------------------------
# Wrapper (batched; B == 1 reproduces the original single-sample forward)
# ---------------------------------------------------------------------------
def conv_transfer_com_forward(params, x_t, x_hat, s_item, *, block_b=32):
    input_dim = params["input_dim"]
    out_dim = params["out_dim"]
    N = input_dim * out_dim
    row_len = C2_OUT * input_dim

    single = (x_t.ndim == 1)
    if single:
        x_t, x_hat, s_item = x_t[None], x_hat[None], s_item[None]

    B = x_t.shape[0]
    xt2 = x_t.reshape(B, N).astype(jnp.float32)
    xh2 = x_hat.reshape(B, N).astype(jnp.float32)
    s2 = s_item.reshape(B, -1).astype(jnp.bfloat16)     # pre-cast MXU operand
    s_in_dim = s2.shape[1]

    TB = block_b
    nb = -(-B // TB)
    Bp = nb * TB
    if Bp != B:
        pad = Bp - B
        # pad x_t with ones so the per-row rsqrt stays finite in dead rows
        xt2 = jnp.concatenate([xt2, jnp.ones((pad, N), jnp.float32)], axis=0)
        xh2 = jnp.concatenate([xh2, jnp.zeros((pad, N), jnp.float32)], axis=0)
        s2 = jnp.concatenate([s2, jnp.zeros((pad, s_in_dim), jnp.bfloat16)], axis=0)

    segments = _view_segments(C2_OUT, N, row_len)
    kernel = functools.partial(_fused_kernel, tb=TB, out_dim=out_dim,
                               row_len=row_len, segments=segments)

    out = pl.pallas_call(
        kernel,
        out_shape=jax.ShapeDtypeStruct((out_dim, Bp, out_dim), jnp.float32),
        grid=(nb,),
        in_specs=[
            # packed conv1/conv2 coefficient table -> SMEM scalars
            pl.BlockSpec(memory_space=pltpu.MemorySpace.SMEM),
            # per-batch-block activations
            pl.BlockSpec((TB, N), lambda b: (b, 0)),            # x_t
            pl.BlockSpec((TB, N), lambda b: (b, 0)),            # x_hat
            pl.BlockSpec((TB, s_in_dim), lambda b: (b, 0)),     # s_item (bf16)
            # weights: constant block index -> resident in VMEM across the grid
            pl.BlockSpec((s_in_dim, N), lambda b: (0, 0)),      # W_source_item^T (bf16)
            pl.BlockSpec((1, N), lambda b: (0, 0)),             # b_source_item
            pl.BlockSpec((row_len, 512), lambda b: (0, 0)),     # W_fc1^T (bf16)
            pl.BlockSpec((1, 512), lambda b: (0, 0)),           # b_fc1
            pl.BlockSpec((512, out_dim), lambda b: (0, 0)),     # W_fc2^T (bf16)
            pl.BlockSpec((1, out_dim), lambda b: (0, 0)),       # b_fc2
        ],
        out_specs=pl.BlockSpec((out_dim, TB, out_dim), lambda b: (0, b, 0)),
        scratch_shapes=[pltpu.VMEM((out_dim, TB, row_len), jnp.float32)],
        compiler_params=pltpu.CompilerParams(
            dimension_semantics=("parallel",),          # shard batch over TCs (v7x)
            vmem_limit_bytes=32 * 1024 * 1024),
    )(params["conv_coef"], xt2, xh2, s2,
      params["w_si_t_bf16"], params["b_si"],
      params["w_fc1_t_bf16"], params["b_fc1"],
      params["w_fc2_t_bf16"], params["b_fc2"])

    # kernel emits (out_dim, Bp, out_dim) with sample index in the middle
    result = jnp.transpose(out, (1, 0, 2))[:B]
    return result[0] if single else result


# ---------------------------------------------------------------------------
# Deterministic parameter init (shapes follow the PyTorch __init__)
# ---------------------------------------------------------------------------
def init_params(key, input_dim, out_dim, bridge_batch_size, s_item_dim):
    N = input_dim * out_dim
    ks = jax.random.split(key, 10)

    def w(k, shape, scale=0.05):
        return scale * jax.random.normal(k, shape, dtype=jnp.float32)

    p = dict(
        input_dim=input_dim,
        out_dim=out_dim,
        # fc_source_item: Linear(bridge_batch_size * s_item_dim, N), stored transposed
        w_si_t=w(ks[0], (bridge_batch_size * s_item_dim, N)),
        b_si=w(ks[1], (1, N)),
        # conv1: Conv2d(1, 10, (4, 1)) weight (10,1,4,1) -> squeezed (10, 4)
        w1=w(ks[2], (C1_OUT, C1_K)),
        b1=w(ks[3], (C1_OUT, 1)),
        # conv2: Conv2d(10, 5, (1, 1)) weight (5,10,1,1) -> squeezed (5, 10)
        w2=w(ks[4], (C2_OUT, C1_OUT)),
        b2=w(ks[5], (C2_OUT, 1)),
        # fc1: Linear(input_dim * 5, 512), stored transposed
        w_fc1_t=w(ks[6], (C2_OUT * input_dim, 512)),
        b_fc1=w(ks[7], (1, 512)),
        # fc2: Linear(512, out_dim), stored transposed
        w_fc2_t=w(ks[8], (512, out_dim)),
        b_fc2=w(ks[9], (1, out_dim)),
    )
    # Kernel-side copies: bf16 MXU weights (no K padding needed) + packed SMEM
    # coefficient table for the two convolutions.
    p["w_si_t_bf16"] = p["w_si_t"].astype(jnp.bfloat16)
    p["w_fc1_t_bf16"] = p["w_fc1_t"].astype(jnp.bfloat16)
    p["w_fc2_t_bf16"] = p["w_fc2_t"].astype(jnp.bfloat16)
    p["conv_coef"] = jnp.concatenate(
        [p["w1"].reshape(-1), p["b1"].reshape(-1),
         p["w2"].reshape(-1), p["b2"].reshape(-1)]).astype(jnp.float32)
    assert p["conv_coef"].shape[0] == COEF_LEN
    return p


# Pure-JAX f32 reference of the exact same math (single sample).
def reference_forward_single(params, x_t, x_hat, s_item):
    input_dim, out_dim = params["input_dim"], params["out_dim"]
    s_proj = s_item.reshape(-1) @ params["w_si_t"] + params["b_si"].reshape(-1)
    xt = x_t.reshape(-1)
    xh = x_hat.reshape(-1)
    x_com = xt * xh * s_proj / jnp.sqrt(jnp.sum(xt ** 2))
    X = jnp.stack([s_proj, xt, xh, x_com], axis=0)                  # (4, N)
    h = gelu(params["w1"] @ X + params["b1"])                       # conv1 + Gelu
    y = params["w2"] @ h + params["b2"]                             # conv2
    z = gelu(y.reshape(out_dim, C2_OUT * input_dim))                # .view + Gelu
    h2 = gelu(z @ params["w_fc1_t"] + params["b_fc1"])
    return h2 @ params["w_fc2_t"] + params["b_fc2"]


if __name__ == "__main__":
    # x_t is the flat bridge weight of input_dim * out_dim elements (it is
    # concatenated 1-D with s_item in the torch forward).  The kernel batches
    # independent (x_t, x_hat, s_item) samples to amortize launch + weight DMA.
    input_dim, out_dim = 16, 8
    bridge_batch_size, s_item_dim = 4, 8
    N = input_dim * out_dim          # 128
    B = 128                          # batch of independent forward calls

    key = jax.random.PRNGKey(0)
    kp, kx1, kx2, ks = jax.random.split(key, 4)
    params = init_params(kp, input_dim, out_dim, bridge_batch_size, s_item_dim)

    x_t = jax.random.normal(kx1, (B, N), dtype=jnp.float32)
    x_hat = jax.random.normal(kx2, (B, N), dtype=jnp.float32)
    s_item = jax.random.normal(ks, (B, bridge_batch_size, s_item_dim), dtype=jnp.float32)

    out = conv_transfer_com_forward(params, x_t, x_hat, s_item)
    out = jax.block_until_ready(out)

    ref = jax.vmap(lambda a, b, c: reference_forward_single(params, a, b, c))(
        x_t, x_hat, s_item)
    assert out.shape == (B, out_dim, out_dim), out.shape
    max_err = float(jnp.max(jnp.abs(out - ref)))
    assert max_err < 2e-2, f"mismatch vs JAX reference, max abs err {max_err}"

    # TODO(synk): fc_t_usr / fc_t_item / MSE-BCE losses belong to run_bridge /
    # cal_loss_* (training utilities), not to forward(); not implemented here.
    print("KERNEL_OK")
</pallas_src>

<mosaic_0001>
module attributes {stable_mosaic.version = 11 : i64} {
  func.func @_fused_kernel(%arg0: i32, %arg1: memref<105xf32, #tpu.memory_space<smem>>, %arg2: memref<32x128xf32, #tpu.memory_space<vmem>>, %arg3: memref<32x128xf32, #tpu.memory_space<vmem>>, %arg4: memref<32x32xbf16, #tpu.memory_space<vmem>>, %arg5: memref<32x128xbf16, #tpu.memory_space<vmem>>, %arg6: memref<1x128xf32, #tpu.memory_space<vmem>>, %arg7: memref<80x512xbf16, #tpu.memory_space<vmem>>, %arg8: memref<1x512xf32, #tpu.memory_space<vmem>>, %arg9: memref<512x8xbf16, #tpu.memory_space<vmem>>, %arg10: memref<1x8xf32, #tpu.memory_space<vmem>>, %arg11: memref<8x32x8xf32, #tpu.memory_space<vmem>>, %arg12: memref<8x32x80xf32, #tpu.memory_space<vmem>>) attributes {dimension_semantics = [#tpu.dimension_semantics<parallel>], iteration_bounds = array<i64: 4>, scalar_prefetch = 0 : i64, scratch_operands = 1 : i64, tpu.core_type = #tpu.core_type<tc>, window_params = [{transform_indices = @transform_0, window_bounds = array<i64: 105>}, {transform_indices = @transform_1, window_bounds = array<i64: 32, 128>}, {transform_indices = @transform_2, window_bounds = array<i64: 32, 128>}, {transform_indices = @transform_3, window_bounds = array<i64: 32, 32>}, {pipeline_mode = #tpu.pipeline_mode<synchronous>, transform_indices = @transform_4, window_bounds = array<i64: 32, 128>}, {pipeline_mode = #tpu.pipeline_mode<synchronous>, transform_indices = @transform_5, window_bounds = array<i64: 1, 128>}, {pipeline_mode = #tpu.pipeline_mode<synchronous>, transform_indices = @transform_6, window_bounds = array<i64: 80, 512>}, {pipeline_mode = #tpu.pipeline_mode<synchronous>, transform_indices = @transform_7, window_bounds = array<i64: 1, 512>}, {pipeline_mode = #tpu.pipeline_mode<synchronous>, transform_indices = @transform_8, window_bounds = array<i64: 512, 8>}, {pipeline_mode = #tpu.pipeline_mode<synchronous>, transform_indices = @transform_9, window_bounds = array<i64: 1, 8>}, {transform_indices = @transform_10, window_bounds = array<i64: 8, 32, 8>}]} {
    %c0 = arith.constant 0 : index
    %c0_0 = arith.constant 0 : index
    %0 = vector.load %arg4[%c0, %c0_0] : memref<32x32xbf16, #tpu.memory_space<vmem>>, vector<32x32xbf16>
    %c0_1 = arith.constant 0 : index
    %c0_2 = arith.constant 0 : index
    %1 = vector.load %arg5[%c0_1, %c0_2] : memref<32x128xbf16, #tpu.memory_space<vmem>>, vector<32x128xbf16>
    %cst = arith.constant dense<0.000000e+00> : vector<32x128xf32>
    %2 = tpu.matmul %0, %1, %cst {dimension_numbers = #tpu.dot_dimension_numbers<[1], [0], [0], [1], [0, 0, 1, 1], [], []>} : vector<32x32xbf16>, vector<32x128xbf16>, vector<32x128xf32> -> vector<32x128xf32>
    %c0_3 = arith.constant 0 : index
    %c0_4 = arith.constant 0 : index
    %3 = vector.load %arg6[%c0_3, %c0_4] : memref<1x128xf32, #tpu.memory_space<vmem>>, vector<1x128xf32>
    %4 = vector.broadcast %3 : vector<1x128xf32> to vector<32x128xf32>
    %5 = arith.addf %2, %4 : vector<32x128xf32>
    %c0_5 = arith.constant 0 : index
    %c0_6 = arith.constant 0 : index
    %6 = vector.load %arg2[%c0_5, %c0_6] : memref<32x128xf32, #tpu.memory_space<vmem>>, vector<32x128xf32>
    %c0_7 = arith.constant 0 : index
    %c0_8 = arith.constant 0 : index
    %7 = vector.load %arg3[%c0_7, %c0_8] : memref<32x128xf32, #tpu.memory_space<vmem>>, vector<32x128xf32>
    %8 = arith.mulf %6, %6 : vector<32x128xf32>
    %cst_9 = arith.constant dense<0.000000e+00> : vector<32xf32>
    %9 = vector.multi_reduction <add>, %8, %cst_9 [1] : vector<32x128xf32> to vector<32xf32>
    %10 = vector.shape_cast %9 : vector<32xf32> to vector<32x1xf32>
    %11 = math.rsqrt %10 : vector<32x1xf32>
    %12 = arith.mulf %6, %7 : vector<32x128xf32>
    %13 = arith.mulf %12, %5 : vector<32x128xf32>
    %14 = vector.broadcast %11 : vector<32x1xf32> to vector<32x128xf32>
    %15 = arith.mulf %13, %14 : vector<32x128xf32>
    %c0_10 = arith.constant 0 : index
    %16 = memref.load %arg1[%c0_10] : memref<105xf32, #tpu.memory_space<smem>>
    %17 = vector.broadcast %16 : f32 to vector<32x128xf32>
    %18 = arith.mulf %17, %5 : vector<32x128xf32>
    %c1 = arith.constant 1 : index
    %19 = memref.load %arg1[%c1] : memref<105xf32, #tpu.memory_space<smem>>
    %20 = vector.broadcast %19 : f32 to vector<32x128xf32>
    %21 = arith.mulf %20, %6 : vector<32x128xf32>
    %22 = arith.addf %18, %21 : vector<32x128xf32>
    %c2 = arith.constant 2 : index
    %23 = memref.load %arg1[%c2] : memref<105xf32, #tpu.memory_space<smem>>
    %24 = vector.broadcast %23 : f32 to vector<32x128xf32>
    %25 = arith.mulf %24, %7 : vector<32x128xf32>
    %26 = arith.addf %22, %25 : vector<32x128xf32>
    %c3 = arith.constant 3 : index
    %27 = memref.load %arg1[%c3] : memref<105xf32, #tpu.memory_space<smem>>
    %28 = vector.broadcast %27 : f32 to vector<32x128xf32>
    %29 = arith.mulf %28, %15 : vector<32x128xf32>
    %30 = arith.addf %26, %29 : vector<32x128xf32>
    %c40 = arith.constant 40 : index
    %31 = memref.load %arg1[%c40] : memref<105xf32, #tpu.memory_space<smem>>
    %32 = vector.broadcast %31 : f32 to vector<32x128xf32>
    %33 = arith.addf %30, %32 : vector<32x128xf32>
    %cst_11 = arith.constant 1.702000e+00 : f32
    %34 = vector.broadcast %cst_11 : f32 to vector<32x128xf32>
    %35 = arith.mulf %34, %33 : vector<32x128xf32>
    %36 = arith.negf %35 : vector<32x128xf32>
    %37 = math.exp %36 : vector<32x128xf32>
    %cst_12 = arith.constant 1.000000e+00 : f32
    %38 = vector.broadcast %cst_12 : f32 to vector<32x128xf32>
    %39 = arith.addf %38, %37 : vector<32x128xf32>
    %40 = arith.divf %38, %39 : vector<32x128xf32>
    %41 = arith.mulf %33, %40 : vector<32x128xf32>
    %c50 = arith.constant 50 : index
    %42 = memref.load %arg1[%c50] : memref<105xf32, #tpu.memory_space<smem>>
    %43 = vector.broadcast %42 : f32 to vector<32x128xf32>
    %44 = arith.mulf %43, %41 : vector<32x128xf32>
    %c60 = arith.constant 60 : index
    %45 = memref.load %arg1[%c60] : memref<105xf32, #tpu.memory_space<smem>>
    %46 = vector.broadcast %45 : f32 to vector<32x128xf32>
    %47 = arith.mulf %46, %41 : vector<32x128xf32>
    %c70 = arith.constant 70 : index
    %48 = memref.load %arg1[%c70] : memref<105xf32, #tpu.memory_space<smem>>
    %49 = vector.broadcast %48 : f32 to vector<32x128xf32>
    %50 = arith.mulf %49, %41 : vector<32x128xf32>
    %c80 = arith.constant 80 : index
    %51 = memref.load %arg1[%c80] : memref<105xf32, #tpu.memory_space<smem>>
    %52 = vector.broadcast %51 : f32 to vector<32x128xf32>
    %53 = arith.mulf %52, %41 : vector<32x128xf32>
    %c90 = arith.constant 90 : index
    %54 = memref.load %arg1[%c90] : memref<105xf32, #tpu.memory_space<smem>>
    %55 = vector.broadcast %54 : f32 to vector<32x128xf32>
    %56 = arith.mulf %55, %41 : vector<32x128xf32>
    %c4 = arith.constant 4 : index
    %57 = memref.load %arg1[%c4] : memref<105xf32, #tpu.memory_space<smem>>
    %58 = vector.broadcast %57 : f32 to vector<32x128xf32>
    %59 = arith.mulf %58, %5 : vector<32x128xf32>
    %c5 = arith.constant 5 : index
    %60 = memref.load %arg1[%c5] : memref<105xf32, #tpu.memory_space<smem>>
    %61 = vector.broadcast %60 : f32 to vector<32x128xf32>
    %62 = arith.mulf %61, %6 : vector<32x128xf32>
    %63 = arith.addf %59, %62 : vector<32x128xf32>
    %c6 = arith.constant 6 : index
    %64 = memref.load %arg1[%c6] : memref<105xf32, #tpu.memory_space<smem>>
    %65 = vector.broadcast %64 : f32 to vector<32x128xf32>
    %66 = arith.mulf %65, %7 : vector<32x128xf32>
    %67 = arith.addf %63, %66 : vector<32x128xf32>
    %c7 = arith.constant 7 : index
    %68 = memref.load %arg1[%c7] : memref<105xf32, #tpu.memory_space<smem>>
    %69 = vector.broadcast %68 : f32 to vector<32x128xf32>
    %70 = arith.mulf %69, %15 : vector<32x128xf32>
    %71 = arith.addf %67, %70 : vector<32x128xf32>
    %c41 = arith.constant 41 : index
    %72 = memref.load %arg1[%c41] : memref<105xf32, #tpu.memory_space<smem>>
    %73 = vector.broadcast %72 : f32 to vector<32x128xf32>
    %74 = arith.addf %71, %73 : vector<32x128xf32>
    %cst_13 = arith.constant 1.702000e+00 : f32
    %75 = vector.broadcast %cst_13 : f32 to vector<32x128xf32>
    %76 = arith.mulf %75, %74 : vector<32x128xf32>
    %77 = arith.negf %76 : vector<32x128xf32>
    %78 = math.exp %77 : vector<32x128xf32>
    %cst_14 = arith.constant 1.000000e+00 : f32
    %79 = vector.broadcast %cst_14 : f32 to vector<32x128xf32>
    %80 = arith.addf %79, %78 : vector<32x128xf32>
    %81 = arith.divf %79, %80 : vector<32x128xf32>
    %82 = arith.mulf %74, %81 : vector<32x128xf32>
    %c51 = arith.constant 51 : index
    %83 = memref.load %arg1[%c51] : memref<105xf32, #tpu.memory_space<smem>>
    %84 = vector.broadcast %83 : f32 to vector<32x128xf32>
    %85 = arith.mulf %84, %82 : vector<32x128xf32>
    %86 = arith.addf %44, %85 : vector<32x128xf32>
    %c61 = arith.constant 61 : index
    %87 = memref.load %arg1[%c61] : memref<105xf32, #tpu.memory_space<smem>>
    %88 = vector.broadcast %87 : f32 to vector<32x128xf32>
    %89 = arith.mulf %88, %82 : vector<32x128xf32>
    %90 = arith.addf %47, %89 : vector<32x128xf32>
    %c71 = arith.constant 71 : index
    %91 = memref.load %arg1[%c71] : memref<105xf32, #tpu.memory_space<smem>>
    %92 = vector.broadcast %91 : f32 to vector<32x128xf32>
    %93 = arith.mulf %92, %82 : vector<32x128xf32>
    %94 = arith.addf %50, %93 : vector<32x128xf32>
    %c81 = arith.constant 81 : index
    %95 = memref.load %arg1[%c81] : memref<105xf32, #tpu.memory_space<smem>>
    %96 = vector.broadcast %95 : f32 to vector<32x128xf32>
    %97 = arith.mulf %96, %82 : vector<32x128xf32>
    %98 = arith.addf %53, %97 : vector<32x128xf32>
    %c91 = arith.constant 91 : index
    %99 = memref.load %arg1[%c91] : memref<105xf32, #tpu.memory_space<smem>>
    %100 = vector.broadcast %99 : f32 to vector<32x128xf32>
    %101 = arith.mulf %100, %82 : vector<32x128xf32>
    %102 = arith.addf %56, %101 : vector<32x128xf32>
    %c8 = arith.constant 8 : index
    %103 = memref.load %arg1[%c8] : memref<105xf32, #tpu.memory_space<smem>>
    %104 = vector.broadcast %103 : f32 to vector<32x128xf32>
    %105 = arith.mulf %104, %5 : vector<32x128xf32>
    %c9 = arith.constant 9 : index
    %106 = memref.load %arg1[%c9] : memref<105xf32, #tpu.memory_space<smem>>
    %107 = vector.broadcast %106 : f32 to vector<32x128xf32>
    %108 = arith.mulf %107, %6 : vector<32x128xf32>
    %109 = arith.addf %105, %108 : vector<32x128xf32>
    %c10 = arith.constant 10 : index
    %110 = memref.load %arg1[%c10] : memref<105xf32, #tpu.memory_space<smem>>
    %111 = vector.broadcast %110 : f32 to vector<32x128xf32>
    %112 = arith.mulf %111, %7 : vector<32x128xf32>
    %113 = arith.addf %109, %112 : vector<32x128xf32>
    %c11 = arith.constant 11 : index
    %114 = memref.load %arg1[%c11] : memref<105xf32, #tpu.memory_space<smem>>
    %115 = vector.broadcast %114 : f32 to vector<32x128xf32>
    %116 = arith.mulf %115, %15 : vector<32x128xf32>
    %117 = arith.addf %113, %116 : vector<32x128xf32>
    %c42 = arith.constant 42 : index
    %118 = memref.load %arg1[%c42] : memref<105xf32, #tpu.memory_space<smem>>
    %119 = vector.broadcast %118 : f32 to vector<32x128xf32>
    %120 = arith.addf %117, %119 : vector<32x128xf32>
    %cst_15 = arith.constant 1.702000e+00 : f32
    %121 = vector.broadcast %cst_15 : f32 to vector<32x128xf32>
    %122 = arith.mulf %121, %120 : vector<32x128xf32>
    %123 = arith.negf %122 : vector<32x128xf32>
    %124 = math.exp %123 : vector<32x128xf32>
    %cst_16 = arith.constant 1.000000e+00 : f32
    %125 = vector.broadcast %cst_16 : f32 to vector<32x128xf32>
    %126 = arith.addf %125, %124 : vector<32x128xf32>
    %127 = arith.divf %125, %126 : vector<32x128xf32>
    %128 = arith.mulf %120, %127 : vector<32x128xf32>
    %c52 = arith.constant 52 : index
    %129 = memref.load %arg1[%c52] : memref<105xf32, #tpu.memory_space<smem>>
    %130 = vector.broadcast %129 : f32 to vector<32x128xf32>
    %131 = arith.mulf %130, %128 : vector<32x128xf32>
    %132 = arith.addf %86, %131 : vector<32x128xf32>
    %c62 = arith.constant 62 : index
    %133 = memref.load %arg1[%c62] : memref<105xf32, #tpu.memory_space<smem>>
    %134 = vector.broadcast %133 : f32 to vector<32x128xf32>
    %135 = arith.mulf %134, %128 : vector<32x128xf32>
    %136 = arith.addf %90, %135 : vector<32x128xf32>
    %c72 = arith.constant 72 : index
    %137 = memref.load %arg1[%c72] : memref<105xf32, #tpu.memory_space<smem>>
    %138 = vector.broadcast %137 : f32 to vector<32x128xf32>
    %139 = arith.mulf %138, %128 : vector<32x128xf32>
    %140 = arith.addf %94, %139 : vector<32x128xf32>
    %c82 = arith.constant 82 : index
    %141 = memref.load %arg1[%c82] : memref<105xf32, #tpu.memory_space<smem>>
    %142 = vector.broadcast %141 : f32 to vector<32x128xf32>
    %143 = arith.mulf %142, %128 : vector<32x128xf32>
    %144 = arith.addf %98, %143 : vector<32x128xf32>
    %c92 = arith.constant 92 : index
    %145 = memref.load %arg1[%c92] : memref<105xf32, #tpu.memory_space<smem>>
    %146 = vector.broadcast %145 : f32 to vector<32x128xf32>
    %147 = arith.mulf %146, %128 : vector<32x128xf32>
    %148 = arith.addf %102, %147 : vector<32x128xf32>
    %c12 = arith.constant 12 : index
    %149 = memref.load %arg1[%c12] : memref<105xf32, #tpu.memory_space<smem>>
    %150 = vector.broadcast %149 : f32 to vector<32x128xf32>
    %151 = arith.mulf %150, %5 : vector<32x128xf32>
    %c13 = arith.constant 13 : index
    %152 = memref.load %arg1[%c13] : memref<105xf32, #tpu.memory_space<smem>>
    %153 = vector.broadcast %152 : f32 to vector<32x128xf32>
    %154 = arith.mulf %153, %6 : vector<32x128xf32>
    %155 = arith.addf %151, %154 : vector<32x128xf32>
    %c14 = arith.constant 14 : index
    %156 = memref.load %arg1[%c14] : memref<105xf32, #tpu.memory_space<smem>>
    %157 = vector.broadcast %156 : f32 to vector<32x128xf32>
    %158 = arith.mulf %157, %7 : vector<32x128xf32>
    %159 = arith.addf %155, %158 : vector<32x128xf32>
    %c15 = arith.constant 15 : index
    %160 = memref.load %arg1[%c15] : memref<105xf32, #tpu.memory_space<smem>>
    %161 = vector.broadcast %160 : f32 to vector<32x128xf32>
    %162 = arith.mulf %161, %15 : vector<32x128xf32>
    %163 = arith.addf %159, %162 : vector<32x128xf32>
    %c43 = arith.constant 43 : index
    %164 = memref.load %arg1[%c43] : memref<105xf32, #tpu.memory_space<smem>>
    %165 = vector.broadcast %164 : f32 to vector<32x128xf32>
    %166 = arith.addf %163, %165 : vector<32x128xf32>
    %cst_17 = arith.constant 1.702000e+00 : f32
    %167 = vector.broadcast %cst_17 : f32 to vector<32x128xf32>
    %168 = arith.mulf %167, %166 : vector<32x128xf32>
    %169 = arith.negf %168 : vector<32x128xf32>
    %170 = math.exp %169 : vector<32x128xf32>
    %cst_18 = arith.constant 1.000000e+00 : f32
    %171 = vector.broadcast %cst_18 : f32 to vector<32x128xf32>
    %172 = arith.addf %171, %170 : vector<32x128xf32>
    %173 = arith.divf %171, %172 : vector<32x128xf32>
    %174 = arith.mulf %166, %173 : vector<32x128xf32>
    %c53 = arith.constant 53 : index
    %175 = memref.load %arg1[%c53] : memref<105xf32, #tpu.memory_space<smem>>
    %176 = vector.broadcast %175 : f32 to vector<32x128xf32>
    %177 = arith.mulf %176, %174 : vector<32x128xf32>
    %178 = arith.addf %132, %177 : vector<32x128xf32>
    %c63 = arith.constant 63 : index
    %179 = memref.load %arg1[%c63] : memref<105xf32, #tpu.memory_space<smem>>
    %180 = vector.broadcast %179 : f32 to vector<32x128xf32>
    %181 = arith.mulf %180, %174 : vector<32x128xf32>
    %182 = arith.addf %136, %181 : vector<32x128xf32>
    %c73 = arith.constant 73 : index
    %183 = memref.load %arg1[%c73] : memref<105xf32, #tpu.memory_space<smem>>
    %184 = vector.broadcast %183 : f32 to vector<32x128xf32>
    %185 = arith.mulf %184, %174 : vector<32x128xf32>
    %186 = arith.addf %140, %185 : vector<32x128xf32>
    %c83 = arith.constant 83 : index
    %187 = memref.load %arg1[%c83] : memref<105xf32, #tpu.memory_space<smem>>
    %188 = vector.broadcast %187 : f32 to vector<32x128xf32>
    %189 = arith.mulf %188, %174 : vector<32x128xf32>
    %190 = arith.addf %144, %189 : vector<32x128xf32>
    %c93 = arith.constant 93 : index
    %191 = memref.load %arg1[%c93] : memref<105xf32, #tpu.memory_space<smem>>
    %192 = vector.broadcast %191 : f32 to vector<32x128xf32>
    %193 = arith.mulf %192, %174 : vector<32x128xf32>
    %194 = arith.addf %148, %193 : vector<32x128xf32>
    %c16 = arith.constant 16 : index
    %195 = memref.load %arg1[%c16] : memref<105xf32, #tpu.memory_space<smem>>
    %196 = vector.broadcast %195 : f32 to vector<32x128xf32>
    %197 = arith.mulf %196, %5 : vector<32x128xf32>
    %c17 = arith.constant 17 : index
    %198 = memref.load %arg1[%c17] : memref<105xf32, #tpu.memory_space<smem>>
    %199 = vector.broadcast %198 : f32 to vector<32x128xf32>
    %200 = arith.mulf %199, %6 : vector<32x128xf32>
    %201 = arith.addf %197, %200 : vector<32x128xf32>
    %c18 = arith.constant 18 : index
    %202 = memref.load %arg1[%c18] : memref<105xf32, #tpu.memory_space<smem>>
    %203 = vector.broadcast %202 : f32 to vector<32x128xf32>
    %204 = arith.mulf %203, %7 : vector<32x128xf32>
    %205 = arith.addf %201, %204 : vector<32x128xf32>
    %c19 = arith.constant 19 : index
    %206 = memref.load %arg1[%c19] : memref<105xf32, #tpu.memory_space<smem>>
    %207 = vector.broadcast %206 : f32 to vector<32x128xf32>
    %208 = arith.mulf %207, %15 : vector<32x128xf32>
    %209 = arith.addf %205, %208 : vector<32x128xf32>
    %c44 = arith.constant 44 : index
    %210 = memref.load %arg1[%c44] : memref<105xf32, #tpu.memory_space<smem>>
    %211 = vector.broadcast %210 : f32 to vector<32x128xf32>
    %212 = arith.addf %209, %211 : vector<32x128xf32>
    %cst_19 = arith.constant 1.702000e+00 : f32
    %213 = vector.broadcast %cst_19 : f32 to vector<32x128xf32>
    %214 = arith.mulf %213, %212 : vector<32x128xf32>
    %215 = arith.negf %214 : vector<32x128xf32>
    %216 = math.exp %215 : vector<32x128xf32>
    %cst_20 = arith.constant 1.000000e+00 : f32
    %217 = vector.broadcast %cst_20 : f32 to vector<32x128xf32>
    %218 = arith.addf %217, %216 : vector<32x128xf32>
    %219 = arith.divf %217, %218 : vector<32x128xf32>
    %220 = arith.mulf %212, %219 : vector<32x128xf32>
    %c54 = arith.constant 54 : index
    %221 = memref.load %arg1[%c54] : memref<105xf32, #tpu.memory_space<smem>>
    %222 = vector.broadcast %221 : f32 to vector<32x128xf32>
    %223 = arith.mulf %222, %220 : vector<32x128xf32>
    %224 = arith.addf %178, %223 : vector<32x128xf32>
    %c64 = arith.constant 64 : index
    %225 = memref.load %arg1[%c64] : memref<105xf32, #tpu.memory_space<smem>>
    %226 = vector.broadcast %225 : f32 to vector<32x128xf32>
    %227 = arith.mulf %226, %220 : vector<32x128xf32>
    %228 = arith.addf %182, %227 : vector<32x128xf32>
    %c74 = arith.constant 74 : index
    %229 = memref.load %arg1[%c74] : memref<105xf32, #tpu.memory_space<smem>>
    %230 = vector.broadcast %229 : f32 to vector<32x128xf32>
    %231 = arith.mulf %230, %220 : vector<32x128xf32>
    %232 = arith.addf %186, %231 : vector<32x128xf32>
    %c84 = arith.constant 84 : index
    %233 = memref.load %arg1[%c84] : memref<105xf32, #tpu.memory_space<smem>>
    %234 = vector.broadcast %233 : f32 to vector<32x128xf32>
    %235 = arith.mulf %234, %220 : vector<32x128xf32>
    %236 = arith.addf %190, %235 : vector<32x128xf32>
    %c94 = arith.constant 94 : index
    %237 = memref.load %arg1[%c94] : memref<105xf32, #tpu.memory_space<smem>>
    %238 = vector.broadcast %237 : f32 to vector<32x128xf32>
    %239 = arith.mulf %238, %220 : vector<32x128xf32>
    %240 = arith.addf %194, %239 : vector<32x128xf32>
    %c20 = arith.constant 20 : index
    %241 = memref.load %arg1[%c20] : memref<105xf32, #tpu.memory_space<smem>>
    %242 = vector.broadcast %241 : f32 to vector<32x128xf32>
    %243 = arith.mulf %242, %5 : vector<32x128xf32>
    %c21 = arith.constant 21 : index
    %244 = memref.load %arg1[%c21] : memref<105xf32, #tpu.memory_space<smem>>
    %245 = vector.broadcast %244 : f32 to vector<32x128xf32>
    %246 = arith.mulf %245, %6 : vector<32x128xf32>
    %247 = arith.addf %243, %246 : vector<32x128xf32>
    %c22 = arith.constant 22 : index
    %248 = memref.load %arg1[%c22] : memref<105xf32, #tpu.memory_space<smem>>
    %249 = vector.broadcast %248 : f32 to vector<32x128xf32>
    %250 = arith.mulf %249, %7 : vector<32x128xf32>
    %251 = arith.addf %247, %250 : vector<32x128xf32>
    %c23 = arith.constant 23 : index
    %252 = memref.load %arg1[%c23] : memref<105xf32, #tpu.memory_space<smem>>
    %253 = vector.broadcast %252 : f32 to vector<32x128xf32>
    %254 = arith.mulf %253, %15 : vector<32x128xf32>
    %255 = arith.addf %251, %254 : vector<32x128xf32>
    %c45 = arith.constant 45 : index
    %256 = memref.load %arg1[%c45] : memref<105xf32, #tpu.memory_space<smem>>
    %257 = vector.broadcast %256 : f32 to vector<32x128xf32>
    %258 = arith.addf %255, %257 : vector<32x128xf32>
    %cst_21 = arith.constant 1.702000e+00 : f32
    %259 = vector.broadcast %cst_21 : f32 to vector<32x128xf32>
    %260 = arith.mulf %259, %258 : vector<32x128xf32>
    %261 = arith.negf %260 : vector<32x128xf32>
    %262 = math.exp %261 : vector<32x128xf32>
    %cst_22 = arith.constant 1.000000e+00 : f32
    %263 = vector.broadcast %cst_22 : f32 to vector<32x128xf32>
    %264 = arith.addf %263, %262 : vector<32x128xf32>
    %265 = arith.divf %263, %264 : vector<32x128xf32>
    %266 = arith.mulf %258, %265 : vector<32x128xf32>
    %c55 = arith.constant 55 : index
    %267 = memref.load %arg1[%c55] : memref<105xf32, #tpu.memory_space<smem>>
    %268 = vector.broadcast %267 : f32 to vector<32x128xf32>
    %269 = arith.mulf %268, %266 : vector<32x128xf32>
    %270 = arith.addf %224, %269 : vector<32x128xf32>
    %c65 = arith.constant 65 : index
    %271 = memref.load %arg1[%c65] : memref<105xf32, #tpu.memory_space<smem>>
    %272 = vector.broadcast %271 : f32 to vector<32x128xf32>
    %273 = arith.mulf %272, %266 : vector<32x128xf32>
    %274 = arith.addf %228, %273 : vector<32x128xf32>
    %c75 = arith.constant 75 : index
    %275 = memref.load %arg1[%c75] : memref<105xf32, #tpu.memory_space<smem>>
    %276 = vector.broadcast %275 : f32 to vector<32x128xf32>
    %277 = arith.mulf %276, %266 : vector<32x128xf32>
    %278 = arith.addf %232, %277 : vector<32x128xf32>
    %c85 = arith.constant 85 : index
    %279 = memref.load %arg1[%c85] : memref<105xf32, #tpu.memory_space<smem>>
    %280 = vector.broadcast %279 : f32 to vector<32x128xf32>
    %281 = arith.mulf %280, %266 : vector<32x128xf32>
    %282 = arith.addf %236, %281 : vector<32x128xf32>
    %c95 = arith.constant 95 : index
    %283 = memref.load %arg1[%c95] : memref<105xf32, #tpu.memory_space<smem>>
    %284 = vector.broadcast %283 : f32 to vector<32x128xf32>
    %285 = arith.mulf %284, %266 : vector<32x128xf32>
    %286 = arith.addf %240, %285 : vector<32x128xf32>
    %c24 = arith.constant 24 : index
    %287 = memref.load %arg1[%c24] : memref<105xf32, #tpu.memory_space<smem>>
    %288 = vector.broadcast %287 : f32 to vector<32x128xf32>
    %289 = arith.mulf %288, %5 : vector<32x128xf32>
    %c25 = arith.constant 25 : index
    %290 = memref.load %arg1[%c25] : memref<105xf32, #tpu.memory_space<smem>>
    %291 = vector.broadcast %290 : f32 to vector<32x128xf32>
    %292 = arith.mulf %291, %6 : vector<32x128xf32>
    %293 = arith.addf %289, %292 : vector<32x128xf32>
    %c26 = arith.constant 26 : index
    %294 = memref.load %arg1[%c26] : memref<105xf32, #tpu.memory_space<smem>>
    %295 = vector.broadcast %294 : f32 to vector<32x128xf32>
    %296 = arith.mulf %295, %7 : vector<32x128xf32>
    %297 = arith.addf %293, %296 : vector<32x128xf32>
    %c27 = arith.constant 27 : index
    %298 = memref.load %arg1[%c27] : memref<105xf32, #tpu.memory_space<smem>>
    %299 = vector.broadcast %298 : f32 to vector<32x128xf32>
    %300 = arith.mulf %299, %15 : vector<32x128xf32>
    %301 = arith.addf %297, %300 : vector<32x128xf32>
    %c46 = arith.constant 46 : index
    %302 = memref.load %arg1[%c46] : memref<105xf32, #tpu.memory_space<smem>>
    %303 = vector.broadcast %302 : f32 to vector<32x128xf32>
    %304 = arith.addf %301, %303 : vector<32x128xf32>
    %cst_23 = arith.constant 1.702000e+00 : f32
    %305 = vector.broadcast %cst_23 : f32 to vector<32x128xf32>
    %306 = arith.mulf %305, %304 : vector<32x128xf32>
    %307 = arith.negf %306 : vector<32x128xf32>
    %308 = math.exp %307 : vector<32x128xf32>
    %cst_24 = arith.constant 1.000000e+00 : f32
    %309 = vector.broadcast %cst_24 : f32 to vector<32x128xf32>
    %310 = arith.addf %309, %308 : vector<32x128xf32>
    %311 = arith.divf %309, %310 : vector<32x128xf32>
    %312 = arith.mulf %304, %311 : vector<32x128xf32>
    %c56 = arith.constant 56 : index
    %313 = memref.load %arg1[%c56] : memref<105xf32, #tpu.memory_space<smem>>
    %314 = vector.broadcast %313 : f32 to vector<32x128xf32>
    %315 = arith.mulf %314, %312 : vector<32x128xf32>
    %316 = arith.addf %270, %315 : vector<32x128xf32>
    %c66 = arith.constant 66 : index
    %317 = memref.load %arg1[%c66] : memref<105xf32, #tpu.memory_space<smem>>
    %318 = vector.broadcast %317 : f32 to vector<32x128xf32>
    %319 = arith.mulf %318, %312 : vector<32x128xf32>
    %320 = arith.addf %274, %319 : vector<32x128xf32>
    %c76 = arith.constant 76 : index
    %321 = memref.load %arg1[%c76] : memref<105xf32, #tpu.memory_space<smem>>
    %322 = vector.broadcast %321 : f32 to vector<32x128xf32>
    %323 = arith.mulf %322, %312 : vector<32x128xf32>
    %324 = arith.addf %278, %323 : vector<32x128xf32>
    %c86 = arith.constant 86 : index
    %325 = memref.load %arg1[%c86] : memref<105xf32, #tpu.memory_space<smem>>
    %326 = vector.broadcast %325 : f32 to vector<32x128xf32>
    %327 = arith.mulf %326, %312 : vector<32x128xf32>
    %328 = arith.addf %282, %327 : vector<32x128xf32>
    %c96 = arith.constant 96 : index
    %329 = memref.load %arg1[%c96] : memref<105xf32, #tpu.memory_space<smem>>
    %330 = vector.broadcast %329 : f32 to vector<32x128xf32>
    %331 = arith.mulf %330, %312 : vector<32x128xf32>
    %332 = arith.addf %286, %331 : vector<32x128xf32>
    %c28 = arith.constant 28 : index
    %333 = memref.load %arg1[%c28] : memref<105xf32, #tpu.memory_space<smem>>
    %334 = vector.broadcast %333 : f32 to vector<32x128xf32>
    %335 = arith.mulf %334, %5 : vector<32x128xf32>
    %c29 = arith.constant 29 : index
    %336 = memref.load %arg1[%c29] : memref<105xf32, #tpu.memory_space<smem>>
    %337 = vector.broadcast %336 : f32 to vector<32x128xf32>
    %338 = arith.mulf %337, %6 : vector<32x128xf32>
    %339 = arith.addf %335, %338 : vector<32x128xf32>
    %c30 = arith.constant 30 : index
    %340 = memref.load %arg1[%c30] : memref<105xf32, #tpu.memory_space<smem>>
    %341 = vector.broadcast %340 : f32 to vector<32x128xf32>
    %342 = arith.mulf %341, %7 : vector<32x128xf32>
    %343 = arith.addf %339, %342 : vector<32x128xf32>
    %c31 = arith.constant 31 : index
    %344 = memref.load %arg1[%c31] : memref<105xf32, #tpu.memory_space<smem>>
    %345 = vector.broadcast %344 : f32 to vector<32x128xf32>
    %346 = arith.mulf %345, %15 : vector<32x128xf32>
    %347 = arith.addf %343, %346 : vector<32x128xf32>
    %c47 = arith.constant 47 : index
    %348 = memref.load %arg1[%c47] : memref<105xf32, #tpu.memory_space<smem>>
    %349 = vector.broadcast %348 : f32 to vector<32x128xf32>
    %350 = arith.addf %347, %349 : vector<32x128xf32>
    %cst_25 = arith.constant 1.702000e+00 : f32
    %351 = vector.broadcast %cst_25 : f32 to vector<32x128xf32>
    %352 = arith.mulf %351, %350 : vector<32x128xf32>
    %353 = arith.negf %352 : vector<32x128xf32>
    %354 = math.exp %353 : vector<32x128xf32>
    %cst_26 = arith.constant 1.000000e+00 : f32
    %355 = vector.broadcast %cst_26 : f32 to vector<32x128xf32>
    %356 = arith.addf %355, %354 : vector<32x128xf32>
    %357 = arith.divf %355, %356 : vector<32x128xf32>
    %358 = arith.mulf %350, %357 : vector<32x128xf32>
    %c57 = arith.constant 57 : index
    %359 = memref.load %arg1[%c57] : memref<105xf32, #tpu.memory_space<smem>>
    %360 = vector.broadcast %359 : f32 to vector<32x128xf32>
    %361 = arith.mulf %360, %358 : vector<32x128xf32>
    %362 = arith.addf %316, %361 : vector<32x128xf32>
    %c67 = arith.constant 67 : index
    %363 = memref.load %arg1[%c67] : memref<105xf32, #tpu.memory_space<smem>>
    %364 = vector.broadcast %363 : f32 to vector<32x128xf32>
    %365 = arith.mulf %364, %358 : vector<32x128xf32>
    %366 = arith.addf %320, %365 : vector<32x128xf32>
    %c77 = arith.constant 77 : index
    %367 = memref.load %arg1[%c77] : memref<105xf32, #tpu.memory_space<smem>>
    %368 = vector.broadcast %367 : f32 to vector<32x128xf32>
    %369 = arith.mulf %368, %358 : vector<32x128xf32>
    %370 = arith.addf %324, %369 : vector<32x128xf32>
    %c87 = arith.constant 87 : index
    %371 = memref.load %arg1[%c87] : memref<105xf32, #tpu.memory_space<smem>>
    %372 = vector.broadcast %371 : f32 to vector<32x128xf32>
    %373 = arith.mulf %372, %358 : vector<32x128xf32>
    %374 = arith.addf %328, %373 : vector<32x128xf32>
    %c97 = arith.constant 97 : index
    %375 = memref.load %arg1[%c97] : memref<105xf32, #tpu.memory_space<smem>>
    %376 = vector.broadcast %375 : f32 to vector<32x128xf32>
    %377 = arith.mulf %376, %358 : vector<32x128xf32>
    %378 = arith.addf %332, %377 : vector<32x128xf32>
    %c32 = arith.constant 32 : index
    %379 = memref.load %arg1[%c32] : memref<105xf32, #tpu.memory_space<smem>>
    %380 = vector.broadcast %379 : f32 to vector<32x128xf32>
    %381 = arith.mulf %380, %5 : vector<32x128xf32>
    %c33 = arith.constant 33 : index
    %382 = memref.load %arg1[%c33] : memref<105xf32, #tpu.memory_space<smem>>
    %383 = vector.broadcast %382 : f32 to vector<32x128xf32>
    %384 = arith.mulf %383, %6 : vector<32x128xf32>
    %385 = arith.addf %381, %384 : vector<32x128xf32>
    %c34 = arith.constant 34 : index
    %386 = memref.load %arg1[%c34] : memref<105xf32, #tpu.memory_space<smem>>
    %387 = vector.broadcast %386 : f32 to vector<32x128xf32>
    %388 = arith.mulf %387, %7 : vector<32x128xf32>
    %389 = arith.addf %385, %388 : vector<32x128xf32>
    %c35 = arith.constant 35 : index
    %390 = memref.load %arg1[%c35] : memref<105xf32, #tpu.memory_space<smem>>
    %391 = vector.broadcast %390 : f32 to vector<32x128xf32>
    %392 = arith.mulf %391, %15 : vector<32x128xf32>
    %393 = arith.addf %389, %392 : vector<32x128xf32>
    %c48 = arith.constant 48 : index
    %394 = memref.load %arg1[%c48] : memref<105xf32, #tpu.memory_space<smem>>
    %395 = vector.broadcast %394 : f32 to vector<32x128xf32>
    %396 = arith.addf %393, %395 : vector<32x128xf32>
    %cst_27 = arith.constant 1.702000e+00 : f32
    %397 = vector.broadcast %cst_27 : f32 to vector<32x128xf32>
    %398 = arith.mulf %397, %396 : vector<32x128xf32>
    %399 = arith.negf %398 : vector<32x128xf32>
    %400 = math.exp %399 : vector<32x128xf32>
    %cst_28 = arith.constant 1.000000e+00 : f32
    %401 = vector.broadcast %cst_28 : f32 to vector<32x128xf32>
    %402 = arith.addf %401, %400 : vector<32x128xf32>
    %403 = arith.divf %401, %402 : vector<32x128xf32>
    %404 = arith.mulf %396, %403 : vector<32x128xf32>
    %c58 = arith.constant 58 : index
    %405 = memref.load %arg1[%c58] : memref<105xf32, #tpu.memory_space<smem>>
    %406 = vector.broadcast %405 : f32 to vector<32x128xf32>
    %407 = arith.mulf %406, %404 : vector<32x128xf32>
    %408 = arith.addf %362, %407 : vector<32x128xf32>
    %c68 = arith.constant 68 : index
    %409 = memref.load %arg1[%c68] : memref<105xf32, #tpu.memory_space<smem>>
    %410 = vector.broadcast %409 : f32 to vector<32x128xf32>
    %411 = arith.mulf %410, %404 : vector<32x128xf32>
    %412 = arith.addf %366, %411 : vector<32x128xf32>
    %c78 = arith.constant 78 : index
    %413 = memref.load %arg1[%c78] : memref<105xf32, #tpu.memory_space<smem>>
    %414 = vector.broadcast %413 : f32 to vector<32x128xf32>
    %415 = arith.mulf %414, %404 : vector<32x128xf32>
    %416 = arith.addf %370, %415 : vector<32x128xf32>
    %c88 = arith.constant 88 : index
    %417 = memref.load %arg1[%c88] : memref<105xf32, #tpu.memory_space<smem>>
    %418 = vector.broadcast %417 : f32 to vector<32x128xf32>
    %419 = arith.mulf %418, %404 : vector<32x128xf32>
    %420 = arith.addf %374, %419 : vector<32x128xf32>
    %c98 = arith.constant 98 : index
    %421 = memref.load %arg1[%c98] : memref<105xf32, #tpu.memory_space<smem>>
    %422 = vector.broadcast %421 : f32 to vector<32x128xf32>
    %423 = arith.mulf %422, %404 : vector<32x128xf32>
    %424 = arith.addf %378, %423 : vector<32x128xf32>
    %c36 = arith.constant 36 : index
    %425 = memref.load %arg1[%c36] : memref<105xf32, #tpu.memory_space<smem>>
    %426 = vector.broadcast %425 : f32 to vector<32x128xf32>
    %427 = arith.mulf %426, %5 : vector<32x128xf32>
    %c37 = arith.constant 37 : index
    %428 = memref.load %arg1[%c37] : memref<105xf32, #tpu.memory_space<smem>>
    %429 = vector.broadcast %428 : f32 to vector<32x128xf32>
    %430 = arith.mulf %429, %6 : vector<32x128xf32>
    %431 = arith.addf %427, %430 : vector<32x128xf32>
    %c38 = arith.constant 38 : index
    %432 = memref.load %arg1[%c38] : memref<105xf32, #tpu.memory_space<smem>>
    %433 = vector.broadcast %432 : f32 to vector<32x128xf32>
    %434 = arith.mulf %433, %7 : vector<32x128xf32>
    %435 = arith.addf %431, %434 : vector<32x128xf32>
    %c39 = arith.constant 39 : index
    %436 = memref.load %arg1[%c39] : memref<105xf32, #tpu.memory_space<smem>>
    %437 = vector.broadcast %436 : f32 to vector<32x128xf32>
    %438 = arith.mulf %437, %15 : vector<32x128xf32>
    %439 = arith.addf %435, %438 : vector<32x128xf32>
    %c49 = arith.constant 49 : index
    %440 = memref.load %arg1[%c49] : memref<105xf32, #tpu.memory_space<smem>>
    %441 = vector.broadcast %440 : f32 to vector<32x128xf32>
    %442 = arith.addf %439, %441 : vector<32x128xf32>
    %cst_29 = arith.constant 1.702000e+00 : f32
    %443 = vector.broadcast %cst_29 : f32 to vector<32x128xf32>
    %444 = arith.mulf %443, %442 : vector<32x128xf32>
    %445 = arith.negf %444 : vector<32x128xf32>
    %446 = math.exp %445 : vector<32x128xf32>
    %cst_30 = arith.constant 1.000000e+00 : f32
    %447 = vector.broadcast %cst_30 : f32 to vector<32x128xf32>
    %448 = arith.addf %447, %446 : vector<32x128xf32>
    %449 = arith.divf %447, %448 : vector<32x128xf32>
    %450 = arith.mulf %442, %449 : vector<32x128xf32>
    %c59 = arith.constant 59 : index
    %451 = memref.load %arg1[%c59] : memref<105xf32, #tpu.memory_space<smem>>
    %452 = vector.broadcast %451 : f32 to vector<32x128xf32>
    %453 = arith.mulf %452, %450 : vector<32x128xf32>
    %454 = arith.addf %408, %453 : vector<32x128xf32>
    %c69 = arith.constant 69 : index
    %455 = memref.load %arg1[%c69] : memref<105xf32, #tpu.memory_space<smem>>
    %456 = vector.broadcast %455 : f32 to vector<32x128xf32>
    %457 = arith.mulf %456, %450 : vector<32x128xf32>
    %458 = arith.addf %412, %457 : vector<32x128xf32>
    %c79 = arith.constant 79 : index
    %459 = memref.load %arg1[%c79] : memref<105xf32, #tpu.memory_space<smem>>
    %460 = vector.broadcast %459 : f32 to vector<32x128xf32>
    %461 = arith.mulf %460, %450 : vector<32x128xf32>
    %462 = arith.addf %416, %461 : vector<32x128xf32>
    %c89 = arith.constant 89 : index
    %463 = memref.load %arg1[%c89] : memref<105xf32, #tpu.memory_space<smem>>
    %464 = vector.broadcast %463 : f32 to vector<32x128xf32>
    %465 = arith.mulf %464, %450 : vector<32x128xf32>
    %466 = arith.addf %420, %465 : vector<32x128xf32>
    %c99 = arith.constant 99 : index
    %467 = memref.load %arg1[%c99] : memref<105xf32, #tpu.memory_space<smem>>
    %468 = vector.broadcast %467 : f32 to vector<32x128xf32>
    %469 = arith.mulf %468, %450 : vector<32x128xf32>
    %470 = arith.addf %424, %469 : vector<32x128xf32>
    %c100 = arith.constant 100 : index
    %471 = memref.load %arg1[%c100] : memref<105xf32, #tpu.memory_space<smem>>
    %472 = vector.broadcast %471 : f32 to vector<32x128xf32>
    %473 = arith.addf %454, %472 : vector<32x128xf32>
    %cst_31 = arith.constant 1.702000e+00 : f32
    %474 = vector.broadcast %cst_31 : f32 to vector<32x128xf32>
    %475 = arith.mulf %474, %473 : vector<32x128xf32>
    %476 = arith.negf %475 : vector<32x128xf32>
    %477 = math.exp %476 : vector<32x128xf32>
    %cst_32 = arith.constant 1.000000e+00 : f32
    %478 = vector.broadcast %cst_32 : f32 to vector<32x128xf32>
    %479 = arith.addf %478, %477 : vector<32x128xf32>
    %480 = arith.divf %478, %479 : vector<32x128xf32>
    %481 = arith.mulf %473, %480 : vector<32x128xf32>
    %c101 = arith.constant 101 : index
    %482 = memref.load %arg1[%c101] : memref<105xf32, #tpu.memory_space<smem>>
    %483 = vector.broadcast %482 : f32 to vector<32x128xf32>
    %484 = arith.addf %458, %483 : vector<32x128xf32>
    %cst_33 = arith.constant 1.702000e+00 : f32
    %485 = vector.broadcast %cst_33 : f32 to vector<32x128xf32>
    %486 = arith.mulf %485, %484 : vector<32x128xf32>
    %487 = arith.negf %486 : vector<32x128xf32>
    %488 = math.exp %487 : vector<32x128xf32>
    %cst_34 = arith.constant 1.000000e+00 : f32
    %489 = vector.broadcast %cst_34 : f32 to vector<32x128xf32>
    %490 = arith.addf %489, %488 : vector<32x128xf32>
    %491 = arith.divf %489, %490 : vector<32x128xf32>
    %492 = arith.mulf %484, %491 : vector<32x128xf32>
    %c102 = arith.constant 102 : index
    %493 = memref.load %arg1[%c102] : memref<105xf32, #tpu.memory_space<smem>>
    %494 = vector.broadcast %493 : f32 to vector<32x128xf32>
    %495 = arith.addf %462, %494 : vector<32x128xf32>
    %cst_35 = arith.constant 1.702000e+00 : f32
    %496 = vector.broadcast %cst_35 : f32 to vector<32x128xf32>
    %497 = arith.mulf %496, %495 : vector<32x128xf32>
    %498 = arith.negf %497 : vector<32x128xf32>
    %499 = math.exp %498 : vector<32x128xf32>
    %cst_36 = arith.constant 1.000000e+00 : f32
    %500 = vector.broadcast %cst_36 : f32 to vector<32x128xf32>
    %501 = arith.addf %500, %499 : vector<32x128xf32>
    %502 = arith.divf %500, %501 : vector<32x128xf32>
    %503 = arith.mulf %495, %502 : vector<32x128xf32>
    %c103 = arith.constant 103 : index
    %504 = memref.load %arg1[%c103] : memref<105xf32, #tpu.memory_space<smem>>
    %505 = vector.broadcast %504 : f32 to vector<32x128xf32>
    %506 = arith.addf %466, %505 : vector<32x128xf32>
    %cst_37 = arith.constant 1.702000e+00 : f32
    %507 = vector.broadcast %cst_37 : f32 to vector<32x128xf32>
    %508 = arith.mulf %507, %506 : vector<32x128xf32>
    %509 = arith.negf %508 : vector<32x128xf32>
    %510 = math.exp %509 : vector<32x128xf32>
    %cst_38 = arith.constant 1.000000e+00 : f32
    %511 = vector.broadcast %cst_38 : f32 to vector<32x128xf32>
    %512 = arith.addf %511, %510 : vector<32x128xf32>
    %513 = arith.divf %511, %512 : vector<32x128xf32>
    %514 = arith.mulf %506, %513 : vector<32x128xf32>
    %c104 = arith.constant 104 : index
    %515 = memref.load %arg1[%c104] : memref<105xf32, #tpu.memory_space<smem>>
    %516 = vector.broadcast %515 : f32 to vector<32x128xf32>
    %517 = arith.addf %470, %516 : vector<32x128xf32>
    %cst_39 = arith.constant 1.702000e+00 : f32
    %518 = vector.broadcast %cst_39 : f32 to vector<32x128xf32>
    %519 = arith.mulf %518, %517 : vector<32x128xf32>
    %520 = arith.negf %519 : vector<32x128xf32>
    %521 = math.exp %520 : vector<32x128xf32>
    %cst_40 = arith.constant 1.000000e+00 : f32
    %522 = vector.broadcast %cst_40 : f32 to vector<32x128xf32>
    %523 = arith.addf %522, %521 : vector<32x128xf32>
    %524 = arith.divf %522, %523 : vector<32x128xf32>
    %525 = arith.mulf %517, %524 : vector<32x128xf32>
    %526 = vector.extract_strided_slice %481 {offsets = [0, 0], sizes = [32, 80], strides = [1, 1]} : vector<32x128xf32> to vector<32x80xf32>
    %527 = vector.shape_cast %526 : vector<32x80xf32> to vector<1x32x80xf32>
    %c0_41 = arith.constant 0 : index
    %c0_42 = arith.constant 0 : index
    %c0_43 = arith.constant 0 : index
    %528 = vector.load %arg12[%c0_41, %c0_42, %c0_43] : memref<8x32x80xf32, #tpu.memory_space<vmem>>, vector<1x32x80xf32>
    tpu.vector_store %arg12[%c0_41, %c0_42, %c0_43], %527 {strides = array<i32>} : memref<8x32x80xf32, #tpu.memory_space<vmem>>, vector<1x32x80xf32>,
    %529 = vector.extract_strided_slice %481 {offsets = [0, 80], sizes = [32, 48], strides = [1, 1]} : vector<32x128xf32> to vector<32x48xf32>
    %530 = vector.shape_cast %529 : vector<32x48xf32> to vector<1x32x48xf32>
    %c1_44 = arith.constant 1 : index
    %c0_45 = arith.constant 0 : index
    %c0_46 = arith.constant 0 : index
    %531 = vector.load %arg12[%c1_44, %c0_45, %c0_46] : memref<8x32x80xf32, #tpu.memory_space<vmem>>, vector<1x32x48xf32>
    tpu.vector_store %arg12[%c1_44, %c0_45, %c0_46], %530 {strides = array<i32>} : memref<8x32x80xf32, #tpu.memory_space<vmem>>, vector<1x32x48xf32>,
    %532 = vector.extract_strided_slice %492 {offsets = [0, 0], sizes = [32, 32], strides = [1, 1]} : vector<32x128xf32> to vector<32x32xf32>
    %533 = vector.shape_cast %532 : vector<32x32xf32> to vector<1x32x32xf32>
    %c1_47 = arith.constant 1 : index
    %c0_48 = arith.constant 0 : index
    %c48_49 = arith.constant 48 : index
    %534 = vector.load %arg12[%c1_47, %c0_48, %c48_49] : memref<8x32x80xf32, #tpu.memory_space<vmem>>, vector<1x32x32xf32>
    tpu.vector_store %arg12[%c1_47, %c0_48, %c48_49], %533 {strides = array<i32>} : memref<8x32x80xf32, #tpu.memory_space<vmem>>, vector<1x32x32xf32>,
    %535 = vector.extract_strided_slice %492 {offsets = [0, 32], sizes = [32, 80], strides = [1, 1]} : vector<32x128xf32> to vector<32x80xf32>
    %536 = vector.shape_cast %535 : vector<32x80xf32> to vector<1x32x80xf32>
    %c2_50 = arith.constant 2 : index
    %c0_51 = arith.constant 0 : index
    %c0_52 = arith.constant 0 : index
    %537 = vector.load %arg12[%c2_50, %c0_51, %c0_52] : memref<8x32x80xf32, #tpu.memory_space<vmem>>, vector<1x32x80xf32>
    tpu.vector_store %arg12[%c2_50, %c0_51, %c0_52], %536 {strides = array<i32>} : memref<8x32x80xf32, #tpu.memory_space<vmem>>, vector<1x32x80xf32>,
    %538 = vector.extract_strided_slice %492 {offsets = [0, 112], sizes = [32, 16], strides = [1, 1]} : vector<32x128xf32> to vector<32x16xf32>
    %539 = vector.shape_cast %538 : vector<32x16xf32> to vector<1x32x16xf32>
    %c3_53 = arith.constant 3 : index
    %c0_54 = arith.constant 0 : index
    %c0_55 = arith.constant 0 : index
    %540 = vector.load %arg12[%c3_53, %c0_54, %c0_55] : memref<8x32x80xf32, #tpu.memory_space<vmem>>, vector<1x32x16xf32>
    tpu.vector_store %arg12[%c3_53, %c0_54, %c0_55], %539 {strides = array<i32>} : memref<8x32x80xf32, #tpu.memory_space<vmem>>, vector<1x32x16xf32>,
    %541 = vector.extract_strided_slice %503 {offsets = [0, 0], sizes = [32, 64], strides = [1, 1]} : vector<32x128xf32> to vector<32x64xf32>
    %542 = vector.shape_cast %541 : vector<32x64xf32> to vector<1x32x64xf32>
    %c3_56 = arith.constant 3 : index
    %c0_57 = arith.constant 0 : index
    %c16_58 = arith.constant 16 : index
    %543 = vector.load %arg12[%c3_56, %c0_57, %c16_58] : memref<8x32x80xf32, #tpu.memory_space<vmem>>, vector<1x32x64xf32>
    tpu.vector_store %arg12[%c3_56, %c0_57, %c16_58], %542 {strides = array<i32>} : memref<8x32x80xf32, #tpu.memory_space<vmem>>, vector<1x32x64xf32>,
    %544 = vector.extract_strided_slice %503 {offsets = [0, 64], sizes = [32, 64], strides = [1, 1]} : vector<32x128xf32> to vector<32x64xf32>
    %545 = vector.shape_cast %544 : vector<32x64xf32> to vector<1x32x64xf32>
    %c4_59 = arith.constant 4 : index
    %c0_60 = arith.constant 0 : index
    %c0_61 = arith.constant 0 : index
    %546 = vector.load %arg12[%c4_59, %c0_60, %c0_61] : memref<8x32x80xf32, #tpu.memory_space<vmem>>, vector<1x32x64xf32>
    tpu.vector_store %arg12[%c4_59, %c0_60, %c0_61], %545 {strides = array<i32>} : memref<8x32x80xf32, #tpu.memory_space<vmem>>, vector<1x32x64xf32>,
    %547 = vector.extract_strided_slice %514 {offsets = [0, 0], sizes = [32, 16], strides = [1, 1]} : vector<32x128xf32> to vector<32x16xf32>
    %548 = vector.shape_cast %547 : vector<32x16xf32> to vector<1x32x16xf32>
    %c4_62 = arith.constant 4 : index
    %c0_63 = arith.constant 0 : index
    %c64_64 = arith.constant 64 : index
    %549 = vector.load %arg12[%c4_62, %c0_63, %c64_64] : memref<8x32x80xf32, #tpu.memory_space<vmem>>, vector<1x32x16xf32>
    tpu.vector_store %arg12[%c4_62, %c0_63, %c64_64], %548 {strides = array<i32>} : memref<8x32x80xf32, #tpu.memory_space<vmem>>, vector<1x32x16xf32>,
    %550 = vector.extract_strided_slice %514 {offsets = [0, 16], sizes = [32, 80], strides = [1, 1]} : vector<32x128xf32> to vector<32x80xf32>
    %551 = vector.shape_cast %550 : vector<32x80xf32> to vector<1x32x80xf32>
    %c5_65 = arith.constant 5 : index
    %c0_66 = arith.constant 0 : index
    %c0_67 = arith.constant 0 : index
    %552 = vector.load %arg12[%c5_65, %c0_66, %c0_67] : memref<8x32x80xf32, #tpu.memory_space<vmem>>, vector<1x32x80xf32>
    tpu.vector_store %arg12[%c5_65, %c0_66, %c0_67], %551 {strides = array<i32>} : memref<8x32x80xf32, #tpu.memory_space<vmem>>, vector<1x32x80xf32>,
    %553 = vector.extract_strided_slice %514 {offsets = [0, 96], sizes = [32, 32], strides = [1, 1]} : vector<32x128xf32> to vector<32x32xf32>
    %554 = vector.shape_cast %553 : vector<32x32xf32> to vector<1x32x32xf32>
    %c6_68 = arith.constant 6 : index
    %c0_69 = arith.constant 0 : index
    %c0_70 = arith.constant 0 : index
    %555 = vector.load %arg12[%c6_68, %c0_69, %c0_70] : memref<8x32x80xf32, #tpu.memory_space<vmem>>, vector<1x32x32xf32>
    tpu.vector_store %arg12[%c6_68, %c0_69, %c0_70], %554 {strides = array<i32>} : memref<8x32x80xf32, #tpu.memory_space<vmem>>, vector<1x32x32xf32>,
    %556 = vector.extract_strided_slice %525 {offsets = [0, 0], sizes = [32, 48], strides = [1, 1]} : vector<32x128xf32> to vector<32x48xf32>
    %557 = vector.shape_cast %556 : vector<32x48xf32> to vector<1x32x48xf32>
    %c6_71 = arith.constant 6 : index
    %c0_72 = arith.constant 0 : index
    %c32_73 = arith.constant 32 : index
    %558 = vector.load %arg12[%c6_71, %c0_72, %c32_73] : memref<8x32x80xf32, #tpu.memory_space<vmem>>, vector<1x32x48xf32>
    tpu.vector_store %arg12[%c6_71, %c0_72, %c32_73], %557 {strides = array<i32>} : memref<8x32x80xf32, #tpu.memory_space<vmem>>, vector<1x32x48xf32>,
    %559 = vector.extract_strided_slice %525 {offsets = [0, 48], sizes = [32, 80], strides = [1, 1]} : vector<32x128xf32> to vector<32x80xf32>
    %560 = vector.shape_cast %559 : vector<32x80xf32> to vector<1x32x80xf32>
    %c7_74 = arith.constant 7 : index
    %c0_75 = arith.constant 0 : index
    %c0_76 = arith.constant 0 : index
    %561 = vector.load %arg12[%c7_74, %c0_75, %c0_76] : memref<8x32x80xf32, #tpu.memory_space<vmem>>, vector<1x32x80xf32>
    tpu.vector_store %arg12[%c7_74, %c0_75, %c0_76], %560 {strides = array<i32>} : memref<8x32x80xf32, #tpu.memory_space<vmem>>, vector<1x32x80xf32>,
    %c0_77 = arith.constant 0 : index
    %c0_78 = arith.constant 0 : index
    %c0_79 = arith.constant 0 : index
    %562 = vector.load %arg12[%c0_77, %c0_78, %c0_79] : memref<8x32x80xf32, #tpu.memory_space<vmem>>, vector<8x32x80xf32>
    %563 = vector.shape_cast %562 : vector<8x32x80xf32> to vector<256x80xf32>
    %564 = arith.truncf %563 : vector<256x80xf32> to vector<256x80xbf16>
    %c0_80 = arith.constant 0 : index
    %c0_81 = arith.constant 0 : index
    %565 = vector.load %arg7[%c0_80, %c0_81] : memref<80x512xbf16, #tpu.memory_space<vmem>>, vector<80x512xbf16>
    %cst_82 = arith.constant dense<0.000000e+00> : vector<256x512xf32>
    %566 = tpu.matmul %564, %565, %cst_82 {dimension_numbers = #tpu.dot_dimension_numbers<[1], [0], [0], [1], [0, 0, 1, 1], [], []>} : vector<256x80xbf16>, vector<80x512xbf16>, vector<256x512xf32> -> vector<256x512xf32>
    %c0_83 = arith.constant 0 : index
    %c0_84 = arith.constant 0 : index
    %567 = vector.load %arg8[%c0_83, %c0_84] : memref<1x512xf32, #tpu.memory_space<vmem>>, vector<1x512xf32>
    %568 = vector.broadcast %567 : vector<1x512xf32> to vector<256x512xf32>
    %569 = arith.addf %566, %568 : vector<256x512xf32>
    %cst_85 = arith.constant 1.702000e+00 : f32
    %570 = vector.broadcast %cst_85 : f32 to vector<256x512xf32>
    %571 = arith.mulf %570, %569 : vector<256x512xf32>
    %572 = arith.negf %571 : vector<256x512xf32>
    %573 = math.exp %572 : vector<256x512xf32>
    %cst_86 = arith.constant 1.000000e+00 : f32
    %574 = vector.broadcast %cst_86 : f32 to vector<256x512xf32>
    %575 = arith.addf %574, %573 : vector<256x512xf32>
    %576 = arith.divf %574, %575 : vector<256x512xf32>
    %577 = arith.mulf %569, %576 : vector<256x512xf32>
    %578 = arith.truncf %577 : vector<256x512xf32> to vector<256x512xbf16>
    %c0_87 = arith.constant 0 : index
    %c0_88 = arith.constant 0 : index
    %579 = vector.load %arg9[%c0_87, %c0_88] : memref<512x8xbf16, #tpu.memory_space<vmem>>, vector<512x8xbf16>
    %cst_89 = arith.constant dense<0.000000e+00> : vector<256x8xf32>
    %580 = tpu.matmul %578, %579, %cst_89 {dimension_numbers = #tpu.dot_dimension_numbers<[1], [0], [0], [1], [0, 0, 1, 1], [], []>} : vector<256x512xbf16>, vector<512x8xbf16>, vector<256x8xf32> -> vector<256x8xf32>
    %c0_90 = arith.constant 0 : index
    %c0_91 = arith.constant 0 : index
    %581 = vector.load %arg10[%c0_90, %c0_91] : memref<1x8xf32, #tpu.memory_space<vmem>>, vector<1x8xf32>
    %582 = vector.broadcast %581 : vector<1x8xf32> to vector<256x8xf32>
    %583 = arith.addf %580, %582 : vector<256x8xf32>
    %584 = vector.shape_cast %583 : vector<256x8xf32> to vector<8x32x8xf32>
    %c0_92 = arith.constant 0 : index
    %c0_93 = arith.constant 0 : index
    %c0_94 = arith.constant 0 : index
    %585 = vector.load %arg11[%c0_92, %c0_93, %c0_94] : memref<8x32x8xf32, #tpu.memory_space<vmem>>, vector<8x32x8xf32>
    tpu.vector_store %arg11[%c0_92, %c0_93, %c0_94], %584 {strides = array<i32>} : memref<8x32x8xf32, #tpu.memory_space<vmem>>, vector<8x32x8xf32>,
    return
  }
  func.func @transform_0(%arg0: i32) -> i32 {
    %c0_i32 = arith.constant 0 : i32
    %c0_i32_0 = arith.constant 0 : i32
    return %c0_i32 : i32
  }
  func.func @transform_1(%arg0: i32) -> (i32, i32) {
    %c0_i32 = arith.constant 0 : i32
    %c0_i32_0 = arith.constant 0 : i32
    return %arg0, %c0_i32 : i32, i32
  }
  func.func @transform_2(%arg0: i32) -> (i32, i32) {
    %c0_i32 = arith.constant 0 : i32
    %c0_i32_0 = arith.constant 0 : i32
    return %arg0, %c0_i32 : i32, i32
  }
  func.func @transform_3(%arg0: i32) -> (i32, i32) {
    %c0_i32 = arith.constant 0 : i32
    %c0_i32_0 = arith.constant 0 : i32
    return %arg0, %c0_i32 : i32, i32
  }
  func.func @transform_4(%arg0: i32) -> (i32, i32) {
    %c0_i32 = arith.constant 0 : i32
    %c0_i32_0 = arith.constant 0 : i32
    %c0_i32_1 = arith.constant 0 : i32
    return %c0_i32, %c0_i32_0 : i32, i32
  }
  func.func @transform_5(%arg0: i32) -> (i32, i32) {
    %c0_i32 = arith.constant 0 : i32
    %c0_i32_0 = arith.constant 0 : i32
    %c0_i32_1 = arith.constant 0 : i32
    return %c0_i32, %c0_i32_0 : i32, i32
  }
  func.func @transform_6(%arg0: i32) -> (i32, i32) {
    %c0_i32 = arith.constant 0 : i32
    %c0_i32_0 = arith.constant 0 : i32
    %c0_i32_1 = arith.constant 0 : i32
    return %c0_i32, %c0_i32_0 : i32, i32
  }
  func.func @transform_7(%arg0: i32) -> (i32, i32) {
    %c0_i32 = arith.constant 0 : i32
    %c0_i32_0 = arith.constant 0 : i32
    %c0_i32_1 = arith.constant 0 : i32
    return %c0_i32, %c0_i32_0 : i32, i32
  }
  func.func @transform_8(%arg0: i32) -> (i32, i32) {
    %c0_i32 = arith.constant 0 : i32
    %c0_i32_0 = arith.constant 0 : i32
    %c0_i32_1 = arith.constant 0 : i32
    return %c0_i32, %c0_i32_0 : i32, i32
  }
  func.func @transform_9(%arg0: i32) -> (i32, i32) {
    %c0_i32 = arith.constant 0 : i32
    %c0_i32_0 = arith.constant 0 : i32
    %c0_i32_1 = arith.constant 0 : i32
    return %c0_i32, %c0_i32_0 : i32, i32
  }
  func.func @transform_10(%arg0: i32) -> (i32, i32, i32) {
    %c0_i32 = arith.constant 0 : i32
    %c0_i32_0 = arith.constant 0 : i32
    %c0_i32_1 = arith.constant 0 : i32
    return %c0_i32, %arg0, %c0_i32_0 : i32, i32, i32
  }
}

</mosaic_0001>

<llo_original>
// kernel: tpu_custom_call.1
$region0: #{tpu_custom_call.1}
  #allocation0 [shape = 'u32[]', space=smem, size = 0x4, offset = 0x4, fixed_abs, tag = 'smem constant byte address 0x4 - core index']
  #allocation1 [shape = 'u32[144,128]{1,0:T(1,128)}', space=vmem, size = 0x12000, scoped, tag = 'internal scratch']
  #allocation2 [shape = 'f32[8,32,80]{2,1,0:T(8,128)}', space=vmem, size = 0x20000, scoped, tag = 'scratch operand']
  %s0 = inlined_call_operand.vmem [shape: f32[105], index: 0, kind: input, shape index: {}]
  %s1 = inlined_call_operand.vmem [shape: f32[128,128], index: 1, kind: input, shape index: {}]
  %s2 = inlined_call_operand.hbm [shape: f32[128,128], index: 2, kind: input, shape index: {}]
  %s3 = inlined_call_operand.vmem [shape: bf16[128,32], index: 3, kind: input, shape index: {}]
  %s4 = inlined_call_operand.vmem [shape: bf16[32,128], index: 4, kind: input, shape index: {}]
  %s5 = inlined_call_operand.vmem [shape: f32[1,128], index: 5, kind: input, shape index: {}]
  %s6 = inlined_call_operand.vmem [shape: bf16[80,512], index: 6, kind: input, shape index: {}]
  %s7 = inlined_call_operand.vmem [shape: f32[1,512], index: 7, kind: input, shape index: {}]
  %s8 = inlined_call_operand.vmem [shape: bf16[512,8], index: 8, kind: input, shape index: {}]
  %s9 = inlined_call_operand.vmem [shape: f32[1,8], index: 9, kind: input, shape index: {}]
  %s10 = inlined_call_operand.vmem [shape: f32[8,128,8], index: 10, kind: output, shape index: {}]
  %s11 = sld [smem:[#allocation0]]
  $region115: #{tpu_custom_call.1} parent=0
    _
  %s13 = ssub.s32 1, %s11
  %s14 = scalar_select 0, %s13, %s11
  $region1: #{tpu_custom_call.1} parent=0
    #allocation3 [shape = 'u8[512]{0}', space=smem, size = 0x200, scoped, tag = 'input window, operand 0, single buffered']
    #allocation4 [shape = 's32[2]{0}', space=sflag, size = 0x8, scoped, tag = 'scoped memory for tpu_custom_call.1']
    #allocation5 [shape = 's32[2]{0}', space=sflag, size = 0x8, scoped, tag = 'scoped memory for tpu_custom_call.1']
    #allocation6 [shape = 'u8[32768]{0}', space=vmem, size = 0x8000, scoped, tag = 'input window, operand 2']
    #allocation7 [shape = 'u8[262144]{0}', space=vmem, size = 0x40000, scoped, tag = 'output window, operand 0']
    %15 = vsyncpa [#allocation5], 0
    %16 = vsyncpa [#allocation4], 0
    %s17 = scalar_lea.sflag [#allocation4], 1
    %18 = vsyncpa %s17, 0
    loop: start=0, step=1, limit=6
    $region2: #{tpu_custom_call.1} parent=1 // loop_pre_header
      _
    $region3: #{tpu_custom_call.1} parent=1 // loop_header
      %s20 = sphi 0, %s24
      %p21 = scmp.ge.s32.totalorder %s20, 6
      %s28 = sphi 0, %s28
      %s30 = sphi 0, %s28
      %s31 = sphi 0, %s30
      %s45 = sphi 0, %s31
      %s51 = sphi 0, %s53
      %s54 = sphi 0, %s51
      %s55 = sphi 0, %s54
      %s71 = sphi 0, %s55
      %s77 = sphi 0, %s79
      %s80 = sphi 0, %s77
      %s81 = sphi 0, %s80
      %s97 = sphi 0, %s81
      %s103 = sphi 0, %s105
      %s106 = sphi 0, %s103
      %s107 = sphi 0, %s106
      %s123 = sphi 0, %s107
      %s127 = sphi 0, %s127
      %s129 = sphi 0, %s127
      %s130 = sphi 0, %s129
      %s144 = sphi 0, %s130
      %s148 = sphi 0, %s148
      %s150 = sphi 0, %s148
      %s151 = sphi 0, %s150
      %s165 = sphi 0, %s151
      %s169 = sphi 0, %s169
      %s171 = sphi 0, %s169
      %s172 = sphi 0, %s171
      %s186 = sphi 0, %s172
      %s190 = sphi 0, %s190
      %s192 = sphi 0, %s190
      %s193 = sphi 0, %s192
      %s207 = sphi 0, %s193
      %s211 = sphi 0, %s211
      %s213 = sphi 0, %s211
      %s214 = sphi 0, %s213
      %s228 = sphi 0, %s214
      %s232 = sphi 0, %s232
      %s234 = sphi 0, %s232
      %s235 = sphi 0, %s234
      %s249 = sphi 0, %s235
      %s255 = sphi 0, %s257
      %s258 = sphi 0, %s255
      %s259 = sphi 0, %s258
      %s275 = sphi 0, %s259
    $region4: #{tpu_custom_call.1} parent=1 // loop_header_branch
      %23 = sbr.rel (%p21) target = $region8
    $region5: #{tpu_custom_call.1} parent=1 // loop_body
      %s25 = ssub.s32 %s20, 1
      %s26 = ssub.s32 %s20, 2
      %s27 = sadd.s32 %s20, 1
      %s29 = sadd.s32 %s28, 1
      %p32 = scmp.eq.s32.totalorder %s20, 3
      %p33 = scmp.ne.s32.totalorder %s28, %s30
      %p34 = scmp.eq.s32.totalorder %s20, 0
      %p35 = por %p33, %p34
      %p36 = scmp.ne.s32.totalorder %s28, %s30
      %p37 = scmp.eq.s32.totalorder %s25, 3
      %p38 = por %p36, %p37
      %p39 = scmp.ne.s32.totalorder %s30, %s31
      %p40 = scmp.eq.s32.totalorder %s25, 0
      %p41 = por %p39, %p40
      %p42 = scmp.ne.s32.totalorder %s30, %s31
      %p43 = scmp.eq.s32.totalorder %s26, 3
      %p44 = por %p42, %p43
      %p46 = scmp.ne.s32.totalorder %s31, %s45
      %p47 = scmp.eq.s32.totalorder %s26, 0
      %p48 = por %p46, %p47
      %s49 = ssub.s32 %s20, %s27
      %p50 = scmp.eq.s32.totalorder %s49, 0
      %s52 = sadd.s32 %s51, 1
      %s53 = scalar_select %p50, %s51, %s52
      %p56 = pneg %p50
      %p57 = scmp.eq.s32.totalorder %s20, 3
      %p58 = por %p56, %p57
      %p59 = scmp.ne.s32.totalorder %s51, %s54
      %p60 = scmp.eq.s32.totalorder %s20, 0
      %p61 = por %p59, %p60
      %p62 = scmp.ne.s32.totalorder %s51, %s54
      %p63 = scmp.eq.s32.totalorder %s25, 3
      %p64 = por %p62, %p63
      %p65 = scmp.ne.s32.totalorder %s54, %s55
      %p66 = scmp.eq.s32.totalorder %s25, 0
      %p67 = por %p65, %p66
      %p68 = scmp.ne.s32.totalorder %s54, %s55
      %p69 = scmp.eq.s32.totalorder %s26, 3
      %p70 = por %p68, %p69
      %p72 = scmp.ne.s32.totalorder %s55, %s71
      %p73 = scmp.eq.s32.totalorder %s26, 0
      %p74 = por %p72, %p73
      %s75 = ssub.s32 %s20, %s27
      %p76 = scmp.eq.s32.totalorder %s75, 0
      %s78 = sadd.s32 %s77, 1
      %s79 = scalar_select %p76, %s77, %s78
      %p82 = pneg %p76
      %p83 = scmp.eq.s32.totalorder %s20, 3
      %p84 = por %p82, %p83
      %p85 = scmp.ne.s32.totalorder %s77, %s80
      %p86 = scmp.eq.s32.totalorder %s20, 0
      %p87 = por %p85, %p86
      %p88 = scmp.ne.s32.totalorder %s77, %s80
      %p89 = scmp.eq.s32.totalorder %s25, 3
      %p90 = por %p88, %p89
      %p91 = scmp.ne.s32.totalorder %s80, %s81
      %p92 = scmp.eq.s32.totalorder %s25, 0
      %p93 = por %p91, %p92
      %p94 = scmp.ne.s32.totalorder %s80, %s81
      %p95 = scmp.eq.s32.totalorder %s26, 3
      %p96 = por %p94, %p95
      %p98 = scmp.ne.s32.totalorder %s81, %s97
      %p99 = scmp.eq.s32.totalorder %s26, 0
      %p100 = por %p98, %p99
      %s101 = ssub.s32 %s20, %s27
      %p102 = scmp.eq.s32.totalorder %s101, 0
      %s104 = sadd.s32 %s103, 1
      %s105 = scalar_select %p102, %s103, %s104
      %p108 = pneg %p102
      %p109 = scmp.eq.s32.totalorder %s20, 3
      %p110 = por %p108, %p109
      %p111 = scmp.ne.s32.totalorder %s103, %s106
      %p112 = scmp.eq.s32.totalorder %s20, 0
      %p113 = por %p111, %p112
      %p114 = scmp.ne.s32.totalorder %s103, %s106
      %p115 = scmp.eq.s32.totalorder %s25, 3
      %p116 = por %p114, %p115
      %p117 = scmp.ne.s32.totalorder %s106, %s107
      %p118 = scmp.eq.s32.totalorder %s25, 0
      %p119 = por %p117, %p118
      %p120 = scmp.ne.s32.totalorder %s106, %s107
      %p121 = scmp.eq.s32.totalorder %s26, 3
      %p122 = por %p120, %p121
      %p124 = scmp.ne.s32.totalorder %s107, %s123
      %p125 = scmp.eq.s32.totalorder %s26, 0
      %p126 = por %p124, %p125
      %s128 = sadd.s32 %s127, 1
      %p131 = scmp.eq.s32.totalorder %s20, 3
      %p132 = scmp.ne.s32.totalorder %s127, %s129
      %p133 = scmp.eq.s32.totalorder %s20, 0
      %p134 = por %p132, %p133
      %p135 = scmp.ne.s32.totalorder %s127, %s129
      %p136 = scmp.eq.s32.totalorder %s25, 3
      %p137 = por %p135, %p136
      %p138 = scmp.ne.s32.totalorder %s129, %s130
      %p139 = scmp.eq.s32.totalorder %s25, 0
      %p140 = por %p138, %p139
      %p141 = scmp.ne.s32.totalorder %s129, %s130
      %p142 = scmp.eq.s32.totalorder %s26, 3
      %p143 = por %p141, %p142
      %p145 = scmp.ne.s32.totalorder %s130, %s144
      %p146 = scmp.eq.s32.totalorder %s26, 0
      %p147 = por %p145, %p146
      %s149 = sadd.s32 %s148, 1
      %p152 = scmp.eq.s32.totalorder %s20, 3
      %p153 = scmp.ne.s32.totalorder %s148, %s150
      %p154 = scmp.eq.s32.totalorder %s20, 0
      %p155 = por %p153, %p154
      %p156 = scmp.ne.s32.totalorder %s148, %s150
      %p157 = scmp.eq.s32.totalorder %s25, 3
      %p158 = por %p156, %p157
      %p159 = scmp.ne.s32.totalorder %s150, %s151
      %p160 = scmp.eq.s32.totalorder %s25, 0
      %p161 = por %p159, %p160
      %p162 = scmp.ne.s32.totalorder %s150, %s151
      %p163 = scmp.eq.s32.totalorder %s26, 3
      %p164 = por %p162, %p163
      %p166 = scmp.ne.s32.totalorder %s151, %s165
      %p167 = scmp.eq.s32.totalorder %s26, 0
      %p168 = por %p166, %p167
      %s170 = sadd.s32 %s169, 1
      %p173 = scmp.eq.s32.totalorder %s20, 3
      %p174 = scmp.ne.s32.totalorder %s169, %s171
      %p175 = scmp.eq.s32.totalorder %s20, 0
      %p176 = por %p174, %p175
      %p177 = scmp.ne.s32.totalorder %s169, %s171
      %p178 = scmp.eq.s32.totalorder %s25, 3
      %p179 = por %p177, %p178
      %p180 = scmp.ne.s32.totalorder %s171, %s172
      %p181 = scmp.eq.s32.totalorder %s25, 0
      %p182 = por %p180, %p181
      %p183 = scmp.ne.s32.totalorder %s171, %s172
      %p184 = scmp.eq.s32.totalorder %s26, 3
      %p185 = por %p183, %p184
      %p187 = scmp.ne.s32.totalorder %s172, %s186
      %p188 = scmp.eq.s32.totalorder %s26, 0
      %p189 = por %p187, %p188
      %s191 = sadd.s32 %s190, 1
      %p194 = scmp.eq.s32.totalorder %s20, 3
      %p195 = scmp.ne.s32.totalorder %s190, %s192
      %p196 = scmp.eq.s32.totalorder %s20, 0
      %p197 = por %p195, %p196
      %p198 = scmp.ne.s32.totalorder %s190, %s192
      %p199 = scmp.eq.s32.totalorder %s25, 3
      %p200 = por %p198, %p199
      %p201 = scmp.ne.s32.totalorder %s192, %s193
      %p202 = scmp.eq.s32.totalorder %s25, 0
      %p203 = por %p201, %p202
      %p204 = scmp.ne.s32.totalorder %s192, %s193
      %p205 = scmp.eq.s32.totalorder %s26, 3
      %p206 = por %p204, %p205
      %p208 = scmp.ne.s32.totalorder %s193, %s207
      %p209 = scmp.eq.s32.totalorder %s26, 0
      %p210 = por %p208, %p209
      %s212 = sadd.s32 %s211, 1
      %p215 = scmp.eq.s32.totalorder %s20, 3
      %p216 = scmp.ne.s32.totalorder %s211, %s213
      %p217 = scmp.eq.s32.totalorder %s20, 0
      %p218 = por %p216, %p217
      %p219 = scmp.ne.s32.totalorder %s211, %s213
      %p220 = scmp.eq.s32.totalorder %s25, 3
      %p221 = por %p219, %p220
      %p222 = scmp.ne.s32.totalorder %s213, %s214
      %p223 = scmp.eq.s32.totalorder %s25, 0
      %p224 = por %p222, %p223
      %p225 = scmp.ne.s32.totalorder %s213, %s214
      %p226 = scmp.eq.s32.totalorder %s26, 3
      %p227 = por %p225, %p226
      %p229 = scmp.ne.s32.totalorder %s214, %s228
      %p230 = scmp.eq.s32.totalorder %s26, 0
      %p231 = por %p229, %p230
      %s233 = sadd.s32 %s232, 1
      %p236 = scmp.eq.s32.totalorder %s20, 3
      %p237 = scmp.ne.s32.totalorder %s232, %s234
      %p238 = scmp.eq.s32.totalorder %s20, 0
      %p239 = por %p237, %p238
      %p240 = scmp.ne.s32.totalorder %s232, %s234
      %p241 = scmp.eq.s32.totalorder %s25, 3
      %p242 = por %p240, %p241
      %p243 = scmp.ne.s32.totalorder %s234, %s235
      %p244 = scmp.eq.s32.totalorder %s25, 0
      %p245 = por %p243, %p244
      %p246 = scmp.ne.s32.totalorder %s234, %s235
      %p247 = scmp.eq.s32.totalorder %s26, 3
      %p248 = por %p246, %p247
      %p250 = scmp.ne.s32.totalorder %s235, %s249
      %p251 = scmp.eq.s32.totalorder %s26, 0
      %p252 = por %p250, %p251
      %s253 = ssub.s32 %s20, %s27
      %p254 = scmp.eq.s32.totalorder %s253, 0
      %s256 = sadd.s32 %s255, 1
      %s257 = scalar_select %p254, %s255, %s256
      %p260 = pneg %p254
      %p261 = scmp.eq.s32.totalorder %s20, 3
      %p262 = por %p260, %p261
      %p263 = scmp.ne.s32.totalorder %s255, %s258
      %p264 = scmp.eq.s32.totalorder %s20, 0
      %p265 = por %p263, %p264
      %p266 = scmp.ne.s32.totalorder %s255, %s258
      %p267 = scmp.eq.s32.totalorder %s25, 3
      %p268 = por %p266, %p267
      %p269 = scmp.ne.s32.totalorder %s258, %s259
      %p270 = scmp.eq.s32.totalorder %s25, 0
      %p271 = por %p269, %p270
      %p272 = scmp.ne.s32.totalorder %s258, %s259
      %p273 = scmp.eq.s32.totalorder %s26, 3
      %p274 = por %p272, %p273
      %p276 = scmp.ne.s32.totalorder %s259, %s275
      %p277 = scmp.eq.s32.totalorder %s26, 0
      %p278 = por %p276, %p277
      %p279 = scmp.le.s32.totalorder 1, %s20
      %p280 = scmp.lt.s32.totalorder %s20, 5
      %p281 = pnand %p279, %p280
      %p282 = pneg %p281
      // Predicated region
      $region9: #{tpu_custom_call.1} parent=5 // pred_check
        _
      $region10: #{tpu_custom_call.1} parent=5 // pred_check_branch
        %284 = sbr.rel (%p281) target = $region12
      $region11: #{tpu_custom_call.1} parent=5 // pred_region
        %s285 = ssub.s32 %s20, 1
        // Predicated region
        $region13: #{tpu_custom_call.1} parent=11 // pred_check
          %p286 = pneg %p41
        $region14: #{tpu_custom_call.1} parent=11 // pred_check_branch
          %288 = sbr.rel (%p286) target = $region16
        $region15: #{tpu_custom_call.1} parent=11 // pred_region
          %s290 = ssub.s32 16, 16
          %291 = vsyncadd [#allocation5], %s290
          %s293 = sshll.u32 %s0, 4
          %s294 = int_to_ptr.vmem [resolvable:$true] %s293
          %296 = dma.vmem_to_smem %s294, 16, [#allocation3], [#allocation5]
        $region16: #{tpu_custom_call.1} parent=11 // pred_fallthru
          _
        // Predicated region
        $region17: #{tpu_custom_call.1} parent=11 // pred_check
          %p297 = pneg %p140
        $region18: #{tpu_custom_call.1} parent=11 // pred_check_branch
          %299 = sbr.rel (%p297) target = $region20
        $region19: #{tpu_custom_call.1} parent=11 // pred_region
          _
        $region20: #{tpu_custom_call.1} parent=11 // pred_fallthru
          _
        // Predicated region
        $region21: #{tpu_custom_call.1} parent=11 // pred_check
          %p300 = pneg %p161
        $region22: #{tpu_custom_call.1} parent=11 // pred_check_branch
          %302 = sbr.rel (%p300) target = $region24
        $region23: #{tpu_custom_call.1} parent=11 // pred_region
          _
        $region24: #{tpu_custom_call.1} parent=11 // pred_fallthru
          _
        // Predicated region
        $region25: #{tpu_custom_call.1} parent=11 // pred_check
          %p303 = pneg %p182
        $region26: #{tpu_custom_call.1} parent=11 // pred_check_branch
          %305 = sbr.rel (%p303) target = $region28
        $region27: #{tpu_custom_call.1} parent=11 // pred_region
          _
        $region28: #{tpu_custom_call.1} parent=11 // pred_fallthru
          _
        // Predicated region
        $region29: #{tpu_custom_call.1} parent=11 // pred_check
          %p306 = pneg %p203
        $region30: #{tpu_custom_call.1} parent=11 // pred_check_branch
          %308 = sbr.rel (%p306) target = $region32
        $region31: #{tpu_custom_call.1} parent=11 // pred_region
          _
        $region32: #{tpu_custom_call.1} parent=11 // pred_fallthru
          _
        // Predicated region
        $region33: #{tpu_custom_call.1} parent=11 // pred_check
          %p309 = pneg %p224
        $region34: #{tpu_custom_call.1} parent=11 // pred_check_branch
          %311 = sbr.rel (%p309) target = $region36
        $region35: #{tpu_custom_call.1} parent=11 // pred_region
          _
        $region36: #{tpu_custom_call.1} parent=11 // pred_fallthru
          _
        // Predicated region
        $region37: #{tpu_custom_call.1} parent=11 // pred_check
          %p312 = pneg %p245
        $region38: #{tpu_custom_call.1} parent=11 // pred_check_branch
          %314 = sbr.rel (%p312) target = $region40
        $region39: #{tpu_custom_call.1} parent=11 // pred_region
          _
        $region40: #{tpu_custom_call.1} parent=11 // pred_fallthru
          _
      $region12: #{tpu_custom_call.1} parent=5 // pred_fallthru
        _
      %p315 = scmp.lt.s32.totalorder %s20, 4
      // Predicated region
      $region41: #{tpu_custom_call.1} parent=5 // pred_check
        %p316 = pneg %p315
      $region42: #{tpu_custom_call.1} parent=5 // pred_check_branch
        %318 = sbr.rel (%p316) target = $region44
      $region43: #{tpu_custom_call.1} parent=5 // pred_region
        // Predicated region
        $region45: #{tpu_custom_call.1} parent=43 // pred_check
          %p319 = pneg %p61
        $region46: #{tpu_custom_call.1} parent=43 // pred_check_branch
          %321 = sbr.rel (%p319) target = $region48
        $region47: #{tpu_custom_call.1} parent=43 // pred_region
          %s322 = smul.u32 4, %s20
          %p323 = scmp.lt.s32.totalorder %s322, 15
          %s324 = scalar_select %p323, %s322, 15
          %s325 = smul.addr %s324, 8
          %s326 = scalar_lea.vmem %s1, %s325
          %s327 = smul.u32 4, %s20
        $region48: #{tpu_custom_call.1} parent=43 // pred_fallthru
          _
        // Predicated region
        $region49: #{tpu_custom_call.1} parent=43 // pred_check
          %p328 = pneg %p87
        $region50: #{tpu_custom_call.1} parent=43 // pred_check_branch
          %330 = sbr.rel (%p328) target = $region52
        $region51: #{tpu_custom_call.1} parent=43 // pred_region
          %s331 = sand.u32 %s77, 1
          %s332 = scalar_lea.sflag [#allocation4], %s331
          %s333 = sand.u32 %s77, 1
          %s334 = smul.addr %s333, 32
          %s335 = scalar_lea.vmem [#allocation6], %s334
          %s336 = smul.u32 4, %s20
          %s338 = ssub.s32 512, 512
          %339 = vsyncadd %s332, %s338
          %s340 = smul.addr %s336, 128
          %s341 = scalar_lea.hbm %s2, %s340
          %s342 = sshll.u32 %s335, 4
          %s343 = int_to_ptr.vmem [resolvable:$true] %s342
          %348 = dma.hbm_to_vmem [thread:$0]  %s341, 512, %s343, %s332, 128, 128, 8
        $region52: #{tpu_custom_call.1} parent=43 // pred_fallthru
          _
        // Predicated region
        $region53: #{tpu_custom_call.1} parent=43 // pred_check
          %p349 = pneg %p113
        $region54: #{tpu_custom_call.1} parent=43 // pred_check_branch
          %351 = sbr.rel (%p349) target = $region56
        $region55: #{tpu_custom_call.1} parent=43 // pred_region
          %s352 = smul.u32 4, %s20
          %p353 = scmp.lt.s32.totalorder %s352, 15
          %s354 = scalar_select %p353, %s352, 15
          %s355 = smul.addr %s354, 4
          %s356 = scalar_lea.vmem %s3, %s355
          %s357 = smul.u32 4, %s20
        $region56: #{tpu_custom_call.1} parent=43 // pred_fallthru
          _
      $region44: #{tpu_custom_call.1} parent=5 // pred_fallthru
        _
      %p358 = scmp.le.s32.totalorder 1, %s20
      %p359 = scmp.lt.s32.totalorder %s20, 5
      %p360 = pnand %p358, %p359
      %p361 = pneg %p360
      // Predicated region
      $region57: #{tpu_custom_call.1} parent=5 // pred_check
        _
      $region58: #{tpu_custom_call.1} parent=5 // pred_check_branch
        %363 = sbr.rel (%p360) target = $region60
      $region59: #{tpu_custom_call.1} parent=5 // pred_region
        %s364 = ssub.s32 %s20, 1
        // Predicated region
        $region61: #{tpu_custom_call.1} parent=59 // pred_check
          %p365 = pneg %p41
        $region62: #{tpu_custom_call.1} parent=59 // pred_check_branch
          %367 = sbr.rel (%p365) target = $region64
        $region63: #{tpu_custom_call.1} parent=59 // pred_region
          %368 = dma.done [#allocation5], 16
        $region64: #{tpu_custom_call.1} parent=59 // pred_fallthru
          _
        %s369 = sand.u32 %s80, 1
        %s370 = scalar_lea.sflag [#allocation4], %s369
        %s371 = sand.u32 %s80, 1
        %s372 = smul.addr %s371, 32
        %s373 = scalar_lea.vmem [#allocation6], %s372
        // Predicated region
        $region65: #{tpu_custom_call.1} parent=59 // pred_check
          %p374 = pneg %p93
        $region66: #{tpu_custom_call.1} parent=59 // pred_check_branch
          %376 = sbr.rel (%p374) target = $region68
        $region67: #{tpu_custom_call.1} parent=59 // pred_region
          %377 = dma.done %s370, 512
        $region68: #{tpu_custom_call.1} parent=59 // pred_fallthru
          _
        %378 = sfence
        %p379 = pneg %p41
        %p380 = pneg %p38
        %s381 = smul.u32 4, %s25
        %p382 = scmp.lt.s32.totalorder %s381, 15
        %s383 = scalar_select %p382, %s381, 15
        %s384 = smul.addr %s383, 8
        %s385 = scalar_lea.vmem %s1, %s384
        %p386 = pneg %p67
        %p387 = pneg %p64
        %s388 = sand.u32 %s80, 1
        %s389 = scalar_lea.sflag [#allocation4], %s388
        %s390 = sand.u32 %s80, 1
        %s391 = smul.addr %s390, 32
        %s392 = scalar_lea.vmem [#allocation6], %s391
        %p393 = pneg %p93
        %p394 = pneg %p90
        %s395 = smul.u32 4, %s25
        %p396 = scmp.lt.s32.totalorder %s395, 15
        %s397 = scalar_select %p396, %s395, 15
        %s398 = smul.addr %s397, 4
        %s399 = scalar_lea.vmem %s3, %s398
        %p400 = pneg %p119
        %p401 = pneg %p116
        %p402 = pneg %p140
        %p403 = pneg %p137
        %p404 = pneg %p161
        %p405 = pneg %p158
        %p406 = pneg %p182
        %p407 = pneg %p179
        %p408 = pneg %p203
        %p409 = pneg %p200
        %p410 = pneg %p224
        %p411 = pneg %p221
        %p412 = pneg %p245
        %p413 = pneg %p242
        %p414 = pneg %p271
        %p415 = pneg %p268
        %s416 = sand.u32 %s258, 1
        %s417 = sand.u32 %s258, 1
        %s418 = smul.addr %s417, 256
        %s419 = scalar_lea.vmem [#allocation7], %s418
        %s420 = smul.u32 4, %s25
        %p421 = scmp.lt.s32.totalorder %s420, 15
        %s422 = scalar_select %p421, %s420, 15
        %s423 = smul.addr %s422, 8
        %s424 = scalar_lea.vmem %s1, %s423
        %s425 = smul.u32 4, %s25
        %s426 = smul.u32 4, %s25
        %s427 = smul.u32 4, %s25
        %p428 = scmp.lt.s32.totalorder %s427, 15
        %s429 = scalar_select %p428, %s427, 15
        %s430 = smul.addr %s429, 4
        %s431 = scalar_lea.vmem %s3, %s430
        %s432 = smul.u32 4, %s25
        %s433 = smul.u32 4, %s25
        %v435 = vld [vmem:[%s431] sm:$0xf]
        %v436 = vld [vmem:[%s431 + $0x4] sm:$0xf]
        %v437 = vld [vmem:[%s431 + $0x8] sm:$0xf]
        %v438 = vld [vmem:[%s431 + $0xc] sm:$0xf]
        %v439 = vld [vmem:[%s4] sm:$0xf]
        %v440 = vld [vmem:[%s4 + $0x4] sm:$0xf]
        %v441 = vld [vmem:[%s4 + $0x8] sm:$0xf]
        %v442 = vld [vmem:[%s4 + $0xc] sm:$0xf]
        %v443 = vld [vmem:[%s5] sm:$0x1]
        %v445 = vlaneseq
        %v446 = vshrl.u32 %v445, 7
        %v447 = vsub.s32 0, %v446
        %v448 = vrot.slane %v443, %v447
        %v454 = vunpack.c.l.b16 %v435
        %v455 = vunpack.c.l.b16 %v436
        %v456 = vunpack.c.l.b16 %v437
        %v457 = vunpack.c.l.b16 %v438
        %v458 = vpack.c.b16 %v455, %v454
        %v459 = vpack.c.b16 %v457, %v456
        %v464 = vunpack.c.l.b16 %v439
        %v465 = vunpack.c.l.b16 %v440
        %v466 = vunpack.c.l.b16 %v441
        %v467 = vunpack.c.l.b16 %v442
        %v468 = vpack.c.b16 %v465, %v464
        %v469 = vpack.c.b16 %v467, %v466
        %vm472 = vcmask 261120
        %v474 = vsel %vm472, %v458, 0
        %v477 = vsel %vm472, %v459, 0
        %479 = vmatprep.subr.bf16.mxu0 0
        %480 = vmatpush1.bf16.msra.mxu0 %v468
        %481 = vmatprep.subr.bf16.mxu0 0
        %482 = vmatpush1.bf16.msra.mxu0 %v469
        %483 = vmatprep.subr.bf16.mxu0 0
        %484 = vmatpush1.bf16.msra.mxu0 0
        %485 = vmatprep.subr.bf16.mxu0 0
        %486 = vmatpush1.bf16.msra.mxu0 0
        %487 = vmatprep.subr.bf16.mxu0 0
        %488 = vmatpush1.bf16.msra.mxu0 0
        %489 = vmatprep.subr.bf16.mxu0 0
        %490 = vmatpush1.bf16.msra.mxu0 0
        %491 = vmatprep.subr.bf16.mxu0 0
        %492 = vmatpush1.bf16.msra.mxu0 0
        %493 = vmatprep.subr.bf16.mxu0 0
        %494 = vmatpush1.bf16.msra.mxu0 0
        %495 = vmatprep.subr.bf16.mxu0 0
        %496 = vmatpush1.bf16.msra.mxu0 0
        %497 = vmatprep.subr.bf16.mxu0 0
        %498 = vmatpush1.bf16.msra.mxu0 0
        %499 = vmatprep.subr.bf16.mxu0 0
        %500 = vmatpush1.bf16.msra.mxu0 0
        %501 = vmatprep.subr.bf16.mxu0 0
        %502 = vmatpush1.bf16.msra.mxu0 0
        %503 = vmatprep.subr.bf16.mxu0 0
        %504 = vmatpush1.bf16.msra.mxu0 0
        %505 = vmatprep.subr.bf16.mxu0 0
        %506 = vmatpush1.bf16.msra.mxu0 0
        %507 = vmatprep.subr.bf16.mxu0 0
        %508 = vmatpush1.bf16.msra.mxu0 0
        %509 = vmatprep.subr.bf16.mxu0 0
        %510 = vmatpush1.bf16.msra.mxu0 0
        %511 = vmatprep.mubr.bf16.mxu0 0
        %512 = vmatmul.mubr.bf16.gmra.mrb[0].mxu0 %v474
        %v513 = vpop.f32.mrb[0].mxu0
        %v514 = vadd.f32 %v448, %v513
        %v515 = vpop.f32.mrb[0].mxu0
        %v516 = vpop.f32.mrb[0].mxu0
        %v517 = vadd.f32 %v448, %v516
        %v518 = vpop.f32.mrb[0].mxu0
        %519 = vmatprep.mubr.bf16.mxu0 0
        %520 = vmatmul.mubr.bf16.gmra.mrb[0].mxu0 %v477
        %v521 = vpop.f32.mrb[0].mxu0
        %v522 = vadd.f32 %v448, %v521
        %v523 = vpop.f32.mrb[0].mxu0
        %v524 = vpop.f32.mrb[0].mxu0
        %v525 = vadd.f32 %v448, %v524
        %v526 = vpop.f32.mrb[0].mxu0
        %527 = vdwg.mxu0
        %v528 = vld [vmem:[%s424] sm:$0xff]
        %v529 = vld [vmem:[%s424 + $0x8] sm:$0xff]
        %v530 = vld [vmem:[%s424 + $0x10] sm:$0xff]
        %v531 = vld [vmem:[%s424 + $0x18] sm:$0xff]
        %v532 = vld [vmem:[%s373] sm:$0xff]
        %v533 = vld [vmem:[%s373 + $0x8] sm:$0xff]
        %v534 = vld [vmem:[%s373 + $0x10] sm:$0xff]
        %v535 = vld [vmem:[%s373 + $0x18] sm:$0xff]
        %v536 = vmul.f32 %v528, %v528
        %v537 = vmul.f32 %v529, %v529
        %v538 = vmul.f32 %v530, %v530
        %v539 = vmul.f32 %v531, %v531
        %540 = vadd.xlane.f32.xlu0 %v536
        %v541 = vpop.xlane.xlu0 %540
        %542 = vadd.xlane.f32.xlu0 %v537
        %v543 = vpop.xlane.xlu0 %542
        %544 = vadd.xlane.f32.xlu0 %v538
        %v545 = vpop.xlane.xlu0 %544
        %546 = vadd.xlane.f32.xlu0 %v539
        %v547 = vpop.xlane.xlu0 %546
        %v548 = vrsqrt.pop %v541
        %v549 = vrsqrt.pop %v543
        %v550 = vrsqrt.pop %v545
        %v551 = vrsqrt.pop %v547
        %v552 = vmul.f32 %v528, %v532
        %v553 = vmul.f32 %v529, %v533
        %v554 = vmul.f32 %v530, %v534
        %v555 = vmul.f32 %v531, %v535
        %v556 = vmul.f32 %v552, %v514
        %v557 = vmul.f32 %v553, %v517
        %v558 = vmul.f32 %v554, %v522
        %v559 = vmul.f32 %v555, %v525
        %v560 = vmul.f32 %v556, %v548
        %v561 = vmul.f32 %v557, %v549
        %v562 = vmul.f32 %v558, %v550
        %v563 = vmul.f32 %v559, %v551
        %s564 = sld [smem:[#allocation3]]
        %v565 = vstv %s564
        %v566 = vmul.f32 %v565, %v514
        %v567 = vmul.f32 %v565, %v517
        %v568 = vmul.f32 %v565, %v522
        %v569 = vmul.f32 %v565, %v525
        %s570 = sld [smem:[#allocation3 + $0x1]]
        %v571 = vstv %s570
        %v572 = vmul.f32 %v571, %v528
        %v573 = vmul.f32 %v571, %v529
        %v574 = vmul.f32 %v571, %v530
        %v575 = vmul.f32 %v571, %v531
        %v576 = vadd.f32 %v566, %v572
        %v577 = vadd.f32 %v567, %v573
        %v578 = vadd.f32 %v568, %v574
        %v579 = vadd.f32 %v569, %v575
        %s580 = sld [smem:[#allocation3 + $0x2]]
        %v581 = vstv %s580
        %v582 = vmul.f32 %v581, %v532
        %v583 = vmul.f32 %v581, %v533
        %v584 = vmul.f32 %v581, %v534
        %v585 = vmul.f32 %v581, %v535
        %v586 = vadd.f32 %v576, %v582
        %v587 = vadd.f32 %v577, %v583
        %v588 = vadd.f32 %v578, %v584
        %v589 = vadd.f32 %v579, %v585
        %s590 = sld [smem:[#allocation3 + $0x3]]
        %v591 = vstv %s590
        %v592 = vmul.f32 %v591, %v560
        %v593 = vmul.f32 %v591, %v561
        %v594 = vmul.f32 %v591, %v562
        %v595 = vmul.f32 %v591, %v563
        %v596 = vadd.f32 %v586, %v592
        %v597 = vadd.f32 %v587, %v593
        %v598 = vadd.f32 %v588, %v594
        %v599 = vadd.f32 %v589, %v595
        %s600 = sld [smem:[#allocation3 + $0x28]]
        %v601 = vstv %s600
        %v602 = vadd.f32 %v596, %v601
        %v603 = vadd.f32 %v597, %v601
        %v604 = vadd.f32 %v598, %v601
        %v605 = vadd.f32 %v599, %v601
        %v606 = vmul.f32 %v602, 1.702
        %v607 = vmul.f32 %v603, 1.702
        %v608 = vmul.f32 %v604, 1.702
        %v609 = vmul.f32 %v605, 1.702
        %v610 = vxor.u32 %v606, 2147483648
        %v611 = vxor.u32 %v607, 2147483648
        %v612 = vxor.u32 %v608, 2147483648
        %v613 = vxor.u32 %v609, 2147483648
        %v614 = vmul.f32 %v610, 1.442695
        %v615 = vpow.pop %v614
        %v616 = vmul.f32 %v611, 1.442695
        %v617 = vpow.pop %v616
        %v618 = vmul.f32 %v612, 1.442695
        %v619 = vpow.pop %v618
        %v620 = vmul.f32 %v613, 1.442695
        %v621 = vpow.pop %v620
        %v622 = vadd.f32 %v615, 1.0
        %v623 = vadd.f32 %v617, 1.0
        %v624 = vadd.f32 %v619, 1.0
        %v625 = vadd.f32 %v621, 1.0
        %v626 = vrcp.pop %v622
        %v627 = vmul.f32 1.0, %v626
        %v628 = vrcp.pop %v623
        %v629 = vmul.f32 1.0, %v628
        %v630 = vrcp.pop %v624
        %v631 = vmul.f32 1.0, %v630
        %v632 = vrcp.pop %v625
        %v633 = vmul.f32 1.0, %v632
        %v634 = vmul.f32 %v602, %v627
        %v635 = vmul.f32 %v603, %v629
        %v636 = vmul.f32 %v604, %v631
        %v637 = vmul.f32 %v605, %v633
        %s638 = sld [smem:[#allocation3 + $0x32]]
        %v639 = vstv %s638
        %v640 = vmul.f32 %v639, %v634
        %v641 = vmul.f32 %v639, %v635
        %v642 = vmul.f32 %v639, %v636
        %v643 = vmul.f32 %v639, %v637
        %s644 = sld [smem:[#allocation3 + $0x3c]]
        %v645 = vstv %s644
        %v646 = vmul.f32 %v645, %v634
        %v647 = vmul.f32 %v645, %v635
        %v648 = vmul.f32 %v645, %v636
        %v649 = vmul.f32 %v645, %v637
        %s650 = sld [smem:[#allocation3 + $0x46]]
        %v651 = vstv %s650
        %v652 = vmul.f32 %v651, %v634
        %v653 = vmul.f32 %v651, %v635
        %v654 = vmul.f32 %v651, %v636
        %v655 = vmul.f32 %v651, %v637
        %s656 = sld [smem:[#allocation3 + $0x50]]
        %v657 = vstv %s656
        %v658 = vmul.f32 %v657, %v634
        %v659 = vmul.f32 %v657, %v635
        %v660 = vmul.f32 %v657, %v636
        %v661 = vmul.f32 %v657, %v637
        %s662 = sld [smem:[#allocation3 + $0x5a]]
        %v663 = vstv %s662
        %v664 = vmul.f32 %v663, %v634
        %v665 = vmul.f32 %v663, %v635
        %v666 = vmul.f32 %v663, %v636
        %v667 = vmul.f32 %v663, %v637
        %s668 = sld [smem:[#allocation3 + $0x4]]
        %v669 = vstv %s668
        %v670 = vmul.f32 %v669, %v514
        %v671 = vmul.f32 %v669, %v517
        %v672 = vmul.f32 %v669, %v522
        %v673 = vmul.f32 %v669, %v525
        %s674 = sld [smem:[#allocation3 + $0x5]]
        %v675 = vstv %s674
        %v676 = vmul.f32 %v675, %v528
        %v677 = vmul.f32 %v675, %v529
        %v678 = vmul.f32 %v675, %v530
        %v679 = vmul.f32 %v675, %v531
        %v680 = vadd.f32 %v670, %v676
        %v681 = vadd.f32 %v671, %v677
        %v682 = vadd.f32 %v672, %v678
        %v683 = vadd.f32 %v673, %v679
        %s684 = sld [smem:[#allocation3 + $0x6]]
        %v685 = vstv %s684
        %v686 = vmul.f32 %v685, %v532
        %v687 = vmul.f32 %v685, %v533
        %v688 = vmul.f32 %v685, %v534
        %v689 = vmul.f32 %v685, %v535
        %v690 = vadd.f32 %v680, %v686
        %v691 = vadd.f32 %v681, %v687
        %v692 = vadd.f32 %v682, %v688
        %v693 = vadd.f32 %v683, %v689
        %s694 = sld [smem:[#allocation3 + $0x7]]
        %v695 = vstv %s694
        %v696 = vmul.f32 %v695, %v560
        %v697 = vmul.f32 %v695, %v561
        %v698 = vmul.f32 %v695, %v562
        %v699 = vmul.f32 %v695, %v563
        %v700 = vadd.f32 %v690, %v696
        %v701 = vadd.f32 %v691, %v697
        %v702 = vadd.f32 %v692, %v698
        %v703 = vadd.f32 %v693, %v699
        %s704 = sld [smem:[#allocation3 + $0x29]]
        %v705 = vstv %s704
        %v706 = vadd.f32 %v700, %v705
        %v707 = vadd.f32 %v701, %v705
        %v708 = vadd.f32 %v702, %v705
        %v709 = vadd.f32 %v703, %v705
        %v710 = vmul.f32 %v706, 1.702
        %v711 = vmul.f32 %v707, 1.702
        %v712 = vmul.f32 %v708, 1.702
        %v713 = vmul.f32 %v709, 1.702
        %v714 = vxor.u32 %v710, 2147483648
        %v715 = vxor.u32 %v711, 2147483648
        %v716 = vxor.u32 %v712, 2147483648
        %v717 = vxor.u32 %v713, 2147483648
        %v718 = vmul.f32 %v714, 1.442695
        %v719 = vpow.pop %v718
        %v720 = vmul.f32 %v715, 1.442695
        %v721 = vpow.pop %v720
        %v722 = vmul.f32 %v716, 1.442695
        %v723 = vpow.pop %v722
        %v724 = vmul.f32 %v717, 1.442695
        %v725 = vpow.pop %v724
        %v726 = vadd.f32 %v719, 1.0
        %v727 = vadd.f32 %v721, 1.0
        %v728 = vadd.f32 %v723, 1.0
        %v729 = vadd.f32 %v725, 1.0
        %v730 = vrcp.pop %v726
        %v731 = vmul.f32 1.0, %v730
        %v732 = vrcp.pop %v727
        %v733 = vmul.f32 1.0, %v732
        %v734 = vrcp.pop %v728
        %v735 = vmul.f32 1.0, %v734
        %v736 = vrcp.pop %v729
        %v737 = vmul.f32 1.0, %v736
        %v738 = vmul.f32 %v706, %v731
        %v739 = vmul.f32 %v707, %v733
        %v740 = vmul.f32 %v708, %v735
        %v741 = vmul.f32 %v709, %v737
        %s742 = sld [smem:[#allocation3 + $0x33]]
        %v743 = vstv %s742
        %v744 = vmul.f32 %v743, %v738
        %v745 = vmul.f32 %v743, %v739
        %v746 = vmul.f32 %v743, %v740
        %v747 = vmul.f32 %v743, %v741
        %v748 = vadd.f32 %v640, %v744
        %v749 = vadd.f32 %v641, %v745
        %v750 = vadd.f32 %v642, %v746
        %v751 = vadd.f32 %v643, %v747
        %s752 = sld [smem:[#allocation3 + $0x3d]]
        %v753 = vstv %s752
        %v754 = vmul.f32 %v753, %v738
        %v755 = vmul.f32 %v753, %v739
        %v756 = vmul.f32 %v753, %v740
        %v757 = vmul.f32 %v753, %v741
        %v758 = vadd.f32 %v646, %v754
        %v759 = vadd.f32 %v647, %v755
        %v760 = vadd.f32 %v648, %v756
        %v761 = vadd.f32 %v649, %v757
        %s762 = sld [smem:[#allocation3 + $0x47]]
        %v763 = vstv %s762
        %v764 = vmul.f32 %v763, %v738
        %v765 = vmul.f32 %v763, %v739
        %v766 = vmul.f32 %v763, %v740
        %v767 = vmul.f32 %v763, %v741
        %v768 = vadd.f32 %v652, %v764
        %v769 = vadd.f32 %v653, %v765
        %v770 = vadd.f32 %v654, %v766
        %v771 = vadd.f32 %v655, %v767
        %s772 = sld [smem:[#allocation3 + $0x51]]
        %v773 = vstv %s772
        %v774 = vmul.f32 %v773, %v738
        %v775 = vmul.f32 %v773, %v739
        %v776 = vmul.f32 %v773, %v740
        %v777 = vmul.f32 %v773, %v741
        %v778 = vadd.f32 %v658, %v774
        %v779 = vadd.f32 %v659, %v775
        %v780 = vadd.f32 %v660, %v776
        %v781 = vadd.f32 %v661, %v777
        %s782 = sld [smem:[#allocation3 + $0x5b]]
        %v783 = vstv %s782
        %v784 = vmul.f32 %v783, %v738
        %v785 = vmul.f32 %v783, %v739
        %v786 = vmul.f32 %v783, %v740
        %v787 = vmul.f32 %v783, %v741
        %v788 = vadd.f32 %v664, %v784
        %v789 = vadd.f32 %v665, %v785
        %v790 = vadd.f32 %v666, %v786
        %v791 = vadd.f32 %v667, %v787
        %s792 = sld [smem:[#allocation3 + $0x8]]
        %v793 = vstv %s792
        %v794 = vmul.f32 %v793, %v514
        %v795 = vmul.f32 %v793, %v517
        %v796 = vmul.f32 %v793, %v522
        %v797 = vmul.f32 %v793, %v525
        %s798 = sld [smem:[#allocation3 + $0x9]]
        %v799 = vstv %s798
        %v800 = vmul.f32 %v799, %v528
        %v801 = vmul.f32 %v799, %v529
        %v802 = vmul.f32 %v799, %v530
        %v803 = vmul.f32 %v799, %v531
        %v804 = vadd.f32 %v794, %v800
        %v805 = vadd.f32 %v795, %v801
        %v806 = vadd.f32 %v796, %v802
        %v807 = vadd.f32 %v797, %v803
        %s808 = sld [smem:[#allocation3 + $0xa]]
        %v809 = vstv %s808
        %v810 = vmul.f32 %v809, %v532
        %v811 = vmul.f32 %v809, %v533
        %v812 = vmul.f32 %v809, %v534
        %v813 = vmul.f32 %v809, %v535
        %v814 = vadd.f32 %v804, %v810
        %v815 = vadd.f32 %v805, %v811
        %v816 = vadd.f32 %v806, %v812
        %v817 = vadd.f32 %v807, %v813
        %s818 = sld [smem:[#allocation3 + $0xb]]
        %v819 = vstv %s818
        %v820 = vmul.f32 %v819, %v560
        %v821 = vmul.f32 %v819, %v561
        %v822 = vmul.f32 %v819, %v562
        %v823 = vmul.f32 %v819, %v563
        %v824 = vadd.f32 %v814, %v820
        %v825 = vadd.f32 %v815, %v821
        %v826 = vadd.f32 %v816, %v822
        %v827 = vadd.f32 %v817, %v823
        %s828 = sld [smem:[#allocation3 + $0x2a]]
        %v829 = vstv %s828
        %v830 = vadd.f32 %v824, %v829
        %v831 = vadd.f32 %v825, %v829
        %v832 = vadd.f32 %v826, %v829
        %v833 = vadd.f32 %v827, %v829
        %v834 = vmul.f32 %v830, 1.702
        %v835 = vmul.f32 %v831, 1.702
        %v836 = vmul.f32 %v832, 1.702
        %v837 = vmul.f32 %v833, 1.702
        %v838 = vxor.u32 %v834, 2147483648
        %v839 = vxor.u32 %v835, 2147483648
        %v840 = vxor.u32 %v836, 2147483648
        %v841 = vxor.u32 %v837, 2147483648
        %v842 = vmul.f32 %v838, 1.442695
        %v843 = vpow.pop %v842
        %v844 = vmul.f32 %v839, 1.442695
        %v845 = vpow.pop %v844
        %v846 = vmul.f32 %v840, 1.442695
        %v847 = vpow.pop %v846
        %v848 = vmul.f32 %v841, 1.442695
        %v849 = vpow.pop %v848
        %v850 = vadd.f32 %v843, 1.0
        %v851 = vadd.f32 %v845, 1.0
        %v852 = vadd.f32 %v847, 1.0
        %v853 = vadd.f32 %v849, 1.0
        %v854 = vrcp.pop %v850
        %v855 = vmul.f32 1.0, %v854
        %v856 = vrcp.pop %v851
        %v857 = vmul.f32 1.0, %v856
        %v858 = vrcp.pop %v852
        %v859 = vmul.f32 1.0, %v858
        %v860 = vrcp.pop %v853
        %v861 = vmul.f32 1.0, %v860
        %v862 = vmul.f32 %v830, %v855
        %v863 = vmul.f32 %v831, %v857
        %v864 = vmul.f32 %v832, %v859
        %v865 = vmul.f32 %v833, %v861
        %s866 = sld [smem:[#allocation3 + $0x34]]
        %v867 = vstv %s866
        %v868 = vmul.f32 %v867, %v862
        %v869 = vmul.f32 %v867, %v863
        %v870 = vmul.f32 %v867, %v864
        %v871 = vmul.f32 %v867, %v865
        %v872 = vadd.f32 %v748, %v868
        %v873 = vadd.f32 %v749, %v869
        %v874 = vadd.f32 %v750, %v870
        %v875 = vadd.f32 %v751, %v871
        %s876 = sld [smem:[#allocation3 + $0x3e]]
        %v877 = vstv %s876
        %v878 = vmul.f32 %v877, %v862
        %v879 = vmul.f32 %v877, %v863
        %v880 = vmul.f32 %v877, %v864
        %v881 = vmul.f32 %v877, %v865
        %v882 = vadd.f32 %v758, %v878
        %v883 = vadd.f32 %v759, %v879
        %v884 = vadd.f32 %v760, %v880
        %v885 = vadd.f32 %v761, %v881
        %s886 = sld [smem:[#allocation3 + $0x48]]
        %v887 = vstv %s886
        %v888 = vmul.f32 %v887, %v862
        %v889 = vmul.f32 %v887, %v863
        %v890 = vmul.f32 %v887, %v864
        %v891 = vmul.f32 %v887, %v865
        %v892 = vadd.f32 %v768, %v888
        %v893 = vadd.f32 %v769, %v889
        %v894 = vadd.f32 %v770, %v890
        %v895 = vadd.f32 %v771, %v891
        %s896 = sld [smem:[#allocation3 + $0x52]]
        %v897 = vstv %s896
        %v898 = vmul.f32 %v897, %v862
        %v899 = vmul.f32 %v897, %v863
        %v900 = vmul.f32 %v897, %v864
        %v901 = vmul.f32 %v897, %v865
        %v902 = vadd.f32 %v778, %v898
        %v903 = vadd.f32 %v779, %v899
        %v904 = vadd.f32 %v780, %v900
        %v905 = vadd.f32 %v781, %v901
        %s906 = sld [smem:[#allocation3 + $0x5c]]
        %v907 = vstv %s906
        %v908 = vmul.f32 %v907, %v862
        %v909 = vmul.f32 %v907, %v863
        %v910 = vmul.f32 %v907, %v864
        %v911 = vmul.f32 %v907, %v865
        %v912 = vadd.f32 %v788, %v908
        %v913 = vadd.f32 %v789, %v909
        %v914 = vadd.f32 %v790, %v910
        %v915 = vadd.f32 %v791, %v911
        %s916 = sld [smem:[#allocation3 + $0xc]]
        %v917 = vstv %s916
        %v918 = vmul.f32 %v917, %v514
        %v919 = vmul.f32 %v917, %v517
        %v920 = vmul.f32 %v917, %v522
        %v921 = vmul.f32 %v917, %v525
        %s922 = sld [smem:[#allocation3 + $0xd]]
        %v923 = vstv %s922
        %v924 = vmul.f32 %v923, %v528
        %v925 = vmul.f32 %v923, %v529
        %v926 = vmul.f32 %v923, %v530
        %v927 = vmul.f32 %v923, %v531
        %v928 = vadd.f32 %v918, %v924
        %v929 = vadd.f32 %v919, %v925
        %v930 = vadd.f32 %v920, %v926
        %v931 = vadd.f32 %v921, %v927
        %s932 = sld [smem:[#allocation3 + $0xe]]
        %v933 = vstv %s932
        %v934 = vmul.f32 %v933, %v532
        %v935 = vmul.f32 %v933, %v533
        %v936 = vmul.f32 %v933, %v534
        %v937 = vmul.f32 %v933, %v535
        %v938 = vadd.f32 %v928, %v934
        %v939 = vadd.f32 %v929, %v935
        %v940 = vadd.f32 %v930, %v936
        %v941 = vadd.f32 %v931, %v937
        %s942 = sld [smem:[#allocation3 + $0xf]]
        %v943 = vstv %s942
        %v944 = vmul.f32 %v943, %v560
        %v945 = vmul.f32 %v943, %v561
        %v946 = vmul.f32 %v943, %v562
        %v947 = vmul.f32 %v943, %v563
        %v948 = vadd.f32 %v938, %v944
        %v949 = vadd.f32 %v939, %v945
        %v950 = vadd.f32 %v940, %v946
        %v951 = vadd.f32 %v941, %v947
        %s952 = sld [smem:[#allocation3 + $0x2b]]
        %v953 = vstv %s952
        %v954 = vadd.f32 %v948, %v953
        %v955 = vadd.f32 %v949, %v953
        %v956 = vadd.f32 %v950, %v953
        %v957 = vadd.f32 %v951, %v953
        %v958 = vmul.f32 %v954, 1.702
        %v959 = vmul.f32 %v955, 1.702
        %v960 = vmul.f32 %v956, 1.702
        %v961 = vmul.f32 %v957, 1.702
        %v962 = vxor.u32 %v958, 2147483648
        %v963 = vxor.u32 %v959, 2147483648
        %v964 = vxor.u32 %v960, 2147483648
        %v965 = vxor.u32 %v961, 2147483648
        %v966 = vmul.f32 %v962, 1.442695
        %v967 = vpow.pop %v966
        %v968 = vmul.f32 %v963, 1.442695
        %v969 = vpow.pop %v968
        %v970 = vmul.f32 %v964, 1.442695
        %v971 = vpow.pop %v970
        %v972 = vmul.f32 %v965, 1.442695
        %v973 = vpow.pop %v972
        %v974 = vadd.f32 %v967, 1.0
        %v975 = vadd.f32 %v969, 1.0
        %v976 = vadd.f32 %v971, 1.0
        %v977 = vadd.f32 %v973, 1.0
        %v978 = vrcp.pop %v974
        %v979 = vmul.f32 1.0, %v978
        %v980 = vrcp.pop %v975
        %v981 = vmul.f32 1.0, %v980
        %v982 = vrcp.pop %v976
        %v983 = vmul.f32 1.0, %v982
        %v984 = vrcp.pop %v977
        %v985 = vmul.f32 1.0, %v984
        %v986 = vmul.f32 %v954, %v979
        %v987 = vmul.f32 %v955, %v981
        %v988 = vmul.f32 %v956, %v983
        %v989 = vmul.f32 %v957, %v985
        %s990 = sld [smem:[#allocation3 + $0x35]]
        %v991 = vstv %s990
        %v992 = vmul.f32 %v991, %v986
        %v993 = vmul.f32 %v991, %v987
        %v994 = vmul.f32 %v991, %v988
        %v995 = vmul.f32 %v991, %v989
        %v996 = vadd.f32 %v872, %v992
        %v997 = vadd.f32 %v873, %v993
        %v998 = vadd.f32 %v874, %v994
        %v999 = vadd.f32 %v875, %v995
        %s1000 = sld [smem:[#allocation3 + $0x3f]]
        %v1001 = vstv %s1000
        %v1002 = vmul.f32 %v1001, %v986
        %v1003 = vmul.f32 %v1001, %v987
        %v1004 = vmul.f32 %v1001, %v988
        %v1005 = vmul.f32 %v1001, %v989
        %v1006 = vadd.f32 %v882, %v1002
        %v1007 = vadd.f32 %v883, %v1003
        %v1008 = vadd.f32 %v884, %v1004
        %v1009 = vadd.f32 %v885, %v1005
        %s1010 = sld [smem:[#allocation3 + $0x49]]
        %v1011 = vstv %s1010
        %v1012 = vmul.f32 %v1011, %v986
        %v1013 = vmul.f32 %v1011, %v987
        %v1014 = vmul.f32 %v1011, %v988
        %v1015 = vmul.f32 %v1011, %v989
        %v1016 = vadd.f32 %v892, %v1012
        %v1017 = vadd.f32 %v893, %v1013
        %v1018 = vadd.f32 %v894, %v1014
        %v1019 = vadd.f32 %v895, %v1015
        %s1020 = sld [smem:[#allocation3 + $0x53]]
        %v1021 = vstv %s1020
        %v1022 = vmul.f32 %v1021, %v986
        %v1023 = vmul.f32 %v1021, %v987
        %v1024 = vmul.f32 %v1021, %v988
        %v1025 = vmul.f32 %v1021, %v989
        %v1026 = vadd.f32 %v902, %v1022
        %v1027 = vadd.f32 %v903, %v1023
        %v1028 = vadd.f32 %v904, %v1024
        %v1029 = vadd.f32 %v905, %v1025
        %s1030 = sld [smem:[#allocation3 + $0x5d]]
        %v1031 = vstv %s1030
        %v1032 = vmul.f32 %v1031, %v986
        %v1033 = vmul.f32 %v1031, %v987
        %v1034 = vmul.f32 %v1031, %v988
        %v1035 = vmul.f32 %v1031, %v989
        %v1036 = vadd.f32 %v912, %v1032
        %v1037 = vadd.f32 %v913, %v1033
        %v1038 = vadd.f32 %v914, %v1034
        %v1039 = vadd.f32 %v915, %v1035
        %s1040 = sld [smem:[#allocation3 + $0x10]]
        %v1041 = vstv %s1040
        %v1042 = vmul.f32 %v1041, %v514
        %v1043 = vmul.f32 %v1041, %v517
        %v1044 = vmul.f32 %v1041, %v522
        %v1045 = vmul.f32 %v1041, %v525
        %s1046 = sld [smem:[#allocation3 + $0x11]]
        %v1047 = vstv %s1046
        %v1048 = vmul.f32 %v1047, %v528
        %v1049 = vmul.f32 %v1047, %v529
        %v1050 = vmul.f32 %v1047, %v530
        %v1051 = vmul.f32 %v1047, %v531
        %v1052 = vadd.f32 %v1042, %v1048
        %v1053 = vadd.f32 %v1043, %v1049
        %v1054 = vadd.f32 %v1044, %v1050
        %v1055 = vadd.f32 %v1045, %v1051
        %s1056 = sld [smem:[#allocation3 + $0x12]]
        %v1057 = vstv %s1056
        %v1058 = vmul.f32 %v1057, %v532
        %v1059 = vmul.f32 %v1057, %v533
        %v1060 = vmul.f32 %v1057, %v534
        %v1061 = vmul.f32 %v1057, %v535
        %v1062 = vadd.f32 %v1052, %v1058
        %v1063 = vadd.f32 %v1053, %v1059
        %v1064 = vadd.f32 %v1054, %v1060
        %v1065 = vadd.f32 %v1055, %v1061
        %s1066 = sld [smem:[#allocation3 + $0x13]]
        %v1067 = vstv %s1066
        %v1068 = vmul.f32 %v1067, %v560
        %v1069 = vmul.f32 %v1067, %v561
        %v1070 = vmul.f32 %v1067, %v562
        %v1071 = vmul.f32 %v1067, %v563
        %v1072 = vadd.f32 %v1062, %v1068
        %v1073 = vadd.f32 %v1063, %v1069
        %v1074 = vadd.f32 %v1064, %v1070
        %v1075 = vadd.f32 %v1065, %v1071
        %s1076 = sld [smem:[#allocation3 + $0x2c]]
        %v1077 = vstv %s1076
        %v1078 = vadd.f32 %v1072, %v1077
        %v1079 = vadd.f32 %v1073, %v1077
        %v1080 = vadd.f32 %v1074, %v1077
        %v1081 = vadd.f32 %v1075, %v1077
        %v1082 = vmul.f32 %v1078, 1.702
        %v1083 = vmul.f32 %v1079, 1.702
        %v1084 = vmul.f32 %v1080, 1.702
        %v1085 = vmul.f32 %v1081, 1.702
        %v1086 = vxor.u32 %v1082, 2147483648
        %v1087 = vxor.u32 %v1083, 2147483648
        %v1088 = vxor.u32 %v1084, 2147483648
        %v1089 = vxor.u32 %v1085, 2147483648
        %v1090 = vmul.f32 %v1086, 1.442695
        %v1091 = vpow.pop %v1090
        %v1092 = vmul.f32 %v1087, 1.442695
        %v1093 = vpow.pop %v1092
        %v1094 = vmul.f32 %v1088, 1.442695
        %v1095 = vpow.pop %v1094
        %v1096 = vmul.f32 %v1089, 1.442695
        %v1097 = vpow.pop %v1096
        %v1098 = vadd.f32 %v1091, 1.0
        %v1099 = vadd.f32 %v1093, 1.0
        %v1100 = vadd.f32 %v1095, 1.0
        %v1101 = vadd.f32 %v1097, 1.0
        %v1102 = vrcp.pop %v1098
        %v1103 = vmul.f32 1.0, %v1102
        %v1104 = vrcp.pop %v1099
        %v1105 = vmul.f32 1.0, %v1104
        %v1106 = vrcp.pop %v1100
        %v1107 = vmul.f32 1.0, %v1106
        %v1108 = vrcp.pop %v1101
        %v1109 = vmul.f32 1.0, %v1108
        %v1110 = vmul.f32 %v1078, %v1103
        %v1111 = vmul.f32 %v1079, %v1105
        %v1112 = vmul.f32 %v1080, %v1107
        %v1113 = vmul.f32 %v1081, %v1109
        %s1114 = sld [smem:[#allocation3 + $0x36]]
        %v1115 = vstv %s1114
        %v1116 = vmul.f32 %v1115, %v1110
        %v1117 = vmul.f32 %v1115, %v1111
        %v1118 = vmul.f32 %v1115, %v1112
        %v1119 = vmul.f32 %v1115, %v1113
        %v1120 = vadd.f32 %v996, %v1116
        %v1121 = vadd.f32 %v997, %v1117
        %v1122 = vadd.f32 %v998, %v1118
        %v1123 = vadd.f32 %v999, %v1119
        %s1124 = sld [smem:[#allocation3 + $0x40]]
        %v1125 = vstv %s1124
        %v1126 = vmul.f32 %v1125, %v1110
        %v1127 = vmul.f32 %v1125, %v1111
        %v1128 = vmul.f32 %v1125, %v1112
        %v1129 = vmul.f32 %v1125, %v1113
        %v1130 = vadd.f32 %v1006, %v1126
        %v1131 = vadd.f32 %v1007, %v1127
        %v1132 = vadd.f32 %v1008, %v1128
        %v1133 = vadd.f32 %v1009, %v1129
        %s1134 = sld [smem:[#allocation3 + $0x4a]]
        %v1135 = vstv %s1134
        %v1136 = vmul.f32 %v1135, %v1110
        %v1137 = vmul.f32 %v1135, %v1111
        %v1138 = vmul.f32 %v1135, %v1112
        %v1139 = vmul.f32 %v1135, %v1113
        %v1140 = vadd.f32 %v1016, %v1136
        %v1141 = vadd.f32 %v1017, %v1137
        %v1142 = vadd.f32 %v1018, %v1138
        %v1143 = vadd.f32 %v1019, %v1139
        %s1144 = sld [smem:[#allocation3 + $0x54]]
        %v1145 = vstv %s1144
        %v1146 = vmul.f32 %v1145, %v1110
        %v1147 = vmul.f32 %v1145, %v1111
        %v1148 = vmul.f32 %v1145, %v1112
        %v1149 = vmul.f32 %v1145, %v1113
        %v1150 = vadd.f32 %v1026, %v1146
        %v1151 = vadd.f32 %v1027, %v1147
        %v1152 = vadd.f32 %v1028, %v1148
        %v1153 = vadd.f32 %v1029, %v1149
        %s1154 = sld [smem:[#allocation3 + $0x5e]]
        %v1155 = vstv %s1154
        %v1156 = vmul.f32 %v1155, %v1110
        %v1157 = vmul.f32 %v1155, %v1111
        %v1158 = vmul.f32 %v1155, %v1112
        %v1159 = vmul.f32 %v1155, %v1113
        %v1160 = vadd.f32 %v1036, %v1156
        %v1161 = vadd.f32 %v1037, %v1157
        %v1162 = vadd.f32 %v1038, %v1158
        %v1163 = vadd.f32 %v1039, %v1159
        %s1164 = sld [smem:[#allocation3 + $0x14]]
        %v1165 = vstv %s1164
        %v1166 = vmul.f32 %v1165, %v514
        %v1167 = vmul.f32 %v1165, %v517
        %v1168 = vmul.f32 %v1165, %v522
        %v1169 = vmul.f32 %v1165, %v525
        %s1170 = sld [smem:[#allocation3 + $0x15]]
        %v1171 = vstv %s1170
        %v1172 = vmul.f32 %v1171, %v528
        %v1173 = vmul.f32 %v1171, %v529
        %v1174 = vmul.f32 %v1171, %v530
        %v1175 = vmul.f32 %v1171, %v531
        %v1176 = vadd.f32 %v1166, %v1172
        %v1177 = vadd.f32 %v1167, %v1173
        %v1178 = vadd.f32 %v1168, %v1174
        %v1179 = vadd.f32 %v1169, %v1175
        %s1180 = sld [smem:[#allocation3 + $0x16]]
        %v1181 = vstv %s1180
        %v1182 = vmul.f32 %v1181, %v532
        %v1183 = vmul.f32 %v1181, %v533
        %v1184 = vmul.f32 %v1181, %v534
        %v1185 = vmul.f32 %v1181, %v535
        %v1186 = vadd.f32 %v1176, %v1182
        %v1187 = vadd.f32 %v1177, %v1183
        %v1188 = vadd.f32 %v1178, %v1184
        %v1189 = vadd.f32 %v1179, %v1185
        %s1190 = sld [smem:[#allocation3 + $0x17]]
        %v1191 = vstv %s1190
        %v1192 = vmul.f32 %v1191, %v560
        %v1193 = vmul.f32 %v1191, %v561
        %v1194 = vmul.f32 %v1191, %v562
        %v1195 = vmul.f32 %v1191, %v563
        %v1196 = vadd.f32 %v1186, %v1192
        %v1197 = vadd.f32 %v1187, %v1193
        %v1198 = vadd.f32 %v1188, %v1194
        %v1199 = vadd.f32 %v1189, %v1195
        %s1200 = sld [smem:[#allocation3 + $0x2d]]
        %v1201 = vstv %s1200
        %v1202 = vadd.f32 %v1196, %v1201
        %v1203 = vadd.f32 %v1197, %v1201
        %v1204 = vadd.f32 %v1198, %v1201
        %v1205 = vadd.f32 %v1199, %v1201
        %v1206 = vmul.f32 %v1202, 1.702
        %v1207 = vmul.f32 %v1203, 1.702
        %v1208 = vmul.f32 %v1204, 1.702
        %v1209 = vmul.f32 %v1205, 1.702
        %v1210 = vxor.u32 %v1206, 2147483648
        %v1211 = vxor.u32 %v1207, 2147483648
        %v1212 = vxor.u32 %v1208, 2147483648
        %v1213 = vxor.u32 %v1209, 2147483648
        %v1214 = vmul.f32 %v1210, 1.442695
        %v1215 = vpow.pop %v1214
        %v1216 = vmul.f32 %v1211, 1.442695
        %v1217 = vpow.pop %v1216
        %v1218 = vmul.f32 %v1212, 1.442695
        %v1219 = vpow.pop %v1218
        %v1220 = vmul.f32 %v1213, 1.442695
        %v1221 = vpow.pop %v1220
        %v1222 = vadd.f32 %v1215, 1.0
        %v1223 = vadd.f32 %v1217, 1.0
        %v1224 = vadd.f32 %v1219, 1.0
        %v1225 = vadd.f32 %v1221, 1.0
        %v1226 = vrcp.pop %v1222
        %v1227 = vmul.f32 1.0, %v1226
        %v1228 = vrcp.pop %v1223
        %v1229 = vmul.f32 1.0, %v1228
        %v1230 = vrcp.pop %v1224
        %v1231 = vmul.f32 1.0, %v1230
        %v1232 = vrcp.pop %v1225
        %v1233 = vmul.f32 1.0, %v1232
        %v1234 = vmul.f32 %v1202, %v1227
        %v1235 = vmul.f32 %v1203, %v1229
        %v1236 = vmul.f32 %v1204, %v1231
        %v1237 = vmul.f32 %v1205, %v1233
        %s1238 = sld [smem:[#allocation3 + $0x37]]
        %v1239 = vstv %s1238
        %v1240 = vmul.f32 %v1239, %v1234
        %v1241 = vmul.f32 %v1239, %v1235
        %v1242 = vmul.f32 %v1239, %v1236
        %v1243 = vmul.f32 %v1239, %v1237
        %v1244 = vadd.f32 %v1120, %v1240
        %v1245 = vadd.f32 %v1121, %v1241
        %v1246 = vadd.f32 %v1122, %v1242
        %v1247 = vadd.f32 %v1123, %v1243
        %s1248 = sld [smem:[#allocation3 + $0x41]]
        %v1249 = vstv %s1248
        %v1250 = vmul.f32 %v1249, %v1234
        %v1251 = vmul.f32 %v1249, %v1235
        %v1252 = vmul.f32 %v1249, %v1236
        %v1253 = vmul.f32 %v1249, %v1237
        %v1254 = vadd.f32 %v1130, %v1250
        %v1255 = vadd.f32 %v1131, %v1251
        %v1256 = vadd.f32 %v1132, %v1252
        %v1257 = vadd.f32 %v1133, %v1253
        %s1258 = sld [smem:[#allocation3 + $0x4b]]
        %v1259 = vstv %s1258
        %v1260 = vmul.f32 %v1259, %v1234
        %v1261 = vmul.f32 %v1259, %v1235
        %v1262 = vmul.f32 %v1259, %v1236
        %v1263 = vmul.f32 %v1259, %v1237
        %v1264 = vadd.f32 %v1140, %v1260
        %v1265 = vadd.f32 %v1141, %v1261
        %v1266 = vadd.f32 %v1142, %v1262
        %v1267 = vadd.f32 %v1143, %v1263
        %s1268 = sld [smem:[#allocation3 + $0x55]]
        %v1269 = vstv %s1268
        %v1270 = vmul.f32 %v1269, %v1234
        %v1271 = vmul.f32 %v1269, %v1235
        %v1272 = vmul.f32 %v1269, %v1236
        %v1273 = vmul.f32 %v1269, %v1237
        %v1274 = vadd.f32 %v1150, %v1270
        %v1275 = vadd.f32 %v1151, %v1271
        %v1276 = vadd.f32 %v1152, %v1272
        %v1277 = vadd.f32 %v1153, %v1273
        %s1278 = sld [smem:[#allocation3 + $0x5f]]
        %v1279 = vstv %s1278
        %v1280 = vmul.f32 %v1279, %v1234
        %v1281 = vmul.f32 %v1279, %v1235
        %v1282 = vmul.f32 %v1279, %v1236
        %v1283 = vmul.f32 %v1279, %v1237
        %v1284 = vadd.f32 %v1160, %v1280
        %v1285 = vadd.f32 %v1161, %v1281
        %v1286 = vadd.f32 %v1162, %v1282
        %v1287 = vadd.f32 %v1163, %v1283
        %s1288 = sld [smem:[#allocation3 + $0x18]]
        %v1289 = vstv %s1288
        %v1290 = vmul.f32 %v1289, %v514
        %v1291 = vmul.f32 %v1289, %v517
        %v1292 = vmul.f32 %v1289, %v522
        %v1293 = vmul.f32 %v1289, %v525
        %s1294 = sld [smem:[#allocation3 + $0x19]]
        %v1295 = vstv %s1294
        %v1296 = vmul.f32 %v1295, %v528
        %v1297 = vmul.f32 %v1295, %v529
        %v1298 = vmul.f32 %v1295, %v530
        %v1299 = vmul.f32 %v1295, %v531
        %v1300 = vadd.f32 %v1290, %v1296
        %v1301 = vadd.f32 %v1291, %v1297
        %v1302 = vadd.f32 %v1292, %v1298
        %v1303 = vadd.f32 %v1293, %v1299
        %s1304 = sld [smem:[#allocation3 + $0x1a]]
        %v1305 = vstv %s1304
        %v1306 = vmul.f32 %v1305, %v532
        %v1307 = vmul.f32 %v1305, %v533
        %v1308 = vmul.f32 %v1305, %v534
        %v1309 = vmul.f32 %v1305, %v535
        %v1310 = vadd.f32 %v1300, %v1306
        %v1311 = vadd.f32 %v1301, %v1307
        %v1312 = vadd.f32 %v1302, %v1308
        %v1313 = vadd.f32 %v1303, %v1309
        %s1314 = sld [smem:[#allocation3 + $0x1b]]
        %v1315 = vstv %s1314
        %v1316 = vmul.f32 %v1315, %v560
        %v1317 = vmul.f32 %v1315, %v561
        %v1318 = vmul.f32 %v1315, %v562
        %v1319 = vmul.f32 %v1315, %v563
        %v1320 = vadd.f32 %v1310, %v1316
        %v1321 = vadd.f32 %v1311, %v1317
        %v1322 = vadd.f32 %v1312, %v1318
        %v1323 = vadd.f32 %v1313, %v1319
        %s1324 = sld [smem:[#allocation3 + $0x2e]]
        %v1325 = vstv %s1324
        %v1326 = vadd.f32 %v1320, %v1325
        %v1327 = vadd.f32 %v1321, %v1325
        %v1328 = vadd.f32 %v1322, %v1325
        %v1329 = vadd.f32 %v1323, %v1325
        %v1330 = vmul.f32 %v1326, 1.702
        %v1331 = vmul.f32 %v1327, 1.702
        %v1332 = vmul.f32 %v1328, 1.702
        %v1333 = vmul.f32 %v1329, 1.702
        %v1334 = vxor.u32 %v1330, 2147483648
        %v1335 = vxor.u32 %v1331, 2147483648
        %v1336 = vxor.u32 %v1332, 2147483648
        %v1337 = vxor.u32 %v1333, 2147483648
        %v1338 = vmul.f32 %v1334, 1.442695
        %v1339 = vpow.pop %v1338
        %v1340 = vmul.f32 %v1335, 1.442695
        %v1341 = vpow.pop %v1340
        %v1342 = vmul.f32 %v1336, 1.442695
        %v1343 = vpow.pop %v1342
        %v1344 = vmul.f32 %v1337, 1.442695
        %v1345 = vpow.pop %v1344
        %v1346 = vadd.f32 %v1339, 1.0
        %v1347 = vadd.f32 %v1341, 1.0
        %v1348 = vadd.f32 %v1343, 1.0
        %v1349 = vadd.f32 %v1345, 1.0
        %v1350 = vrcp.pop %v1346
        %v1351 = vmul.f32 1.0, %v1350
        %v1352 = vrcp.pop %v1347
        %v1353 = vmul.f32 1.0, %v1352
        %v1354 = vrcp.pop %v1348
        %v1355 = vmul.f32 1.0, %v1354
        %v1356 = vrcp.pop %v1349
        %v1357 = vmul.f32 1.0, %v1356
        %v1358 = vmul.f32 %v1326, %v1351
        %v1359 = vmul.f32 %v1327, %v1353
        %v1360 = vmul.f32 %v1328, %v1355
        %v1361 = vmul.f32 %v1329, %v1357
        %s1362 = sld [smem:[#allocation3 + $0x38]]
        %v1363 = vstv %s1362
        %v1364 = vmul.f32 %v1363, %v1358
        %v1365 = vmul.f32 %v1363, %v1359
        %v1366 = vmul.f32 %v1363, %v1360
        %v1367 = vmul.f32 %v1363, %v1361
        %v1368 = vadd.f32 %v1244, %v1364
        %v1369 = vadd.f32 %v1245, %v1365
        %v1370 = vadd.f32 %v1246, %v1366
        %v1371 = vadd.f32 %v1247, %v1367
        %s1372 = sld [smem:[#allocation3 + $0x42]]
        %v1373 = vstv %s1372
        %v1374 = vmul.f32 %v1373, %v1358
        %v1375 = vmul.f32 %v1373, %v1359
        %v1376 = vmul.f32 %v1373, %v1360
        %v1377 = vmul.f32 %v1373, %v1361
        %v1378 = vadd.f32 %v1254, %v1374
        %v1379 = vadd.f32 %v1255, %v1375
        %v1380 = vadd.f32 %v1256, %v1376
        %v1381 = vadd.f32 %v1257, %v1377
        %s1382 = sld [smem:[#allocation3 + $0x4c]]
        %v1383 = vstv %s1382
        %v1384 = vmul.f32 %v1383, %v1358
        %v1385 = vmul.f32 %v1383, %v1359
        %v1386 = vmul.f32 %v1383, %v1360
        %v1387 = vmul.f32 %v1383, %v1361
        %v1388 = vadd.f32 %v1264, %v1384
        %v1389 = vadd.f32 %v1265, %v1385
        %v1390 = vadd.f32 %v1266, %v1386
        %v1391 = vadd.f32 %v1267, %v1387
        %s1392 = sld [smem:[#allocation3 + $0x56]]
        %v1393 = vstv %s1392
        %v1394 = vmul.f32 %v1393, %v1358
        %v1395 = vmul.f32 %v1393, %v1359
        %v1396 = vmul.f32 %v1393, %v1360
        %v1397 = vmul.f32 %v1393, %v1361
        %v1398 = vadd.f32 %v1274, %v1394
        %v1399 = vadd.f32 %v1275, %v1395
        %v1400 = vadd.f32 %v1276, %v1396
        %v1401 = vadd.f32 %v1277, %v1397
        %s1402 = sld [smem:[#allocation3 + $0x60]]
        %v1403 = vstv %s1402
        %v1404 = vmul.f32 %v1403, %v1358
        %v1405 = vmul.f32 %v1403, %v1359
        %v1406 = vmul.f32 %v1403, %v1360
        %v1407 = vmul.f32 %v1403, %v1361
        %v1408 = vadd.f32 %v1284, %v1404
        %v1409 = vadd.f32 %v1285, %v1405
        %v1410 = vadd.f32 %v1286, %v1406
        %v1411 = vadd.f32 %v1287, %v1407
        %s1412 = sld [smem:[#allocation3 + $0x1c]]
        %v1413 = vstv %s1412
        %v1414 = vmul.f32 %v1413, %v514
        %v1415 = vmul.f32 %v1413, %v517
        %v1416 = vmul.f32 %v1413, %v522
        %v1417 = vmul.f32 %v1413, %v525
        %s1418 = sld [smem:[#allocation3 + $0x1d]]
        %v1419 = vstv %s1418
        %v1420 = vmul.f32 %v1419, %v528
        %v1421 = vmul.f32 %v1419, %v529
        %v1422 = vmul.f32 %v1419, %v530
        %v1423 = vmul.f32 %v1419, %v531
        %v1424 = vadd.f32 %v1414, %v1420
        %v1425 = vadd.f32 %v1415, %v1421
        %v1426 = vadd.f32 %v1416, %v1422
        %v1427 = vadd.f32 %v1417, %v1423
        %s1428 = sld [smem:[#allocation3 + $0x1e]]
        %v1429 = vstv %s1428
        %v1430 = vmul.f32 %v1429, %v532
        %v1431 = vmul.f32 %v1429, %v533
        %v1432 = vmul.f32 %v1429, %v534
        %v1433 = vmul.f32 %v1429, %v535
        %v1434 = vadd.f32 %v1424, %v1430
        %v1435 = vadd.f32 %v1425, %v1431
        %v1436 = vadd.f32 %v1426, %v1432
        %v1437 = vadd.f32 %v1427, %v1433
        %s1438 = sld [smem:[#allocation3 + $0x1f]]
        %v1439 = vstv %s1438
        %v1440 = vmul.f32 %v1439, %v560
        %v1441 = vmul.f32 %v1439, %v561
        %v1442 = vmul.f32 %v1439, %v562
        %v1443 = vmul.f32 %v1439, %v563
        %v1444 = vadd.f32 %v1434, %v1440
        %v1445 = vadd.f32 %v1435, %v1441
        %v1446 = vadd.f32 %v1436, %v1442
        %v1447 = vadd.f32 %v1437, %v1443
        %s1448 = sld [smem:[#allocation3 + $0x2f]]
        %v1449 = vstv %s1448
        %v1450 = vadd.f32 %v1444, %v1449
        %v1451 = vadd.f32 %v1445, %v1449
        %v1452 = vadd.f32 %v1446, %v1449
        %v1453 = vadd.f32 %v1447, %v1449
        %v1454 = vmul.f32 %v1450, 1.702
        %v1455 = vmul.f32 %v1451, 1.702
        %v1456 = vmul.f32 %v1452, 1.702
        %v1457 = vmul.f32 %v1453, 1.702
        %v1458 = vxor.u32 %v1454, 2147483648
        %v1459 = vxor.u32 %v1455, 2147483648
        %v1460 = vxor.u32 %v1456, 2147483648
        %v1461 = vxor.u32 %v1457, 2147483648
        %v1462 = vmul.f32 %v1458, 1.442695
        %v1463 = vpow.pop %v1462
        %v1464 = vmul.f32 %v1459, 1.442695
        %v1465 = vpow.pop %v1464
        %v1466 = vmul.f32 %v1460, 1.442695
        %v1467 = vpow.pop %v1466
        %v1468 = vmul.f32 %v1461, 1.442695
        %v1469 = vpow.pop %v1468
        %v1470 = vadd.f32 %v1463, 1.0
        %v1471 = vadd.f32 %v1465, 1.0
        %v1472 = vadd.f32 %v1467, 1.0
        %v1473 = vadd.f32 %v1469, 1.0
        %v1474 = vrcp.pop %v1470
        %v1475 = vmul.f32 1.0, %v1474
        %v1476 = vrcp.pop %v1471
        %v1477 = vmul.f32 1.0, %v1476
        %v1478 = vrcp.pop %v1472
        %v1479 = vmul.f32 1.0, %v1478
        %v1480 = vrcp.pop %v1473
        %v1481 = vmul.f32 1.0, %v1480
        %v1482 = vmul.f32 %v1450, %v1475
        %v1483 = vmul.f32 %v1451, %v1477
        %v1484 = vmul.f32 %v1452, %v1479
        %v1485 = vmul.f32 %v1453, %v1481
        %s1486 = sld [smem:[#allocation3 + $0x39]]
        %v1487 = vstv %s1486
        %v1488 = vmul.f32 %v1487, %v1482
        %v1489 = vmul.f32 %v1487, %v1483
        %v1490 = vmul.f32 %v1487, %v1484
        %v1491 = vmul.f32 %v1487, %v1485
        %v1492 = vadd.f32 %v1368, %v1488
        %v1493 = vadd.f32 %v1369, %v1489
        %v1494 = vadd.f32 %v1370, %v1490
        %v1495 = vadd.f32 %v1371, %v1491
        %s1496 = sld [smem:[#allocation3 + $0x43]]
        %v1497 = vstv %s1496
        %v1498 = vmul.f32 %v1497, %v1482
        %v1499 = vmul.f32 %v1497, %v1483
        %v1500 = vmul.f32 %v1497, %v1484
        %v1501 = vmul.f32 %v1497, %v1485
        %v1502 = vadd.f32 %v1378, %v1498
        %v1503 = vadd.f32 %v1379, %v1499
        %v1504 = vadd.f32 %v1380, %v1500
        %v1505 = vadd.f32 %v1381, %v1501
        %s1506 = sld [smem:[#allocation3 + $0x4d]]
        %v1507 = vstv %s1506
        %v1508 = vmul.f32 %v1507, %v1482
        %v1509 = vmul.f32 %v1507, %v1483
        %v1510 = vmul.f32 %v1507, %v1484
        %v1511 = vmul.f32 %v1507, %v1485
        %v1512 = vadd.f32 %v1388, %v1508
        %v1513 = vadd.f32 %v1389, %v1509
        %v1514 = vadd.f32 %v1390, %v1510
        %v1515 = vadd.f32 %v1391, %v1511
        %s1516 = sld [smem:[#allocation3 + $0x57]]
        %v1517 = vstv %s1516
        %v1518 = vmul.f32 %v1517, %v1482
        %v1519 = vmul.f32 %v1517, %v1483
        %v1520 = vmul.f32 %v1517, %v1484
        %v1521 = vmul.f32 %v1517, %v1485
        %v1522 = vadd.f32 %v1398, %v1518
        %v1523 = vadd.f32 %v1399, %v1519
        %v1524 = vadd.f32 %v1400, %v1520
        %v1525 = vadd.f32 %v1401, %v1521
        %s1526 = sld [smem:[#allocation3 + $0x61]]
        %v1527 = vstv %s1526
        %v1528 = vmul.f32 %v1527, %v1482
        %v1529 = vmul.f32 %v1527, %v1483
        %v1530 = vmul.f32 %v1527, %v1484
        %v1531 = vmul.f32 %v1527, %v1485
        %v1532 = vadd.f32 %v1408, %v1528
        %v1533 = vadd.f32 %v1409, %v1529
        %v1534 = vadd.f32 %v1410, %v1530
        %v1535 = vadd.f32 %v1411, %v1531
        %s1536 = sld [smem:[#allocation3 + $0x20]]
        %v1537 = vstv %s1536
        %v1538 = vmul.f32 %v1537, %v514
        %v1539 = vmul.f32 %v1537, %v517
        %v1540 = vmul.f32 %v1537, %v522
        %v1541 = vmul.f32 %v1537, %v525
        %s1542 = sld [smem:[#allocation3 + $0x21]]
        %v1543 = vstv %s1542
        %v1544 = vmul.f32 %v1543, %v528
        %v1545 = vmul.f32 %v1543, %v529
        %v1546 = vmul.f32 %v1543, %v530
        %v1547 = vmul.f32 %v1543, %v531
        %v1548 = vadd.f32 %v1538, %v1544
        %v1549 = vadd.f32 %v1539, %v1545
        %v1550 = vadd.f32 %v1540, %v1546
        %v1551 = vadd.f32 %v1541, %v1547
        %s1552 = sld [smem:[#allocation3 + $0x22]]
        %v1553 = vstv %s1552
        %v1554 = vmul.f32 %v1553, %v532
        %v1555 = vmul.f32 %v1553, %v533
        %v1556 = vmul.f32 %v1553, %v534
        %v1557 = vmul.f32 %v1553, %v535
        %v1558 = vadd.f32 %v1548, %v1554
        %v1559 = vadd.f32 %v1549, %v1555
        %v1560 = vadd.f32 %v1550, %v1556
        %v1561 = vadd.f32 %v1551, %v1557
        %s1562 = sld [smem:[#allocation3 + $0x23]]
        %v1563 = vstv %s1562
        %v1564 = vmul.f32 %v1563, %v560
        %v1565 = vmul.f32 %v1563, %v561
        %v1566 = vmul.f32 %v1563, %v562
        %v1567 = vmul.f32 %v1563, %v563
        %v1568 = vadd.f32 %v1558, %v1564
        %v1569 = vadd.f32 %v1559, %v1565
        %v1570 = vadd.f32 %v1560, %v1566
        %v1571 = vadd.f32 %v1561, %v1567
        %s1572 = sld [smem:[#allocation3 + $0x30]]
        %v1573 = vstv %s1572
        %v1574 = vadd.f32 %v1568, %v1573
        %v1575 = vadd.f32 %v1569, %v1573
        %v1576 = vadd.f32 %v1570, %v1573
        %v1577 = vadd.f32 %v1571, %v1573
        %v1578 = vmul.f32 %v1574, 1.702
        %v1579 = vmul.f32 %v1575, 1.702
        %v1580 = vmul.f32 %v1576, 1.702
        %v1581 = vmul.f32 %v1577, 1.702
        %v1582 = vxor.u32 %v1578, 2147483648
        %v1583 = vxor.u32 %v1579, 2147483648
        %v1584 = vxor.u32 %v1580, 2147483648
        %v1585 = vxor.u32 %v1581, 2147483648
        %v1586 = vmul.f32 %v1582, 1.442695
        %v1587 = vpow.pop %v1586
        %v1588 = vmul.f32 %v1583, 1.442695
        %v1589 = vpow.pop %v1588
        %v1590 = vmul.f32 %v1584, 1.442695
        %v1591 = vpow.pop %v1590
        %v1592 = vmul.f32 %v1585, 1.442695
        %v1593 = vpow.pop %v1592
        %v1594 = vadd.f32 %v1587, 1.0
        %v1595 = vadd.f32 %v1589, 1.0
        %v1596 = vadd.f32 %v1591, 1.0
        %v1597 = vadd.f32 %v1593, 1.0
        %v1598 = vrcp.pop %v1594
        %v1599 = vmul.f32 1.0, %v1598
        %v1600 = vrcp.pop %v1595
        %v1601 = vmul.f32 1.0, %v1600
        %v1602 = vrcp.pop %v1596
        %v1603 = vmul.f32 1.0, %v1602
        %v1604 = vrcp.pop %v1597
        %v1605 = vmul.f32 1.0, %v1604
        %v1606 = vmul.f32 %v1574, %v1599
        %v1607 = vmul.f32 %v1575, %v1601
        %v1608 = vmul.f32 %v1576, %v1603
        %v1609 = vmul.f32 %v1577, %v1605
        %s1610 = sld [smem:[#allocation3 + $0x3a]]
        %v1611 = vstv %s1610
        %v1612 = vmul.f32 %v1611, %v1606
        %v1613 = vmul.f32 %v1611, %v1607
        %v1614 = vmul.f32 %v1611, %v1608
        %v1615 = vmul.f32 %v1611, %v1609
        %v1616 = vadd.f32 %v1492, %v1612
        %v1617 = vadd.f32 %v1493, %v1613
        %v1618 = vadd.f32 %v1494, %v1614
        %v1619 = vadd.f32 %v1495, %v1615
        %s1620 = sld [smem:[#allocation3 + $0x44]]
        %v1621 = vstv %s1620
        %v1622 = vmul.f32 %v1621, %v1606
        %v1623 = vmul.f32 %v1621, %v1607
        %v1624 = vmul.f32 %v1621, %v1608
        %v1625 = vmul.f32 %v1621, %v1609
        %v1626 = vadd.f32 %v1502, %v1622
        %v1627 = vadd.f32 %v1503, %v1623
        %v1628 = vadd.f32 %v1504, %v1624
        %v1629 = vadd.f32 %v1505, %v1625
        %s1630 = sld [smem:[#allocation3 + $0x4e]]
        %v1631 = vstv %s1630
        %v1632 = vmul.f32 %v1631, %v1606
        %v1633 = vmul.f32 %v1631, %v1607
        %v1634 = vmul.f32 %v1631, %v1608
        %v1635 = vmul.f32 %v1631, %v1609
        %v1636 = vadd.f32 %v1512, %v1632
        %v1637 = vadd.f32 %v1513, %v1633
        %v1638 = vadd.f32 %v1514, %v1634
        %v1639 = vadd.f32 %v1515, %v1635
        %s1640 = sld [smem:[#allocation3 + $0x58]]
        %v1641 = vstv %s1640
        %v1642 = vmul.f32 %v1641, %v1606
        %v1643 = vmul.f32 %v1641, %v1607
        %v1644 = vmul.f32 %v1641, %v1608
        %v1645 = vmul.f32 %v1641, %v1609
        %v1646 = vadd.f32 %v1522, %v1642
        %v1647 = vadd.f32 %v1523, %v1643
        %v1648 = vadd.f32 %v1524, %v1644
        %v1649 = vadd.f32 %v1525, %v1645
        %s1650 = sld [smem:[#allocation3 + $0x62]]
        %v1651 = vstv %s1650
        %v1652 = vmul.f32 %v1651, %v1606
        %v1653 = vmul.f32 %v1651, %v1607
        %v1654 = vmul.f32 %v1651, %v1608
        %v1655 = vmul.f32 %v1651, %v1609
        %v1656 = vadd.f32 %v1532, %v1652
        %v1657 = vadd.f32 %v1533, %v1653
        %v1658 = vadd.f32 %v1534, %v1654
        %v1659 = vadd.f32 %v1535, %v1655
        %s1660 = sld [smem:[#allocation3 + $0x24]]
        %v1661 = vstv %s1660
        %v1662 = vmul.f32 %v1661, %v514
        %v1663 = vmul.f32 %v1661, %v517
        %v1664 = vmul.f32 %v1661, %v522
        %v1665 = vmul.f32 %v1661, %v525
        %s1666 = sld [smem:[#allocation3 + $0x25]]
        %v1667 = vstv %s1666
        %v1668 = vmul.f32 %v1667, %v528
        %v1669 = vmul.f32 %v1667, %v529
        %v1670 = vmul.f32 %v1667, %v530
        %v1671 = vmul.f32 %v1667, %v531
        %v1672 = vadd.f32 %v1662, %v1668
        %v1673 = vadd.f32 %v1663, %v1669
        %v1674 = vadd.f32 %v1664, %v1670
        %v1675 = vadd.f32 %v1665, %v1671
        %s1676 = sld [smem:[#allocation3 + $0x26]]
        %v1677 = vstv %s1676
        %v1678 = vmul.f32 %v1677, %v532
        %v1679 = vmul.f32 %v1677, %v533
        %v1680 = vmul.f32 %v1677, %v534
        %v1681 = vmul.f32 %v1677, %v535
        %v1682 = vadd.f32 %v1672, %v1678
        %v1683 = vadd.f32 %v1673, %v1679
        %v1684 = vadd.f32 %v1674, %v1680
        %v1685 = vadd.f32 %v1675, %v1681
        %s1686 = sld [smem:[#allocation3 + $0x27]]
        %v1687 = vstv %s1686
        %v1688 = vmul.f32 %v1687, %v560
        %v1689 = vmul.f32 %v1687, %v561
        %v1690 = vmul.f32 %v1687, %v562
        %v1691 = vmul.f32 %v1687, %v563
        %v1692 = vadd.f32 %v1682, %v1688
        %v1693 = vadd.f32 %v1683, %v1689
        %v1694 = vadd.f32 %v1684, %v1690
        %v1695 = vadd.f32 %v1685, %v1691
        %s1696 = sld [smem:[#allocation3 + $0x31]]
        %v1697 = vstv %s1696
        %v1698 = vadd.f32 %v1692, %v1697
        %v1699 = vadd.f32 %v1693, %v1697
        %v1700 = vadd.f32 %v1694, %v1697
        %v1701 = vadd.f32 %v1695, %v1697
        %v1702 = vmul.f32 %v1698, 1.702
        %v1703 = vmul.f32 %v1699, 1.702
        %v1704 = vmul.f32 %v1700, 1.702
        %v1705 = vmul.f32 %v1701, 1.702
        %v1706 = vxor.u32 %v1702, 2147483648
        %v1707 = vxor.u32 %v1703, 2147483648
        %v1708 = vxor.u32 %v1704, 2147483648
        %v1709 = vxor.u32 %v1705, 2147483648
        %v1710 = vmul.f32 %v1706, 1.442695
        %v1711 = vpow.pop %v1710
        %v1712 = vmul.f32 %v1707, 1.442695
        %v1713 = vpow.pop %v1712
        %v1714 = vmul.f32 %v1708, 1.442695
        %v1715 = vpow.pop %v1714
        %v1716 = vmul.f32 %v1709, 1.442695
        %v1717 = vpow.pop %v1716
        %v1718 = vadd.f32 %v1711, 1.0
        %v1719 = vadd.f32 %v1713, 1.0
        %v1720 = vadd.f32 %v1715, 1.0
        %v1721 = vadd.f32 %v1717, 1.0
        %v1722 = vrcp.pop %v1718
        %v1723 = vmul.f32 1.0, %v1722
        %v1724 = vrcp.pop %v1719
        %v1725 = vmul.f32 1.0, %v1724
        %v1726 = vrcp.pop %v1720
        %v1727 = vmul.f32 1.0, %v1726
        %v1728 = vrcp.pop %v1721
        %v1729 = vmul.f32 1.0, %v1728
        %v1730 = vmul.f32 %v1698, %v1723
        %v1731 = vmul.f32 %v1699, %v1725
        %v1732 = vmul.f32 %v1700, %v1727
        %v1733 = vmul.f32 %v1701, %v1729
        %s1734 = sld [smem:[#allocation3 + $0x3b]]
        %v1735 = vstv %s1734
        %v1736 = vmul.f32 %v1735, %v1730
        %v1737 = vmul.f32 %v1735, %v1731
        %v1738 = vmul.f32 %v1735, %v1732
        %v1739 = vmul.f32 %v1735, %v1733
        %v1740 = vadd.f32 %v1616, %v1736
        %v1741 = vadd.f32 %v1617, %v1737
        %v1742 = vadd.f32 %v1618, %v1738
        %v1743 = vadd.f32 %v1619, %v1739
        %s1744 = sld [smem:[#allocation3 + $0x45]]
        %v1745 = vstv %s1744
        %v1746 = vmul.f32 %v1745, %v1730
        %v1747 = vmul.f32 %v1745, %v1731
        %v1748 = vmul.f32 %v1745, %v1732
        %v1749 = vmul.f32 %v1745, %v1733
        %v1750 = vadd.f32 %v1626, %v1746
        %v1751 = vadd.f32 %v1627, %v1747
        %v1752 = vadd.f32 %v1628, %v1748
        %v1753 = vadd.f32 %v1629, %v1749
        %s1754 = sld [smem:[#allocation3 + $0x4f]]
        %v1755 = vstv %s1754
        %v1756 = vmul.f32 %v1755, %v1730
        %v1757 = vmul.f32 %v1755, %v1731
        %v1758 = vmul.f32 %v1755, %v1732
        %v1759 = vmul.f32 %v1755, %v1733
        %v1760 = vadd.f32 %v1636, %v1756
        %v1761 = vadd.f32 %v1637, %v1757
        %v1762 = vadd.f32 %v1638, %v1758
        %v1763 = vadd.f32 %v1639, %v1759
        %s1764 = sld [smem:[#allocation3 + $0x59]]
        %v1765 = vstv %s1764
        %v1766 = vmul.f32 %v1765, %v1730
        %v1767 = vmul.f32 %v1765, %v1731
        %v1768 = vmul.f32 %v1765, %v1732
        %v1769 = vmul.f32 %v1765, %v1733
        %v1770 = vadd.f32 %v1646, %v1766
        %v1771 = vadd.f32 %v1647, %v1767
        %v1772 = vadd.f32 %v1648, %v1768
        %v1773 = vadd.f32 %v1649, %v1769
        %s1774 = sld [smem:[#allocation3 + $0x63]]
        %v1775 = vstv %s1774
        %v1776 = vmul.f32 %v1775, %v1730
        %v1777 = vmul.f32 %v1775, %v1731
        %v1778 = vmul.f32 %v1775, %v1732
        %v1779 = vmul.f32 %v1775, %v1733
        %v1780 = vadd.f32 %v1656, %v1776
        %v1781 = vadd.f32 %v1657, %v1777
        %v1782 = vadd.f32 %v1658, %v1778
        %v1783 = vadd.f32 %v1659, %v1779
        %s1784 = sld [smem:[#allocation3 + $0x64]]
        %v1785 = vstv %s1784
        %v1786 = vadd.f32 %v1740, %v1785
        %v1787 = vadd.f32 %v1741, %v1785
        %v1788 = vadd.f32 %v1742, %v1785
        %v1789 = vadd.f32 %v1743, %v1785
        %v1790 = vmul.f32 %v1786, 1.702
        %v1791 = vmul.f32 %v1787, 1.702
        %v1792 = vmul.f32 %v1788, 1.702
        %v1793 = vmul.f32 %v1789, 1.702
        %v1794 = vxor.u32 %v1790, 2147483648
        %v1795 = vxor.u32 %v1791, 2147483648
        %v1796 = vxor.u32 %v1792, 2147483648
        %v1797 = vxor.u32 %v1793, 2147483648
        %v1798 = vmul.f32 %v1794, 1.442695
        %v1799 = vpow.pop %v1798
        %v1800 = vmul.f32 %v1795, 1.442695
        %v1801 = vpow.pop %v1800
        %v1802 = vmul.f32 %v1796, 1.442695
        %v1803 = vpow.pop %v1802
        %v1804 = vmul.f32 %v1797, 1.442695
        %v1805 = vpow.pop %v1804
        %v1806 = vadd.f32 %v1799, 1.0
        %v1807 = vadd.f32 %v1801, 1.0
        %v1808 = vadd.f32 %v1803, 1.0
        %v1809 = vadd.f32 %v1805, 1.0
        %v1810 = vrcp.pop %v1806
        %v1811 = vmul.f32 1.0, %v1810
        %v1812 = vrcp.pop %v1807
        %v1813 = vmul.f32 1.0, %v1812
        %v1814 = vrcp.pop %v1808
        %v1815 = vmul.f32 1.0, %v1814
        %v1816 = vrcp.pop %v1809
        %v1817 = vmul.f32 1.0, %v1816
        %v1818 = vmul.f32 %v1786, %v1811
        %v1819 = vmul.f32 %v1787, %v1813
        %v1820 = vmul.f32 %v1788, %v1815
        %v1821 = vmul.f32 %v1789, %v1817
        %s1822 = sld [smem:[#allocation3 + $0x65]]
        %v1823 = vstv %s1822
        %v1824 = vadd.f32 %v1750, %v1823
        %v1825 = vadd.f32 %v1751, %v1823
        %v1826 = vadd.f32 %v1752, %v1823
        %v1827 = vadd.f32 %v1753, %v1823
        %v1828 = vmul.f32 %v1824, 1.702
        %v1829 = vmul.f32 %v1825, 1.702
        %v1830 = vmul.f32 %v1826, 1.702
        %v1831 = vmul.f32 %v1827, 1.702
        %v1832 = vxor.u32 %v1828, 2147483648
        %v1833 = vxor.u32 %v1829, 2147483648
        %v1834 = vxor.u32 %v1830, 2147483648
        %v1835 = vxor.u32 %v1831, 2147483648
        %v1836 = vmul.f32 %v1832, 1.442695
        %v1837 = vpow.pop %v1836
        %v1838 = vmul.f32 %v1833, 1.442695
        %v1839 = vpow.pop %v1838
        %v1840 = vmul.f32 %v1834, 1.442695
        %v1841 = vpow.pop %v1840
        %v1842 = vmul.f32 %v1835, 1.442695
        %v1843 = vpow.pop %v1842
        %v1844 = vadd.f32 %v1837, 1.0
        %v1845 = vadd.f32 %v1839, 1.0
        %v1846 = vadd.f32 %v1841, 1.0
        %v1847 = vadd.f32 %v1843, 1.0
        %v1848 = vrcp.pop %v1844
        %v1849 = vmul.f32 1.0, %v1848
        %v1850 = vrcp.pop %v1845
        %v1851 = vmul.f32 1.0, %v1850
        %v1852 = vrcp.pop %v1846
        %v1853 = vmul.f32 1.0, %v1852
        %v1854 = vrcp.pop %v1847
        %v1855 = vmul.f32 1.0, %v1854
        %v1856 = vmul.f32 %v1824, %v1849
        %v1857 = vmul.f32 %v1825, %v1851
        %v1858 = vmul.f32 %v1826, %v1853
        %v1859 = vmul.f32 %v1827, %v1855
        %s1860 = sld [smem:[#allocation3 + $0x66]]
        %v1861 = vstv %s1860
        %v1862 = vadd.f32 %v1760, %v1861
        %v1863 = vadd.f32 %v1761, %v1861
        %v1864 = vadd.f32 %v1762, %v1861
        %v1865 = vadd.f32 %v1763, %v1861
        %v1866 = vmul.f32 %v1862, 1.702
        %v1867 = vmul.f32 %v1863, 1.702
        %v1868 = vmul.f32 %v1864, 1.702
        %v1869 = vmul.f32 %v1865, 1.702
        %v1870 = vxor.u32 %v1866, 2147483648
        %v1871 = vxor.u32 %v1867, 2147483648
        %v1872 = vxor.u32 %v1868, 2147483648
        %v1873 = vxor.u32 %v1869, 2147483648
        %v1874 = vmul.f32 %v1870, 1.442695
        %v1875 = vpow.pop %v1874
        %v1876 = vmul.f32 %v1871, 1.442695
        %v1877 = vpow.pop %v1876
        %v1878 = vmul.f32 %v1872, 1.442695
        %v1879 = vpow.pop %v1878
        %v1880 = vmul.f32 %v1873, 1.442695
        %v1881 = vpow.pop %v1880
        %v1882 = vadd.f32 %v1875, 1.0
        %v1883 = vadd.f32 %v1877, 1.0
        %v1884 = vadd.f32 %v1879, 1.0
        %v1885 = vadd.f32 %v1881, 1.0
        %v1886 = vrcp.pop %v1882
        %v1887 = vmul.f32 1.0, %v1886
        %v1888 = vrcp.pop %v1883
        %v1889 = vmul.f32 1.0, %v1888
        %v1890 = vrcp.pop %v1884
        %v1891 = vmul.f32 1.0, %v1890
        %v1892 = vrcp.pop %v1885
        %v1893 = vmul.f32 1.0, %v1892
        %v1894 = vmul.f32 %v1862, %v1887
        %v1895 = vmul.f32 %v1863, %v1889
        %v1896 = vmul.f32 %v1864, %v1891
        %v1897 = vmul.f32 %v1865, %v1893
        %s1898 = sld [smem:[#allocation3 + $0x67]]
        %v1899 = vstv %s1898
        %v1900 = vadd.f32 %v1770, %v1899
        %v1901 = vadd.f32 %v1771, %v1899
        %v1902 = vadd.f32 %v1772, %v1899
        %v1903 = vadd.f32 %v1773, %v1899
        %v1904 = vmul.f32 %v1900, 1.702
        %v1905 = vmul.f32 %v1901, 1.702
        %v1906 = vmul.f32 %v1902, 1.702
        %v1907 = vmul.f32 %v1903, 1.702
        %v1908 = vxor.u32 %v1904, 2147483648
        %v1909 = vxor.u32 %v1905, 2147483648
        %v1910 = vxor.u32 %v1906, 2147483648
        %v1911 = vxor.u32 %v1907, 2147483648
        %v1912 = vmul.f32 %v1908, 1.442695
        %v1913 = vpow.pop %v1912
        %v1914 = vmul.f32 %v1909, 1.442695
        %v1915 = vpow.pop %v1914
        %v1916 = vmul.f32 %v1910, 1.442695
        %v1917 = vpow.pop %v1916
        %v1918 = vmul.f32 %v1911, 1.442695
        %v1919 = vpow.pop %v1918
        %v1920 = vadd.f32 %v1913, 1.0
        %v1921 = vadd.f32 %v1915, 1.0
        %v1922 = vadd.f32 %v1917, 1.0
        %v1923 = vadd.f32 %v1919, 1.0
        %v1924 = vrcp.pop %v1920
        %v1925 = vmul.f32 1.0, %v1924
        %v1926 = vrcp.pop %v1921
        %v1927 = vmul.f32 1.0, %v1926
        %v1928 = vrcp.pop %v1922
        %v1929 = vmul.f32 1.0, %v1928
        %v1930 = vrcp.pop %v1923
        %v1931 = vmul.f32 1.0, %v1930
        %v1932 = vmul.f32 %v1900, %v1925
        %v1933 = vmul.f32 %v1901, %v1927
        %v1934 = vmul.f32 %v1902, %v1929
        %v1935 = vmul.f32 %v1903, %v1931
        %s1936 = sld [smem:[#allocation3 + $0x68]]
        %v1937 = vstv %s1936
        %v1938 = vadd.f32 %v1780, %v1937
        %v1939 = vadd.f32 %v1781, %v1937
        %v1940 = vadd.f32 %v1782, %v1937
        %v1941 = vadd.f32 %v1783, %v1937
        %v1942 = vmul.f32 %v1938, 1.702
        %v1943 = vmul.f32 %v1939, 1.702
        %v1944 = vmul.f32 %v1940, 1.702
        %v1945 = vmul.f32 %v1941, 1.702
        %v1946 = vxor.u32 %v1942, 2147483648
        %v1947 = vxor.u32 %v1943, 2147483648
        %v1948 = vxor.u32 %v1944, 2147483648
        %v1949 = vxor.u32 %v1945, 2147483648
        %v1950 = vmul.f32 %v1946, 1.442695
        %v1951 = vpow.pop %v1950
        %v1952 = vmul.f32 %v1947, 1.442695
        %v1953 = vpow.pop %v1952
        %v1954 = vmul.f32 %v1948, 1.442695
        %v1955 = vpow.pop %v1954
        %v1956 = vmul.f32 %v1949, 1.442695
        %v1957 = vpow.pop %v1956
        %v1958 = vadd.f32 %v1951, 1.0
        %v1959 = vadd.f32 %v1953, 1.0
        %v1960 = vadd.f32 %v1955, 1.0
        %v1961 = vadd.f32 %v1957, 1.0
        %v1962 = vrcp.pop %v1958
        %v1963 = vmul.f32 1.0, %v1962
        %v1964 = vrcp.pop %v1959
        %v1965 = vmul.f32 1.0, %v1964
        %v1966 = vrcp.pop %v1960
        %v1967 = vmul.f32 1.0, %v1966
        %v1968 = vrcp.pop %v1961
        %v1969 = vmul.f32 1.0, %v1968
        %v1970 = vmul.f32 %v1938, %v1963
        %v1971 = vmul.f32 %v1939, %v1965
        %v1972 = vmul.f32 %v1940, %v1967
        %v1973 = vmul.f32 %v1941, %v1969
        %vm1974 = vcmask 654336
        %1975 = vst.msk [vmem:[#allocation2] sm:$0xff] %vm1974, %v1818
        %1976 = vst.msk [vmem:[#allocation2 + $0x8] sm:$0xff] %vm1974, %v1819
        %1977 = vst.msk [vmem:[#allocation2 + $0x10] sm:$0xff] %vm1974, %v1820
        %1978 = vst.msk [vmem:[#allocation2 + $0x18] sm:$0xff] %vm1974, %v1821
        %1983 = vrot.lane.b32.xlu0 %v1818, 48
        %v1984 = vpop.permute.xlu0 %1983
        %1985 = vrot.lane.b32.xlu0 %v1819, 48
        %v1986 = vpop.permute.xlu0 %1985
        %1987 = vrot.lane.b32.xlu0 %v1820, 48
        %v1988 = vpop.permute.xlu0 %1987
        %1989 = vrot.lane.b32.xlu0 %v1821, 48
        %v1990 = vpop.permute.xlu0 %1989
        %s1995 = scalar_lea.vmem [#allocation2], 32
        %vm1996 = vcmask 392192
        %1997 = vst.msk [vmem:[%s1995] sm:$0xff] %vm1996, %v1984
        %1998 = vst.msk [vmem:[%s1995 + $0x8] sm:$0xff] %vm1996, %v1986
        %1999 = vst.msk [vmem:[%s1995 + $0x10] sm:$0xff] %vm1996, %v1988
        %2000 = vst.msk [vmem:[%s1995 + $0x18] sm:$0xff] %vm1996, %v1990
        %2005 = vrot.lane.b32.xlu0 %v1856, 48
        %v2006 = vpop.permute.xlu0 %2005
        %2007 = vrot.lane.b32.xlu0 %v1857, 48
        %v2008 = vpop.permute.xlu0 %2007
        %2009 = vrot.lane.b32.xlu0 %v1858, 48
        %v2010 = vpop.permute.xlu0 %2009
        %2011 = vrot.lane.b32.xlu0 %v1859, 48
        %v2012 = vpop.permute.xlu0 %2011
        %vm2017 = vcmask 654720
        %2018 = vst.msk [vmem:[%s1995] sm:$0xff] %vm2017, %v2006
        %2019 = vst.msk [vmem:[%s1995 + $0x8] sm:$0xff] %vm2017, %v2008
        %2020 = vst.msk [vmem:[%s1995 + $0x10] sm:$0xff] %vm2017, %v2010
        %2021 = vst.msk [vmem:[%s1995 + $0x18] sm:$0xff] %vm2017, %v2012
        %2022 = vrot.lane.b32.xlu0 %v1856, 96
        %v2023 = vpop.permute.xlu0 %2022
        %2024 = vrot.lane.b32.xlu0 %v1857, 96
        %v2025 = vpop.permute.xlu0 %2024
        %2026 = vrot.lane.b32.xlu0 %v1858, 96
        %v2027 = vpop.permute.xlu0 %2026
        %2028 = vrot.lane.b32.xlu0 %v1859, 96
        %v2029 = vpop.permute.xlu0 %2028
        %s2034 = scalar_lea.vmem [#allocation2], 64
        %2035 = vst.msk [vmem:[%s2034] sm:$0xff] %vm1974, %v2023
        %2036 = vst.msk [vmem:[%s2034 + $0x8] sm:$0xff] %vm1974, %v2025
        %2037 = vst.msk [vmem:[%s2034 + $0x10] sm:$0xff] %vm1974, %v2027
        %2038 = vst.msk [vmem:[%s2034 + $0x18] sm:$0xff] %vm1974, %v2029
        %2039 = vrot.lane.b32.xlu0 %v1856, 16
        %v2040 = vpop.permute.xlu0 %2039
        %2041 = vrot.lane.b32.xlu0 %v1857, 16
        %v2042 = vpop.permute.xlu0 %2041
        %2043 = vrot.lane.b32.xlu0 %v1858, 16
        %v2044 = vpop.permute.xlu0 %2043
        %2045 = vrot.lane.b32.xlu0 %v1859, 16
        %v2046 = vpop.permute.xlu0 %2045
        %s2051 = scalar_lea.vmem [#allocation2], 96
        %vm2052 = vcmask 130048
        %2053 = vst.msk [vmem:[%s2051] sm:$0xff] %vm2052, %v2040
        %2054 = vst.msk [vmem:[%s2051 + $0x8] sm:$0xff] %vm2052, %v2042
        %2055 = vst.msk [vmem:[%s2051 + $0x10] sm:$0xff] %vm2052, %v2044
        %2056 = vst.msk [vmem:[%s2051 + $0x18] sm:$0xff] %vm2052, %v2046
        %2061 = vrot.lane.b32.xlu0 %v1894, 16
        %v2062 = vpop.permute.xlu0 %2061
        %2063 = vrot.lane.b32.xlu0 %v1895, 16
        %v2064 = vpop.permute.xlu0 %2063
        %2065 = vrot.lane.b32.xlu0 %v1896, 16
        %v2066 = vpop.permute.xlu0 %2065
        %2067 = vrot.lane.b32.xlu0 %v1897, 16
        %v2068 = vpop.permute.xlu0 %2067
        %vm2073 = vcmask 654464
        %2074 = vst.msk [vmem:[%s2051] sm:$0xff] %vm2073, %v2062
        %2075 = vst.msk [vmem:[%s2051 + $0x8] sm:$0xff] %vm2073, %v2064
        %2076 = vst.msk [vmem:[%s2051 + $0x10] sm:$0xff] %vm2073, %v2066
        %2077 = vst.msk [vmem:[%s2051 + $0x18] sm:$0xff] %vm2073, %v2068
        %2078 = vrot.lane.b32.xlu0 %v1894, 64
        %v2079 = vpop.permute.xlu0 %2078
        %2080 = vrot.lane.b32.xlu0 %v1895, 64
        %v2081 = vpop.permute.xlu0 %2080
        %2082 = vrot.lane.b32.xlu0 %v1896, 64
        %v2083 = vpop.permute.xlu0 %2082
        %2084 = vrot.lane.b32.xlu0 %v1897, 64
        %v2085 = vpop.permute.xlu0 %2084
        %s2090 = scalar_lea.vmem [#allocation2], 128
        %vm2091 = vcmask 523264
        %2092 = vst.msk [vmem:[%s2090] sm:$0xff] %vm2091, %v2079
        %2093 = vst.msk [vmem:[%s2090 + $0x8] sm:$0xff] %vm2091, %v2081
        %2094 = vst.msk [vmem:[%s2090 + $0x10] sm:$0xff] %vm2091, %v2083
        %2095 = vst.msk [vmem:[%s2090 + $0x18] sm:$0xff] %vm2091, %v2085
        %2100 = vrot.lane.b32.xlu0 %v1932, 64
        %v2101 = vpop.permute.xlu0 %2100
        %2102 = vrot.lane.b32.xlu0 %v1933, 64
        %v2103 = vpop.permute.xlu0 %2102
        %2104 = vrot.lane.b32.xlu0 %v1934, 64
        %v2105 = vpop.permute.xlu0 %2104
        %2106 = vrot.lane.b32.xlu0 %v1935, 64
        %v2107 = vpop.permute.xlu0 %2106
        %vm2112 = vcmask 654848
        %2113 = vst.msk [vmem:[%s2090] sm:$0xff] %vm2112, %v2101
        %2114 = vst.msk [vmem:[%s2090 + $0x8] sm:$0xff] %vm2112, %v2103
        %2115 = vst.msk [vmem:[%s2090 + $0x10] sm:$0xff] %vm2112, %v2105
        %2116 = vst.msk [vmem:[%s2090 + $0x18] sm:$0xff] %vm2112, %v2107
        %2117 = vrot.lane.b32.xlu0 %v1932, 112
        %v2118 = vpop.permute.xlu0 %2117
        %2119 = vrot.lane.b32.xlu0 %v1933, 112
        %v2120 = vpop.permute.xlu0 %2119
        %2121 = vrot.lane.b32.xlu0 %v1934, 112
        %v2122 = vpop.permute.xlu0 %2121
        %2123 = vrot.lane.b32.xlu0 %v1935, 112
        %v2124 = vpop.permute.xlu0 %2123
        %s2129 = scalar_lea.vmem [#allocation2], 160
        %2130 = vst.msk [vmem:[%s2129] sm:$0xff] %vm1974, %v2118
        %2131 = vst.msk [vmem:[%s2129 + $0x8] sm:$0xff] %vm1974, %v2120
        %2132 = vst.msk [vmem:[%s2129 + $0x10] sm:$0xff] %vm1974, %v2122
        %2133 = vst.msk [vmem:[%s2129 + $0x18] sm:$0xff] %vm1974, %v2124
        %2134 = vrot.lane.b32.xlu0 %v1932, 32
        %v2135 = vpop.permute.xlu0 %2134
        %2136 = vrot.lane.b32.xlu0 %v1933, 32
        %v2137 = vpop.permute.xlu0 %2136
        %2138 = vrot.lane.b32.xlu0 %v1934, 32
        %v2139 = vpop.permute.xlu0 %2138
        %2140 = vrot.lane.b32.xlu0 %v1935, 32
        %v2141 = vpop.permute.xlu0 %2140
        %s2146 = scalar_lea.vmem [#allocation2], 192
        %2147 = vst.msk [vmem:[%s2146] sm:$0xff] %vm472, %v2135
        %2148 = vst.msk [vmem:[%s2146 + $0x8] sm:$0xff] %vm472, %v2137
        %2149 = vst.msk [vmem:[%s2146 + $0x10] sm:$0xff] %vm472, %v2139
        %2150 = vst.msk [vmem:[%s2146 + $0x18] sm:$0xff] %vm472, %v2141
        %2155 = vrot.lane.b32.xlu0 %v1970, 32
        %v2156 = vpop.permute.xlu0 %2155
        %2157 = vrot.lane.b32.xlu0 %v1971, 32
        %v2158 = vpop.permute.xlu0 %2157
        %2159 = vrot.lane.b32.xlu0 %v1972, 32
        %v2160 = vpop.permute.xlu0 %2159
        %2161 = vrot.lane.b32.xlu0 %v1973, 32
        %v2162 = vpop.permute.xlu0 %2161
        %vm2167 = vcmask 654592
        %2168 = vst.msk [vmem:[%s2146] sm:$0xff] %vm2167, %v2156
        %2169 = vst.msk [vmem:[%s2146 + $0x8] sm:$0xff] %vm2167, %v2158
        %2170 = vst.msk [vmem:[%s2146 + $0x10] sm:$0xff] %vm2167, %v2160
        %2171 = vst.msk [vmem:[%s2146 + $0x18] sm:$0xff] %vm2167, %v2162
        %2172 = vrot.lane.b32.xlu0 %v1970, 80
        %v2173 = vpop.permute.xlu0 %2172
        %2174 = vrot.lane.b32.xlu0 %v1971, 80
        %v2175 = vpop.permute.xlu0 %2174
        %2176 = vrot.lane.b32.xlu0 %v1972, 80
        %v2177 = vpop.permute.xlu0 %2176
        %2178 = vrot.lane.b32.xlu0 %v1973, 80
        %v2179 = vpop.permute.xlu0 %2178
        %s2184 = scalar_lea.vmem [#allocation2], 224
        %2185 = vst.msk [vmem:[%s2184] sm:$0xff] %vm1974, %v2173
        %2186 = vst.msk [vmem:[%s2184 + $0x8] sm:$0xff] %vm1974, %v2175
        %2187 = vst.msk [vmem:[%s2184 + $0x10] sm:$0xff] %vm1974, %v2177
        %2188 = vst.msk [vmem:[%s2184 + $0x18] sm:$0xff] %vm1974, %v2179
        %v2189 = vld [vmem:[#allocation2] sm:$0xff]
        %v2190 = vld [vmem:[#allocation2 + $0x8] sm:$0xff]
        %v2191 = vld [vmem:[#allocation2 + $0x10] sm:$0xff]
        %v2192 = vld [vmem:[#allocation2 + $0x18] sm:$0xff]
        %v2193 = vld [vmem:[#allocation2 + $0x20] sm:$0xff]
        %v2194 = vld [vmem:[#allocation2 + $0x28] sm:$0xff]
        %v2195 = vld [vmem:[#allocation2 + $0x30] sm:$0xff]
        %v2196 = vld [vmem:[#allocation2 + $0x38] sm:$0xff]
        %v2197 = vld [vmem:[#allocation2 + $0x40] sm:$0xff]
        %v2198 = vld [vmem:[#allocation2 + $0x48] sm:$0xff]
        %v2199 = vld [vmem:[#allocation2 + $0x50] sm:$0xff]
        %v2200 = vld [vmem:[#allocation2 + $0x58] sm:$0xff]
        %v2201 = vld [vmem:[#allocation2 + $0x60] sm:$0xff]
        %v2202 = vld [vmem:[#allocation2 + $0x68] sm:$0xff]
        %v2203 = vld [vmem:[#allocation2 + $0x70] sm:$0xff]
        %v2204 = vld [vmem:[#allocation2 + $0x78] sm:$0xff]
        %v2205 = vld [vmem:[#allocation2 + $0x80] sm:$0xff]
        %v2206 = vld [vmem:[#allocation2 + $0x88] sm:$0xff]
        %v2207 = vld [vmem:[#allocation2 + $0x90] sm:$0xff]
        %v2208 = vld [vmem:[#allocation2 + $0x98] sm:$0xff]
        %v2209 = vld [vmem:[#allocation2 + $0xa0] sm:$0xff]
        %v2210 = vld [vmem:[#allocation2 + $0xa8] sm:$0xff]
        %v2211 = vld [vmem:[#allocation2 + $0xb0] sm:$0xff]
        %v2212 = vld [vmem:[#allocation2 + $0xb8] sm:$0xff]
        %v2213 = vld [vmem:[#allocation2 + $0xc0] sm:$0xff]
        %v2214 = vld [vmem:[#allocation2 + $0xc8] sm:$0xff]
        %v2215 = vld [vmem:[#allocation2 + $0xd0] sm:$0xff]
        %v2216 = vld [vmem:[#allocation2 + $0xd8] sm:$0xff]
        %v2217 = vld [vmem:[#allocation2 + $0xe0] sm:$0xff]
        %v2218 = vld [vmem:[#allocation2 + $0xe8] sm:$0xff]
        %v2219 = vld [vmem:[#allocation2 + $0xf0] sm:$0xff]
        %v2220 = vld [vmem:[#allocation2 + $0xf8] sm:$0xff]
        %v2221 = vpack.c.bf16 %v2190, %v2189
        %v2222 = vpack.c.bf16 %v2192, %v2191
        %v2223 = vpack.c.bf16 %v2194, %v2193
        %v2224 = vpack.c.bf16 %v2196, %v2195
        %v2225 = vpack.c.bf16 %v2198, %v2197
        %v2226 = vpack.c.bf16 %v2200, %v2199
        %v2227 = vpack.c.bf16 %v2202, %v2201
        %v2228 = vpack.c.bf16 %v2204, %v2203
        %v2229 = vpack.c.bf16 %v2206, %v2205
        %v2230 = vpack.c.bf16 %v2208, %v2207
        %v2231 = vpack.c.bf16 %v2210, %v2209
        %v2232 = vpack.c.bf16 %v2212, %v2211
        %v2233 = vpack.c.bf16 %v2214, %v2213
        %v2234 = vpack.c.bf16 %v2216, %v2215
        %v2235 = vpack.c.bf16 %v2218, %v2217
        %v2236 = vpack.c.bf16 %v2220, %v2219
        %v2237 = vld [vmem:[%s6] sm:$0xff]
        %v2238 = vld [vmem:[%s6 + $0x8] sm:$0xff]
        %v2239 = vld [vmem:[%s6 + $0x10] sm:$0xff]
        %v2240 = vld [vmem:[%s6 + $0x18] sm:$0xff]
        %v2241 = vld [vmem:[%s6 + $0x20] sm:$0xff]
        %v2242 = vld [vmem:[%s6 + $0x28] sm:$0xff]
        %v2243 = vld [vmem:[%s6 + $0x30] sm:$0xff]
        %v2244 = vld [vmem:[%s6 + $0x38] sm:$0xff]
        %v2245 = vld [vmem:[%s6 + $0x40] sm:$0xff]
        %v2246 = vld [vmem:[%s6 + $0x48] sm:$0xff]
        %v2247 = vld [vmem:[%s6 + $0x50] sm:$0xff]
        %v2248 = vld [vmem:[%s6 + $0x58] sm:$0xff]
        %v2249 = vld [vmem:[%s6 + $0x60] sm:$0xff]
        %v2250 = vld [vmem:[%s6 + $0x68] sm:$0xff]
        %v2251 = vld [vmem:[%s6 + $0x70] sm:$0xff]
        %v2252 = vld [vmem:[%s6 + $0x78] sm:$0xff]
        %v2253 = vld [vmem:[%s6 + $0x80] sm:$0xff]
        %v2254 = vld [vmem:[%s6 + $0x88] sm:$0xff]
        %v2255 = vld [vmem:[%s6 + $0x90] sm:$0xff]
        %v2256 = vld [vmem:[%s6 + $0x98] sm:$0xff]
        %v2257 = vld [vmem:[%s7] sm:$0xf]
        %v2259 = vlaneseq
        %v2260 = vshrl.u32 %v2259, 7
        %v2261 = vsub.s32 0, %v2260
        %v2262 = vrot.slane %v2257, %v2261
        %v2263 = vlaneseq
        %v2264 = vshrl.u32 %v2263, 7
        %v2265 = vsub.s32 1, %v2264
        %v2266 = vrot.slane %v2257, %v2265
        %v2267 = vlaneseq
        %v2268 = vshrl.u32 %v2267, 7
        %v2269 = vsub.s32 2, %v2268
        %v2270 = vrot.slane %v2257, %v2269
        %v2271 = vlaneseq
        %v2272 = vshrl.u32 %v2271, 7
        %v2273 = vsub.s32 3, %v2272
        %v2274 = vrot.slane %v2257, %v2273
        %v2299 = vunpack.c.l.b16 %v2237
        %v2300 = vunpack.c.h.b16 %v2237
        %v2301 = vunpack.c.l.b16 %v2238
        %v2302 = vunpack.c.h.b16 %v2238
        %v2303 = vunpack.c.l.b16 %v2239
        %v2304 = vunpack.c.h.b16 %v2239
        %v2305 = vunpack.c.l.b16 %v2240
        %v2306 = vunpack.c.h.b16 %v2240
        %v2307 = vunpack.c.l.b16 %v2241
        %v2308 = vunpack.c.h.b16 %v2241
        %v2309 = vunpack.c.l.b16 %v2242
        %v2310 = vunpack.c.h.b16 %v2242
        %v2311 = vunpack.c.l.b16 %v2243
        %v2312 = vunpack.c.h.b16 %v2243
        %v2313 = vunpack.c.l.b16 %v2244
        %v2314 = vunpack.c.h.b16 %v2244
        %v2315 = vunpack.c.l.b16 %v2245
        %v2316 = vunpack.c.h.b16 %v2245
        %v2317 = vunpack.c.l.b16 %v2246
        %v2318 = vunpack.c.h.b16 %v2246
        %v2319 = vunpack.c.l.b16 %v2247
        %v2320 = vunpack.c.h.b16 %v2247
        %v2321 = vunpack.c.l.b16 %v2248
        %v2322 = vunpack.c.h.b16 %v2248
        %v2323 = vunpack.c.l.b16 %v2249
        %v2324 = vunpack.c.h.b16 %v2249
        %v2325 = vunpack.c.l.b16 %v2250
        %v2326 = vunpack.c.h.b16 %v2250
        %v2327 = vunpack.c.l.b16 %v2251
        %v2328 = vunpack.c.h.b16 %v2251
        %v2329 = vunpack.c.l.b16 %v2252
        %v2330 = vunpack.c.h.b16 %v2252
        %v2331 = vunpack.c.l.b16 %v2253
        %v2332 = vunpack.c.h.b16 %v2253
        %v2333 = vunpack.c.l.b16 %v2254
        %v2334 = vunpack.c.h.b16 %v2254
        %v2335 = vunpack.c.l.b16 %v2255
        %v2336 = vunpack.c.h.b16 %v2255
        %v2337 = vunpack.c.l.b16 %v2256
        %v2338 = vunpack.c.h.b16 %v2256
        %v2339 = vpack.c.b16 %v2303, %v2299
        %v2340 = vpack.c.b16 %v2304, %v2300
        %v2341 = vpack.c.b16 %v2305, %v2301
        %v2342 = vpack.c.b16 %v2306, %v2302
        %v2343 = vpack.c.b16 %v2311, %v2307
        %v2344 = vpack.c.b16 %v2312, %v2308
        %v2345 = vpack.c.b16 %v2313, %v2309
        %v2346 = vpack.c.b16 %v2314, %v2310
        %v2347 = vpack.c.b16 %v2319, %v2315
        %v2348 = vpack.c.b16 %v2320, %v2316
        %v2349 = vpack.c.b16 %v2321, %v2317
        %v2350 = vpack.c.b16 %v2322, %v2318
        %v2351 = vpack.c.b16 %v2327, %v2323
        %v2352 = vpack.c.b16 %v2328, %v2324
        %v2353 = vpack.c.b16 %v2329, %v2325
        %v2354 = vpack.c.b16 %v2330, %v2326
        %v2355 = vpack.c.b16 %v2335, %v2331
        %v2356 = vpack.c.b16 %v2336, %v2332
        %v2357 = vpack.c.b16 %v2337, %v2333
        %v2358 = vpack.c.b16 %v2338, %v2334
        %v2380 = vsel %vm1974, %v2221, 0
        %v2383 = vsel %vm1974, %v2222, 0
        %v2386 = vsel %vm1974, %v2223, 0
        %v2389 = vsel %vm1974, %v2224, 0
        %v2392 = vsel %vm1974, %v2225, 0
        %v2395 = vsel %vm1974, %v2226, 0
        %v2398 = vsel %vm1974, %v2227, 0
        %v2401 = vsel %vm1974, %v2228, 0
        %v2404 = vsel %vm1974, %v2229, 0
        %v2407 = vsel %vm1974, %v2230, 0
        %v2410 = vsel %vm1974, %v2231, 0
        %v2413 = vsel %vm1974, %v2232, 0
        %v2416 = vsel %vm1974, %v2233, 0
        %v2419 = vsel %vm1974, %v2234, 0
        %v2422 = vsel %vm1974, %v2235, 0
        %v2425 = vsel %vm1974, %v2236, 0
        %2427 = vmatprep.subr.bf16.mxu0 %v2340
        %2428 = vmatpush1.bf16.msra.mxu0 %v2339
        %2429 = vmatprep.subr.bf16.mxu0 %v2344
        %2430 = vmatpush1.bf16.msra.mxu0 %v2343
        %2431 = vmatprep.subr.bf16.mxu0 %v2348
        %2432 = vmatpush1.bf16.msra.mxu0 %v2347
        %2433 = vmatprep.subr.bf16.mxu0 %v2352
        %2434 = vmatpush1.bf16.msra.mxu0 %v2351
        %2435 = vmatprep.subr.bf16.mxu0 %v2356
        %2436 = vmatpush1.bf16.msra.mxu0 %v2355
        %2437 = vmatprep.subr.bf16.mxu0 0
        %2438 = vmatpush1.bf16.msra.mxu0 0
        %2439 = vmatprep.subr.bf16.mxu0 0
        %2440 = vmatpush1.bf16.msra.mxu0 0
        %2441 = vmatprep.subr.bf16.mxu0 0
        %2442 = vmatpush1.bf16.msra.mxu0 0
        %2443 = vmatprep.subr.bf16.mxu0 0
        %2444 = vmatpush1.bf16.msra.mxu0 0
        %2445 = vmatprep.subr.bf16.mxu0 0
        %2446 = vmatpush1.bf16.msra.mxu0 0
        %2447 = vmatprep.subr.bf16.mxu0 0
        %2448 = vmatpush1.bf16.msra.mxu0 0
        %2449 = vmatprep.subr.bf16.mxu0 0
        %2450 = vmatpush1.bf16.msra.mxu0 0
        %2451 = vmatprep.subr.bf16.mxu0 0
        %2452 = vmatpush1.bf16.msra.mxu0 0
        %2453 = vmatprep.subr.bf16.mxu0 0
        %2454 = vmatpush1.bf16.msra.mxu0 0
        %2455 = vmatprep.subr.bf16.mxu0 0
        %2456 = vmatpush1.bf16.msra.mxu0 0
        %2457 = vmatprep.subr.bf16.mxu0 0
        %2458 = vmatpush1.bf16.msra.mxu0 0
        %2459 = vmatprep.mubr.bf16.mxu0 0
        %2460 = vmatmul.mubr.bf16.gmra.mrb[0].mxu0 %v2380
        %v2461 = vpop.f32.mrb[0].mxu0
        %v2462 = vadd.f32 %v2262, %v2461
        %v2463 = vpop.f32.mrb[0].mxu0
        %v2464 = vadd.f32 %v2266, %v2463
        %v2465 = vpop.f32.mrb[0].mxu0
        %v2466 = vadd.f32 %v2262, %v2465
        %v2467 = vpop.f32.mrb[0].mxu0
        %v2468 = vadd.f32 %v2266, %v2467
        %2469 = vmatprep.mubr.bf16.mxu0 0
        %2470 = vmatmul.mubr.bf16.gmra.mrb[0].mxu0 %v2383
        %v2471 = vpop.f32.mrb[0].mxu0
        %v2472 = vadd.f32 %v2262, %v2471
        %v2473 = vpop.f32.mrb[0].mxu0
        %v2474 = vadd.f32 %v2266, %v2473
        %v2475 = vpop.f32.mrb[0].mxu0
        %v2476 = vadd.f32 %v2262, %v2475
        %v2477 = vpop.f32.mrb[0].mxu0
        %v2478 = vadd.f32 %v2266, %v2477
        %2479 = vmatprep.mubr.bf16.mxu0 0
        %2480 = vmatmul.mubr.bf16.gmra.mrb[0].mxu0 %v2386
        %v2481 = vpop.f32.mrb[0].mxu0
        %v2482 = vadd.f32 %v2262, %v2481
        %v2483 = vpop.f32.mrb[0].mxu0
        %v2484 = vadd.f32 %v2266, %v2483
        %v2485 = vpop.f32.mrb[0].mxu0
        %v2486 = vadd.f32 %v2262, %v2485
        %v2487 = vpop.f32.mrb[0].mxu0
        %v2488 = vadd.f32 %v2266, %v2487
        %2489 = vmatprep.mubr.bf16.mxu0 0
        %2490 = vmatmul.mubr.bf16.gmra.mrb[0].mxu0 %v2389
        %v2491 = vpop.f32.mrb[0].mxu0
        %v2492 = vadd.f32 %v2262, %v2491
        %v2493 = vpop.f32.mrb[0].mxu0
        %v2494 = vadd.f32 %v2266, %v2493
        %v2495 = vpop.f32.mrb[0].mxu0
        %v2496 = vadd.f32 %v2262, %v2495
        %v2497 = vpop.f32.mrb[0].mxu0
        %v2498 = vadd.f32 %v2266, %v2497
        %2499 = vmatprep.mubr.bf16.mxu0 0
        %2500 = vmatmul.mubr.bf16.gmra.mrb[0].mxu0 %v2392
        %v2501 = vpop.f32.mrb[0].mxu0
        %v2502 = vadd.f32 %v2262, %v2501
        %v2503 = vpop.f32.mrb[0].mxu0
        %v2504 = vadd.f32 %v2266, %v2503
        %v2505 = vpop.f32.mrb[0].mxu0
        %v2506 = vadd.f32 %v2262, %v2505
        %v2507 = vpop.f32.mrb[0].mxu0
        %v2508 = vadd.f32 %v2266, %v2507
        %2509 = vmatprep.mubr.bf16.mxu0 0
        %2510 = vmatmul.mubr.bf16.gmra.mrb[0].mxu0 %v2395
        %v2511 = vpop.f32.mrb[0].mxu0
        %v2512 = vadd.f32 %v2262, %v2511
        %v2513 = vpop.f32.mrb[0].mxu0
        %v2514 = vadd.f32 %v2266, %v2513
        %v2515 = vpop.f32.mrb[0].mxu0
        %v2516 = vadd.f32 %v2262, %v2515
        %v2517 = vpop.f32.mrb[0].mxu0
        %v2518 = vadd.f32 %v2266, %v2517
        %2519 = vmatprep.mubr.bf16.mxu0 0
        %2520 = vmatmul.mubr.bf16.gmra.mrb[0].mxu0 %v2398
        %v2521 = vpop.f32.mrb[0].mxu0
        %v2522 = vadd.f32 %v2262, %v2521
        %v2523 = vpop.f32.mrb[0].mxu0
        %v2524 = vadd.f32 %v2266, %v2523
        %v2525 = vpop.f32.mrb[0].mxu0
        %v2526 = vadd.f32 %v2262, %v2525
        %v2527 = vpop.f32.mrb[0].mxu0
        %v2528 = vadd.f32 %v2266, %v2527
        %2529 = vmatprep.mubr.bf16.mxu0 0
        %2530 = vmatmul.mubr.bf16.gmra.mrb[0].mxu0 %v2401
        %v2531 = vpop.f32.mrb[0].mxu0
        %v2532 = vadd.f32 %v2262, %v2531
        %v2533 = vpop.f32.mrb[0].mxu0
        %v2534 = vadd.f32 %v2266, %v2533
        %v2535 = vpop.f32.mrb[0].mxu0
        %v2536 = vadd.f32 %v2262, %v2535
        %v2537 = vpop.f32.mrb[0].mxu0
        %v2538 = vadd.f32 %v2266, %v2537
        %2539 = vmatprep.mubr.bf16.mxu0 0
        %2540 = vmatmul.mubr.bf16.gmra.mrb[0].mxu0 %v2404
        %v2541 = vpop.f32.mrb[0].mxu0
        %v2542 = vadd.f32 %v2262, %v2541
        %v2543 = vpop.f32.mrb[0].mxu0
        %v2544 = vadd.f32 %v2266, %v2543
        %v2545 = vpop.f32.mrb[0].mxu0
        %v2546 = vadd.f32 %v2262, %v2545
        %v2547 = vpop.f32.mrb[0].mxu0
        %v2548 = vadd.f32 %v2266, %v2547
        %2549 = vmatprep.mubr.bf16.mxu0 0
        %2550 = vmatmul.mubr.bf16.gmra.mrb[0].mxu0 %v2407
        %v2551 = vpop.f32.mrb[0].mxu0
        %v2552 = vadd.f32 %v2262, %v2551
        %v2553 = vpop.f32.mrb[0].mxu0
        %v2554 = vadd.f32 %v2266, %v2553
        %v2555 = vpop.f32.mrb[0].mxu0
        %v2556 = vadd.f32 %v2262, %v2555
        %v2557 = vpop.f32.mrb[0].mxu0
        %v2558 = vadd.f32 %v2266, %v2557
        %2559 = vmatprep.mubr.bf16.mxu0 0
        %2560 = vmatmul.mubr.bf16.gmra.mrb[0].mxu0 %v2410
        %v2561 = vpop.f32.mrb[0].mxu0
        %v2562 = vadd.f32 %v2262, %v2561
        %v2563 = vpop.f32.mrb[0].mxu0
        %v2564 = vadd.f32 %v2266, %v2563
        %v2565 = vpop.f32.mrb[0].mxu0
        %v2566 = vadd.f32 %v2262, %v2565
        %v2567 = vpop.f32.mrb[0].mxu0
        %v2568 = vadd.f32 %v2266, %v2567
        %2569 = vmatprep.mubr.bf16.mxu0 0
        %2570 = vmatmul.mubr.bf16.gmra.mrb[0].mxu0 %v2413
        %v2571 = vpop.f32.mrb[0].mxu0
        %v2572 = vadd.f32 %v2262, %v2571
        %v2573 = vpop.f32.mrb[0].mxu0
        %v2574 = vadd.f32 %v2266, %v2573
        %v2575 = vpop.f32.mrb[0].mxu0
        %v2576 = vadd.f32 %v2262, %v2575
        %v2577 = vpop.f32.mrb[0].mxu0
        %v2578 = vadd.f32 %v2266, %v2577
        %2579 = vmatprep.mubr.bf16.mxu0 0
        %2580 = vmatmul.mubr.bf16.gmra.mrb[0].mxu0 %v2416
        %v2581 = vpop.f32.mrb[0].mxu0
        %v2582 = vadd.f32 %v2262, %v2581
        %v2583 = vpop.f32.mrb[0].mxu0
        %v2584 = vadd.f32 %v2266, %v2583
        %v2585 = vpop.f32.mrb[0].mxu0
        %v2586 = vadd.f32 %v2262, %v2585
        %v2587 = vpop.f32.mrb[0].mxu0
        %v2588 = vadd.f32 %v2266, %v2587
        %2589 = vmatprep.mubr.bf16.mxu0 0
        %2590 = vmatmul.mubr.bf16.gmra.mrb[0].mxu0 %v2419
        %v2591 = vpop.f32.mrb[0].mxu0
        %v2592 = vadd.f32 %v2262, %v2591
        %v2593 = vpop.f32.mrb[0].mxu0
        %v2594 = vadd.f32 %v2266, %v2593
        %v2595 = vpop.f32.mrb[0].mxu0
        %v2596 = vadd.f32 %v2262, %v2595
        %v2597 = vpop.f32.mrb[0].mxu0
        %v2598 = vadd.f32 %v2266, %v2597
        %2599 = vmatprep.mubr.bf16.mxu0 0
        %2600 = vmatmul.mubr.bf16.gmra.mrb[0].mxu0 %v2422
        %v2601 = vpop.f32.mrb[0].mxu0
        %v2602 = vadd.f32 %v2262, %v2601
        %v2603 = vpop.f32.mrb[0].mxu0
        %v2604 = vadd.f32 %v2266, %v2603
        %v2605 = vpop.f32.mrb[0].mxu0
        %v2606 = vadd.f32 %v2262, %v2605
        %v2607 = vpop.f32.mrb[0].mxu0
        %v2608 = vadd.f32 %v2266, %v2607
        %2609 = vmatprep.mubr.bf16.mxu0 0
        %2610 = vmatmul.mubr.bf16.gmra.mrb[0].mxu0 %v2425
        %v2611 = vpop.f32.mrb[0].mxu0
        %v2612 = vadd.f32 %v2262, %v2611
        %v2613 = vpop.f32.mrb[0].mxu0
        %v2614 = vadd.f32 %v2266, %v2613
        %v2615 = vpop.f32.mrb[0].mxu0
        %v2616 = vadd.f32 %v2262, %v2615
        %v2617 = vpop.f32.mrb[0].mxu0
        %v2618 = vadd.f32 %v2266, %v2617
        %2619 = vdwg.mxu0
        %2620 = vmatprep.subr.bf16.mxu0 %v2342
        %2621 = vmatpush1.bf16.msra.mxu0 %v2341
        %2622 = vmatprep.subr.bf16.mxu0 %v2346
        %2623 = vmatpush1.bf16.msra.mxu0 %v2345
        %2624 = vmatprep.subr.bf16.mxu0 %v2350
        %2625 = vmatpush1.bf16.msra.mxu0 %v2349
        %2626 = vmatprep.subr.bf16.mxu0 %v2354
        %2627 = vmatpush1.bf16.msra.mxu0 %v2353
        %2628 = vmatprep.subr.bf16.mxu0 %v2358
        %2629 = vmatpush1.bf16.msra.mxu0 %v2357
        %2630 = vmatprep.subr.bf16.mxu0 0
        %2631 = vmatpush1.bf16.msra.mxu0 0
        %2632 = vmatprep.subr.bf16.mxu0 0
        %2633 = vmatpush1.bf16.msra.mxu0 0
        %2634 = vmatprep.subr.bf16.mxu0 0
        %2635 = vmatpush1.bf16.msra.mxu0 0
        %2636 = vmatprep.subr.bf16.mxu0 0
        %2637 = vmatpush1.bf16.msra.mxu0 0
        %2638 = vmatprep.subr.bf16.mxu0 0
        %2639 = vmatpush1.bf16.msra.mxu0 0
        %2640 = vmatprep.subr.bf16.mxu0 0
        %2641 = vmatpush1.bf16.msra.mxu0 0
        %2642 = vmatprep.subr.bf16.mxu0 0
        %2643 = vmatpush1.bf16.msra.mxu0 0
        %2644 = vmatprep.subr.bf16.mxu0 0
        %2645 = vmatpush1.bf16.msra.mxu0 0
        %2646 = vmatprep.subr.bf16.mxu0 0
        %2647 = vmatpush1.bf16.msra.mxu0 0
        %2648 = vmatprep.subr.bf16.mxu0 0
        %2649 = vmatpush1.bf16.msra.mxu0 0
        %2650 = vmatprep.subr.bf16.mxu0 0
        %2651 = vmatpush1.bf16.msra.mxu0 0
        %2652 = vmatprep.mubr.bf16.mxu0 0
        %2653 = vmatmul.mubr.bf16.gmra.mrb[0].mxu0 %v2380
        %v2654 = vpop.f32.mrb[0].mxu0
        %v2655 = vadd.f32 %v2270, %v2654
        %v2656 = vpop.f32.mrb[0].mxu0
        %v2657 = vadd.f32 %v2274, %v2656
        %v2658 = vpop.f32.mrb[0].mxu0
        %v2659 = vadd.f32 %v2270, %v2658
        %v2660 = vpop.f32.mrb[0].mxu0
        %v2661 = vadd.f32 %v2274, %v2660
        %2662 = vmatprep.mubr.bf16.mxu0 0
        %2663 = vmatmul.mubr.bf16.gmra.mrb[0].mxu0 %v2383
        %v2664 = vpop.f32.mrb[0].mxu0
        %v2665 = vadd.f32 %v2270, %v2664
        %v2666 = vpop.f32.mrb[0].mxu0
        %v2667 = vadd.f32 %v2274, %v2666
        %v2668 = vpop.f32.mrb[0].mxu0
        %v2669 = vadd.f32 %v2270, %v2668
        %v2670 = vpop.f32.mrb[0].mxu0
        %v2671 = vadd.f32 %v2274, %v2670
        %2672 = vmatprep.mubr.bf16.mxu0 0
        %2673 = vmatmul.mubr.bf16.gmra.mrb[0].mxu0 %v2386
        %v2674 = vpop.f32.mrb[0].mxu0
        %v2675 = vadd.f32 %v2270, %v2674
        %v2676 = vpop.f32.mrb[0].mxu0
        %v2677 = vadd.f32 %v2274, %v2676
        %v2678 = vpop.f32.mrb[0].mxu0
        %v2679 = vadd.f32 %v2270, %v2678
        %v2680 = vpop.f32.mrb[0].mxu0
        %v2681 = vadd.f32 %v2274, %v2680
        %2682 = vmatprep.mubr.bf16.mxu0 0
        %2683 = vmatmul.mubr.bf16.gmra.mrb[0].mxu0 %v2389
        %v2684 = vpop.f32.mrb[0].mxu0
        %v2685 = vadd.f32 %v2270, %v2684
        %v2686 = vpop.f32.mrb[0].mxu0
        %v2687 = vadd.f32 %v2274, %v2686
        %v2688 = vpop.f32.mrb[0].mxu0
        %v2689 = vadd.f32 %v2270, %v2688
        %v2690 = vpop.f32.mrb[0].mxu0
        %v2691 = vadd.f32 %v2274, %v2690
        %2692 = vmatprep.mubr.bf16.mxu0 0
        %2693 = vmatmul.mubr.bf16.gmra.mrb[0].mxu0 %v2392
        %v2694 = vpop.f32.mrb[0].mxu0
        %v2695 = vadd.f32 %v2270, %v2694
        %v2696 = vpop.f32.mrb[0].mxu0
        %v2697 = vadd.f32 %v2274, %v2696
        %v2698 = vpop.f32.mrb[0].mxu0
        %v2699 = vadd.f32 %v2270, %v2698
        %v2700 = vpop.f32.mrb[0].mxu0
        %v2701 = vadd.f32 %v2274, %v2700
        %2702 = vmatprep.mubr.bf16.mxu0 0
        %2703 = vmatmul.mubr.bf16.gmra.mrb[0].mxu0 %v2395
        %v2704 = vpop.f32.mrb[0].mxu0
        %v2705 = vadd.f32 %v2270, %v2704
        %v2706 = vpop.f32.mrb[0].mxu0
        %v2707 = vadd.f32 %v2274, %v2706
        %v2708 = vpop.f32.mrb[0].mxu0
        %v2709 = vadd.f32 %v2270, %v2708
        %v2710 = vpop.f32.mrb[0].mxu0
        %v2711 = vadd.f32 %v2274, %v2710
        %2712 = vmatprep.mubr.bf16.mxu0 0
        %2713 = vmatmul.mubr.bf16.gmra.mrb[0].mxu0 %v2398
        %v2714 = vpop.f32.mrb[0].mxu0
        %v2715 = vadd.f32 %v2270, %v2714
        %v2716 = vpop.f32.mrb[0].mxu0
        %v2717 = vadd.f32 %v2274, %v2716
        %v2718 = vpop.f32.mrb[0].mxu0
        %v2719 = vadd.f32 %v2270, %v2718
        %v2720 = vpop.f32.mrb[0].mxu0
        %v2721 = vadd.f32 %v2274, %v2720
        %2722 = vmatprep.mubr.bf16.mxu0 0
        %2723 = vmatmul.mubr.bf16.gmra.mrb[0].mxu0 %v2401
        %v2724 = vpop.f32.mrb[0].mxu0
        %v2725 = vadd.f32 %v2270, %v2724
        %v2726 = vpop.f32.mrb[0].mxu0
        %v2727 = vadd.f32 %v2274, %v2726
        %v2728 = vpop.f32.mrb[0].mxu0
        %v2729 = vadd.f32 %v2270, %v2728
        %v2730 = vpop.f32.mrb[0].mxu0
        %v2731 = vadd.f32 %v2274, %v2730
        %2732 = vmatprep.mubr.bf16.mxu0 0
        %2733 = vmatmul.mubr.bf16.gmra.mrb[0].mxu0 %v2404
        %v2734 = vpop.f32.mrb[0].mxu0
        %v2735 = vadd.f32 %v2270, %v2734
        %v2736 = vpop.f32.mrb[0].mxu0
        %v2737 = vadd.f32 %v2274, %v2736
        %v2738 = vpop.f32.mrb[0].mxu0
        %v2739 = vadd.f32 %v2270, %v2738
        %v2740 = vpop.f32.mrb[0].mxu0
        %v2741 = vadd.f32 %v2274, %v2740
        %2742 = vmatprep.mubr.bf16.mxu0 0
        %2743 = vmatmul.mubr.bf16.gmra.mrb[0].mxu0 %v2407
        %v2744 = vpop.f32.mrb[0].mxu0
        %v2745 = vadd.f32 %v2270, %v2744
        %v2746 = vpop.f32.mrb[0].mxu0
        %v2747 = vadd.f32 %v2274, %v2746
        %v2748 = vpop.f32.mrb[0].mxu0
        %v2749 = vadd.f32 %v2270, %v2748
        %v2750 = vpop.f32.mrb[0].mxu0
        %v2751 = vadd.f32 %v2274, %v2750
        %2752 = vmatprep.mubr.bf16.mxu0 0
        %2753 = vmatmul.mubr.bf16.gmra.mrb[0].mxu0 %v2410
        %v2754 = vpop.f32.mrb[0].mxu0
        %v2755 = vadd.f32 %v2270, %v2754
        %v2756 = vpop.f32.mrb[0].mxu0
        %v2757 = vadd.f32 %v2274, %v2756
        %v2758 = vpop.f32.mrb[0].mxu0
        %v2759 = vadd.f32 %v2270, %v2758
        %v2760 = vpop.f32.mrb[0].mxu0
        %v2761 = vadd.f32 %v2274, %v2760
        %2762 = vmatprep.mubr.bf16.mxu0 0
        %2763 = vmatmul.mubr.bf16.gmra.mrb[0].mxu0 %v2413
        %v2764 = vpop.f32.mrb[0].mxu0
        %v2765 = vadd.f32 %v2270, %v2764
        %v2766 = vpop.f32.mrb[0].mxu0
        %v2767 = vadd.f32 %v2274, %v2766
        %v2768 = vpop.f32.mrb[0].mxu0
        %v2769 = vadd.f32 %v2270, %v2768
        %v2770 = vpop.f32.mrb[0].mxu0
        %v2771 = vadd.f32 %v2274, %v2770
        %2772 = vmatprep.mubr.bf16.mxu0 0
        %2773 = vmatmul.mubr.bf16.gmra.mrb[0].mxu0 %v2416
        %v2774 = vpop.f32.mrb[0].mxu0
        %v2775 = vadd.f32 %v2270, %v2774
        %v2776 = vpop.f32.mrb[0].mxu0
        %v2777 = vadd.f32 %v2274, %v2776
        %v2778 = vpop.f32.mrb[0].mxu0
        %v2779 = vadd.f32 %v2270, %v2778
        %v2780 = vpop.f32.mrb[0].mxu0
        %v2781 = vadd.f32 %v2274, %v2780
        %2782 = vmatprep.mubr.bf16.mxu0 0
        %2783 = vmatmul.mubr.bf16.gmra.mrb[0].mxu0 %v2419
        %v2784 = vpop.f32.mrb[0].mxu0
        %v2785 = vadd.f32 %v2270, %v2784
        %v2786 = vpop.f32.mrb[0].mxu0
        %v2787 = vadd.f32 %v2274, %v2786
        %v2788 = vpop.f32.mrb[0].mxu0
        %v2789 = vadd.f32 %v2270, %v2788
        %v2790 = vpop.f32.mrb[0].mxu0
        %v2791 = vadd.f32 %v2274, %v2790
        %2792 = vmatprep.mubr.bf16.mxu0 0
        %2793 = vmatmul.mubr.bf16.gmra.mrb[0].mxu0 %v2422
        %v2794 = vpop.f32.mrb[0].mxu0
        %v2795 = vadd.f32 %v2270, %v2794
        %v2796 = vpop.f32.mrb[0].mxu0
        %v2797 = vadd.f32 %v2274, %v2796
        %v2798 = vpop.f32.mrb[0].mxu0
        %v2799 = vadd.f32 %v2270, %v2798
        %v2800 = vpop.f32.mrb[0].mxu0
        %v2801 = vadd.f32 %v2274, %v2800
        %2802 = vmatprep.mubr.bf16.mxu0 0
        %2803 = vmatmul.mubr.bf16.gmra.mrb[0].mxu0 %v2425
        %v2804 = vpop.f32.mrb[0].mxu0
        %v2805 = vadd.f32 %v2270, %v2804
        %v2806 = vpop.f32.mrb[0].mxu0
        %v2807 = vadd.f32 %v2274, %v2806
        %v2808 = vpop.f32.mrb[0].mxu0
        %v2809 = vadd.f32 %v2270, %v2808
        %v2810 = vpop.f32.mrb[0].mxu0
        %v2811 = vadd.f32 %v2274, %v2810
        %2812 = vdwg.mxu0
        %v2813 = vmul.f32 %v2462, 1.702
        %v2814 = vmul.f32 %v2464, 1.702
        %v2815 = vmul.f32 %v2655, 1.702
        %v2816 = vmul.f32 %v2657, 1.702
        %v2817 = vmul.f32 %v2466, 1.702
        %v2818 = vmul.f32 %v2468, 1.702
        %v2819 = vmul.f32 %v2659, 1.702
        %v2820 = vmul.f32 %v2661, 1.702
        %v2821 = vmul.f32 %v2472, 1.702
        %v2822 = vmul.f32 %v2474, 1.702
        %v2823 = vmul.f32 %v2665, 1.702
        %v2824 = vmul.f32 %v2667, 1.702
        %v2825 = vmul.f32 %v2476, 1.702
        %v2826 = vmul.f32 %v2478, 1.702
        %v2827 = vmul.f32 %v2669, 1.702
        %v2828 = vmul.f32 %v2671, 1.702
        %v2829 = vmul.f32 %v2482, 1.702
        %v2830 = vmul.f32 %v2484, 1.702
        %v2831 = vmul.f32 %v2675, 1.702
        %v2832 = vmul.f32 %v2677, 1.702
        %v2833 = vmul.f32 %v2486, 1.702
        %v2834 = vmul.f32 %v2488, 1.702
        %v2835 = vmul.f32 %v2679, 1.702
        %v2836 = vmul.f32 %v2681, 1.702
        %v2837 = vmul.f32 %v2492, 1.702
        %v2838 = vmul.f32 %v2494, 1.702
        %v2839 = vmul.f32 %v2685, 1.702
        %v2840 = vmul.f32 %v2687, 1.702
        %v2841 = vmul.f32 %v2496, 1.702
        %v2842 = vmul.f32 %v2498, 1.702
        %v2843 = vmul.f32 %v2689, 1.702
        %v2844 = vmul.f32 %v2691, 1.702
        %v2845 = vmul.f32 %v2502, 1.702
        %v2846 = vmul.f32 %v2504, 1.702
        %v2847 = vmul.f32 %v2695, 1.702
        %v2848 = vmul.f32 %v2697, 1.702
        %v2849 = vmul.f32 %v2506, 1.702
        %v2850 = vmul.f32 %v2508, 1.702
        %v2851 = vmul.f32 %v2699, 1.702
        %v2852 = vmul.f32 %v2701, 1.702
        %v2853 = vmul.f32 %v2512, 1.702
        %v2854 = vmul.f32 %v2514, 1.702
        %v2855 = vmul.f32 %v2705, 1.702
        %v2856 = vmul.f32 %v2707, 1.702
        %v2857 = vmul.f32 %v2516, 1.702
        %v2858 = vmul.f32 %v2518, 1.702
        %v2859 = vmul.f32 %v2709, 1.702
        %v2860 = vmul.f32 %v2711, 1.702
        %v2861 = vmul.f32 %v2522, 1.702
        %v2862 = vmul.f32 %v2524, 1.702
        %v2863 = vmul.f32 %v2715, 1.702
        %v2864 = vmul.f32 %v2717, 1.702
        %v2865 = vmul.f32 %v2526, 1.702
        %v2866 = vmul.f32 %v2528, 1.702
        %v2867 = vmul.f32 %v2719, 1.702
        %v2868 = vmul.f32 %v2721, 1.702
        %v2869 = vmul.f32 %v2532, 1.702
        %v2870 = vmul.f32 %v2534, 1.702
        %v2871 = vmul.f32 %v2725, 1.702
        %v2872 = vmul.f32 %v2727, 1.702
        %v2873 = vmul.f32 %v2536, 1.702
        %v2874 = vmul.f32 %v2538, 1.702
        %v2875 = vmul.f32 %v2729, 1.702
        %v2876 = vmul.f32 %v2731, 1.702
        %v2877 = vmul.f32 %v2542, 1.702
        %v2878 = vmul.f32 %v2544, 1.702
        %v2879 = vmul.f32 %v2735, 1.702
        %v2880 = vmul.f32 %v2737, 1.702
        %v2881 = vmul.f32 %v2546, 1.702
        %v2882 = vmul.f32 %v2548, 1.702
        %v2883 = vmul.f32 %v2739, 1.702
        %v2884 = vmul.f32 %v2741, 1.702
        %v2885 = vmul.f32 %v2552, 1.702
        %v2886 = vmul.f32 %v2554, 1.702
        %v2887 = vmul.f32 %v2745, 1.702
        %v2888 = vmul.f32 %v2747, 1.702
        %v2889 = vmul.f32 %v2556, 1.702
        %v2890 = vmul.f32 %v2558, 1.702
        %v2891 = vmul.f32 %v2749, 1.702
        %v2892 = vmul.f32 %v2751, 1.702
        %v2893 = vmul.f32 %v2562, 1.702
        %v2894 = vmul.f32 %v2564, 1.702
        %v2895 = vmul.f32 %v2755, 1.702
        %v2896 = vmul.f32 %v2757, 1.702
        %v2897 = vmul.f32 %v2566, 1.702
        %v2898 = vmul.f32 %v2568, 1.702
        %v2899 = vmul.f32 %v2759, 1.702
        %v2900 = vmul.f32 %v2761, 1.702
        %v2901 = vmul.f32 %v2572, 1.702
        %v2902 = vmul.f32 %v2574, 1.702
        %v2903 = vmul.f32 %v2765, 1.702
        %v2904 = vmul.f32 %v2767, 1.702
        %v2905 = vmul.f32 %v2576, 1.702
        %v2906 = vmul.f32 %v2578, 1.702
        %v2907 = vmul.f32 %v2769, 1.702
        %v2908 = vmul.f32 %v2771, 1.702
        %v2909 = vmul.f32 %v2582, 1.702
        %v2910 = vmul.f32 %v2584, 1.702
        %v2911 = vmul.f32 %v2775, 1.702
        %v2912 = vmul.f32 %v2777, 1.702
        %v2913 = vmul.f32 %v2586, 1.702
        %v2914 = vmul.f32 %v2588, 1.702
        %v2915 = vmul.f32 %v2779, 1.702
        %v2916 = vmul.f32 %v2781, 1.702
        %v2917 = vmul.f32 %v2592, 1.702
        %v2918 = vmul.f32 %v2594, 1.702
        %v2919 = vmul.f32 %v2785, 1.702
        %v2920 = vmul.f32 %v2787, 1.702
        %v2921 = vmul.f32 %v2596, 1.702
        %v2922 = vmul.f32 %v2598, 1.702
        %v2923 = vmul.f32 %v2789, 1.702
        %v2924 = vmul.f32 %v2791, 1.702
        %v2925 = vmul.f32 %v2602, 1.702
        %v2926 = vmul.f32 %v2604, 1.702
        %v2927 = vmul.f32 %v2795, 1.702
        %v2928 = vmul.f32 %v2797, 1.702
        %v2929 = vmul.f32 %v2606, 1.702
        %v2930 = vmul.f32 %v2608, 1.702
        %v2931 = vmul.f32 %v2799, 1.702
        %v2932 = vmul.f32 %v2801, 1.702
        %v2933 = vmul.f32 %v2612, 1.702
        %v2934 = vmul.f32 %v2614, 1.702
        %v2935 = vmul.f32 %v2805, 1.702
        %v2936 = vmul.f32 %v2807, 1.702
        %v2937 = vmul.f32 %v2616, 1.702
        %v2938 = vmul.f32 %v2618, 1.702
        %v2939 = vmul.f32 %v2809, 1.702
        %v2940 = vmul.f32 %v2811, 1.702
        %v2941 = vxor.u32 %v2813, 2147483648
        %v2942 = vxor.u32 %v2814, 2147483648
        %v2943 = vxor.u32 %v2815, 2147483648
        %v2944 = vxor.u32 %v2816, 2147483648
        %v2945 = vxor.u32 %v2817, 2147483648
        %v2946 = vxor.u32 %v2818, 2147483648
        %v2947 = vxor.u32 %v2819, 2147483648
        %v2948 = vxor.u32 %v2820, 2147483648
        %v2949 = vxor.u32 %v2821, 2147483648
        %v2950 = vxor.u32 %v2822, 2147483648
        %v2951 = vxor.u32 %v2823, 2147483648
        %v2952 = vxor.u32 %v2824, 2147483648
        %v2953 = vxor.u32 %v2825, 2147483648
        %v2954 = vxor.u32 %v2826, 2147483648
        %v2955 = vxor.u32 %v2827, 2147483648
        %v2956 = vxor.u32 %v2828, 2147483648
        %v2957 = vxor.u32 %v2829, 2147483648
        %v2958 = vxor.u32 %v2830, 2147483648
        %v2959 = vxor.u32 %v2831, 2147483648
        %v2960 = vxor.u32 %v2832, 2147483648
        %v2961 = vxor.u32 %v2833, 2147483648
        %v2962 = vxor.u32 %v2834, 2147483648
        %v2963 = vxor.u32 %v2835, 2147483648
        %v2964 = vxor.u32 %v2836, 2147483648
        %v2965 = vxor.u32 %v2837, 2147483648
        %v2966 = vxor.u32 %v2838, 2147483648
        %v2967 = vxor.u32 %v2839, 2147483648
        %v2968 = vxor.u32 %v2840, 2147483648
        %v2969 = vxor.u32 %v2841, 2147483648
        %v2970 = vxor.u32 %v2842, 2147483648
        %v2971 = vxor.u32 %v2843, 2147483648
        %v2972 = vxor.u32 %v2844, 2147483648
        %v2973 = vxor.u32 %v2845, 2147483648
        %v2974 = vxor.u32 %v2846, 2147483648
        %v2975 = vxor.u32 %v2847, 2147483648
        %v2976 = vxor.u32 %v2848, 2147483648
        %v2977 = vxor.u32 %v2849, 2147483648
        %v2978 = vxor.u32 %v2850, 2147483648
        %v2979 = vxor.u32 %v2851, 2147483648
        %v2980 = vxor.u32 %v2852, 2147483648
        %v2981 = vxor.u32 %v2853, 2147483648
        %v2982 = vxor.u32 %v2854, 2147483648
        %v2983 = vxor.u32 %v2855, 2147483648
        %v2984 = vxor.u32 %v2856, 2147483648
        %v2985 = vxor.u32 %v2857, 2147483648
        %v2986 = vxor.u32 %v2858, 2147483648
        %v2987 = vxor.u32 %v2859, 2147483648
        %v2988 = vxor.u32 %v2860, 2147483648
        %v2989 = vxor.u32 %v2861, 2147483648
        %v2990 = vxor.u32 %v2862, 2147483648
        %v2991 = vxor.u32 %v2863, 2147483648
        %v2992 = vxor.u32 %v2864, 2147483648
        %v2993 = vxor.u32 %v2865, 2147483648
        %v2994 = vxor.u32 %v2866, 2147483648
        %v2995 = vxor.u32 %v2867, 2147483648
        %v2996 = vxor.u32 %v2868, 2147483648
        %v2997 = vxor.u32 %v2869, 2147483648
        %v2998 = vxor.u32 %v2870, 2147483648
        %v2999 = vxor.u32 %v2871, 2147483648
        %v3000 = vxor.u32 %v2872, 2147483648
        %v3001 = vxor.u32 %v2873, 2147483648
        %v3002 = vxor.u32 %v2874, 2147483648
        %v3003 = vxor.u32 %v2875, 2147483648
        %v3004 = vxor.u32 %v2876, 2147483648
        %v3005 = vxor.u32 %v2877, 2147483648
        %v3006 = vxor.u32 %v2878, 2147483648
        %v3007 = vxor.u32 %v2879, 2147483648
        %v3008 = vxor.u32 %v2880, 2147483648
        %v3009 = vxor.u32 %v2881, 2147483648
        %v3010 = vxor.u32 %v2882, 2147483648
        %v3011 = vxor.u32 %v2883, 2147483648
        %v3012 = vxor.u32 %v2884, 2147483648
        %v3013 = vxor.u32 %v2885, 2147483648
        %v3014 = vxor.u32 %v2886, 2147483648
        %v3015 = vxor.u32 %v2887, 2147483648
        %v3016 = vxor.u32 %v2888, 2147483648
        %v3017 = vxor.u32 %v2889, 2147483648
        %v3018 = vxor.u32 %v2890, 2147483648
        %v3019 = vxor.u32 %v2891, 2147483648
        %v3020 = vxor.u32 %v2892, 2147483648
        %v3021 = vxor.u32 %v2893, 2147483648
        %v3022 = vxor.u32 %v2894, 2147483648
        %v3023 = vxor.u32 %v2895, 2147483648
        %v3024 = vxor.u32 %v2896, 2147483648
        %v3025 = vxor.u32 %v2897, 2147483648
        %v3026 = vxor.u32 %v2898, 2147483648
        %v3027 = vxor.u32 %v2899, 2147483648
        %v3028 = vxor.u32 %v2900, 2147483648
        %v3029 = vxor.u32 %v2901, 2147483648
        %v3030 = vxor.u32 %v2902, 2147483648
        %v3031 = vxor.u32 %v2903, 2147483648
        %v3032 = vxor.u32 %v2904, 2147483648
        %v3033 = vxor.u32 %v2905, 2147483648
        %v3034 = vxor.u32 %v2906, 2147483648
        %v3035 = vxor.u32 %v2907, 2147483648
        %v3036 = vxor.u32 %v2908, 2147483648
        %v3037 = vxor.u32 %v2909, 2147483648
        %v3038 = vxor.u32 %v2910, 2147483648
        %v3039 = vxor.u32 %v2911, 2147483648
        %v3040 = vxor.u32 %v2912, 2147483648
        %v3041 = vxor.u32 %v2913, 2147483648
        %v3042 = vxor.u32 %v2914, 2147483648
        %v3043 = vxor.u32 %v2915, 2147483648
        %v3044 = vxor.u32 %v2916, 2147483648
        %v3045 = vxor.u32 %v2917, 2147483648
        %v3046 = vxor.u32 %v2918, 2147483648
        %v3047 = vxor.u32 %v2919, 2147483648
        %v3048 = vxor.u32 %v2920, 2147483648
        %v3049 = vxor.u32 %v2921, 2147483648
        %v3050 = vxor.u32 %v2922, 2147483648
        %v3051 = vxor.u32 %v2923, 2147483648
        %v3052 = vxor.u32 %v2924, 2147483648
        %v3053 = vxor.u32 %v2925, 2147483648
        %v3054 = vxor.u32 %v2926, 2147483648
        %v3055 = vxor.u32 %v2927, 2147483648
        %v3056 = vxor.u32 %v2928, 2147483648
        %v3057 = vxor.u32 %v2929, 2147483648
        %v3058 = vxor.u32 %v2930, 2147483648
        %v3059 = vxor.u32 %v2931, 2147483648
        %v3060 = vxor.u32 %v2932, 2147483648
        %v3061 = vxor.u32 %v2933, 2147483648
        %v3062 = vxor.u32 %v2934, 2147483648
        %v3063 = vxor.u32 %v2935, 2147483648
        %v3064 = vxor.u32 %v2936, 2147483648
        %v3065 = vxor.u32 %v2937, 2147483648
        %v3066 = vxor.u32 %v2938, 2147483648
        %v3067 = vxor.u32 %v2939, 2147483648
        %v3068 = vxor.u32 %v2940, 2147483648
        %v3069 = vmul.f32 %v2941, 1.442695
        %v3070 = vpow.pop %v3069
        %v3071 = vmul.f32 %v2942, 1.442695
        %v3072 = vpow.pop %v3071
        %v3073 = vmul.f32 %v2943, 1.442695
        %v3074 = vpow.pop %v3073
        %v3075 = vmul.f32 %v2944, 1.442695
        %v3076 = vpow.pop %v3075
        %v3077 = vmul.f32 %v2945, 1.442695
        %v3078 = vpow.pop %v3077
        %v3079 = vmul.f32 %v2946, 1.442695
        %v3080 = vpow.pop %v3079
        %v3081 = vmul.f32 %v2947, 1.442695
        %v3082 = vpow.pop %v3081
        %v3083 = vmul.f32 %v2948, 1.442695
        %v3084 = vpow.pop %v3083
        %v3085 = vmul.f32 %v2949, 1.442695
        %v3086 = vpow.pop %v3085
        %v3087 = vmul.f32 %v2950, 1.442695
        %v3088 = vpow.pop %v3087
        %v3089 = vmul.f32 %v2951, 1.442695
        %v3090 = vpow.pop %v3089
        %v3091 = vmul.f32 %v2952, 1.442695
        %v3092 = vpow.pop %v3091
        %v3093 = vmul.f32 %v2953, 1.442695
        %v3094 = vpow.pop %v3093
        %v3095 = vmul.f32 %v2954, 1.442695
        %v3096 = vpow.pop %v3095
        %v3097 = vmul.f32 %v2955, 1.442695
        %v3098 = vpow.pop %v3097
        %v3099 = vmul.f32 %v2956, 1.442695
        %v3100 = vpow.pop %v3099
        %v3101 = vmul.f32 %v2957, 1.442695
        %v3102 = vpow.pop %v3101
        %v3103 = vmul.f32 %v2958, 1.442695
        %v3104 = vpow.pop %v3103
        %v3105 = vmul.f32 %v2959, 1.442695
        %v3106 = vpow.pop %v3105
        %v3107 = vmul.f32 %v2960, 1.442695
        %v3108 = vpow.pop %v3107
        %v3109 = vmul.f32 %v2961, 1.442695
        %v3110 = vpow.pop %v3109
        %v3111 = vmul.f32 %v2962, 1.442695
        %v3112 = vpow.pop %v3111
        %v3113 = vmul.f32 %v2963, 1.442695
        %v3114 = vpow.pop %v3113
        %v3115 = vmul.f32 %v2964, 1.442695
        %v3116 = vpow.pop %v3115
        %v3117 = vmul.f32 %v2965, 1.442695
        %v3118 = vpow.pop %v3117
        %v3119 = vmul.f32 %v2966, 1.442695
        %v3120 = vpow.pop %v3119
        %v3121 = vmul.f32 %v2967, 1.442695
        %v3122 = vpow.pop %v3121
        %v3123 = vmul.f32 %v2968, 1.442695
        %v3124 = vpow.pop %v3123
        %v3125 = vmul.f32 %v2969, 1.442695
        %v3126 = vpow.pop %v3125
        %v3127 = vmul.f32 %v2970, 1.442695
        %v3128 = vpow.pop %v3127
        %v3129 = vmul.f32 %v2971, 1.442695
        %v3130 = vpow.pop %v3129
        %v3131 = vmul.f32 %v2972, 1.442695
        %v3132 = vpow.pop %v3131
        %v3133 = vmul.f32 %v2973, 1.442695
        %v3134 = vpow.pop %v3133
        %v3135 = vmul.f32 %v2974, 1.442695
        %v3136 = vpow.pop %v3135
        %v3137 = vmul.f32 %v2975, 1.442695
        %v3138 = vpow.pop %v3137
        %v3139 = vmul.f32 %v2976, 1.442695
        %v3140 = vpow.pop %v3139
        %v3141 = vmul.f32 %v2977, 1.442695
        %v3142 = vpow.pop %v3141
        %v3143 = vmul.f32 %v2978, 1.442695
        %v3144 = vpow.pop %v3143
        %v3145 = vmul.f32 %v2979, 1.442695
        %v3146 = vpow.pop %v3145
        %v3147 = vmul.f32 %v2980, 1.442695
        %v3148 = vpow.pop %v3147
        %v3149 = vmul.f32 %v2981, 1.442695
        %v3150 = vpow.pop %v3149
        %v3151 = vmul.f32 %v2982, 1.442695
        %v3152 = vpow.pop %v3151
        %v3153 = vmul.f32 %v2983, 1.442695
        %v3154 = vpow.pop %v3153
        %v3155 = vmul.f32 %v2984, 1.442695
        %v3156 = vpow.pop %v3155
        %v3157 = vmul.f32 %v2985, 1.442695
        %v3158 = vpow.pop %v3157
        %v3159 = vmul.f32 %v2986, 1.442695
        %v3160 = vpow.pop %v3159
        %v3161 = vmul.f32 %v2987, 1.442695
        %v3162 = vpow.pop %v3161
        %v3163 = vmul.f32 %v2988, 1.442695
        %v3164 = vpow.pop %v3163
        %v3165 = vmul.f32 %v2989, 1.442695
        %v3166 = vpow.pop %v3165
        %v3167 = vmul.f32 %v2990, 1.442695
        %v3168 = vpow.pop %v3167
        %v3169 = vmul.f32 %v2991, 1.442695
        %v3170 = vpow.pop %v3169
        %v3171 = vmul.f32 %v2992, 1.442695
        %v3172 = vpow.pop %v3171
        %v3173 = vmul.f32 %v2993, 1.442695
        %v3174 = vpow.pop %v3173
        %v3175 = vmul.f32 %v2994, 1.442695
        %v3176 = vpow.pop %v3175
        %v3177 = vmul.f32 %v2995, 1.442695
        %v3178 = vpow.pop %v3177
        %v3179 = vmul.f32 %v2996, 1.442695
        %v3180 = vpow.pop %v3179
        %v3181 = vmul.f32 %v2997, 1.442695
        %v3182 = vpow.pop %v3181
        %v3183 = vmul.f32 %v2998, 1.442695
        %v3184 = vpow.pop %v3183
        %v3185 = vmul.f32 %v2999, 1.442695
        %v3186 = vpow.pop %v3185
        %v3187 = vmul.f32 %v3000, 1.442695
        %v3188 = vpow.pop %v3187
        %v3189 = vmul.f32 %v3001, 1.442695
        %v3190 = vpow.pop %v3189
        %v3191 = vmul.f32 %v3002, 1.442695
        %v3192 = vpow.pop %v3191
        %v3193 = vmul.f32 %v3003, 1.442695
        %v3194 = vpow.pop %v3193
        %v3195 = vmul.f32 %v3004, 1.442695
        %v3196 = vpow.pop %v3195
        %v3197 = vmul.f32 %v3005, 1.442695
        %v3198 = vpow.pop %v3197
        %v3199 = vmul.f32 %v3006, 1.442695
        %v3200 = vpow.pop %v3199
        %v3201 = vmul.f32 %v3007, 1.442695
        %v3202 = vpow.pop %v3201
        %v3203 = vmul.f32 %v3008, 1.442695
        %v3204 = vpow.pop %v3203
        %v3205 = vmul.f32 %v3009, 1.442695
        %v3206 = vpow.pop %v3205
        %v3207 = vmul.f32 %v3010, 1.442695
        %v3208 = vpow.pop %v3207
        %v3209 = vmul.f32 %v3011, 1.442695
        %v3210 = vpow.pop %v3209
        %v3211 = vmul.f32 %v3012, 1.442695
        %v3212 = vpow.pop %v3211
        %v3213 = vmul.f32 %v3013, 1.442695
        %v3214 = vpow.pop %v3213
        %v3215 = vmul.f32 %v3014, 1.442695
        %v3216 = vpow.pop %v3215
        %v3217 = vmul.f32 %v3015, 1.442695
        %v3218 = vpow.pop %v3217
        %v3219 = vmul.f32 %v3016, 1.442695
        %v3220 = vpow.pop %v3219
        %v3221 = vmul.f32 %v3017, 1.442695
        %v3222 = vpow.pop %v3221
        %v3223 = vmul.f32 %v3018, 1.442695
        %v3224 = vpow.pop %v3223
        %v3225 = vmul.f32 %v3019, 1.442695
        %v3226 = vpow.pop %v3225
        %v3227 = vmul.f32 %v3020, 1.442695
        %v3228 = vpow.pop %v3227
        %v3229 = vmul.f32 %v3021, 1.442695
        %v3230 = vpow.pop %v3229
        %v3231 = vmul.f32 %v3022, 1.442695
        %v3232 = vpow.pop %v3231
        %v3233 = vmul.f32 %v3023, 1.442695
        %v3234 = vpow.pop %v3233
        %v3235 = vmul.f32 %v3024, 1.442695
        %v3236 = vpow.pop %v3235
        %v3237 = vmul.f32 %v3025, 1.442695
        %v3238 = vpow.pop %v3237
        %v3239 = vmul.f32 %v3026, 1.442695
        %v3240 = vpow.pop %v3239
        %v3241 = vmul.f32 %v3027, 1.442695
        %v3242 = vpow.pop %v3241
        %v3243 = vmul.f32 %v3028, 1.442695
        %v3244 = vpow.pop %v3243
        %v3245 = vmul.f32 %v3029, 1.442695
        %v3246 = vpow.pop %v3245
        %v3247 = vmul.f32 %v3030, 1.442695
        %v3248 = vpow.pop %v3247
        %v3249 = vmul.f32 %v3031, 1.442695
        %v3250 = vpow.pop %v3249
        %v3251 = vmul.f32 %v3032, 1.442695
        %v3252 = vpow.pop %v3251
        %v3253 = vmul.f32 %v3033, 1.442695
        %v3254 = vpow.pop %v3253
        %v3255 = vmul.f32 %v3034, 1.442695
        %v3256 = vpow.pop %v3255
        %v3257 = vmul.f32 %v3035, 1.442695
        %v3258 = vpow.pop %v3257
        %v3259 = vmul.f32 %v3036, 1.442695
        %v3260 = vpow.pop %v3259
        %v3261 = vmul.f32 %v3037, 1.442695
        %v3262 = vpow.pop %v3261
        %v3263 = vmul.f32 %v3038, 1.442695
        %v3264 = vpow.pop %v3263
        %v3265 = vmul.f32 %v3039, 1.442695
        %v3266 = vpow.pop %v3265
        %v3267 = vmul.f32 %v3040, 1.442695
        %v3268 = vpow.pop %v3267
        %v3269 = vmul.f32 %v3041, 1.442695
        %v3270 = vpow.pop %v3269
        %v3271 = vmul.f32 %v3042, 1.442695
        %v3272 = vpow.pop %v3271
        %v3273 = vmul.f32 %v3043, 1.442695
        %v3274 = vpow.pop %v3273
        %v3275 = vmul.f32 %v3044, 1.442695
        %v3276 = vpow.pop %v3275
        %v3277 = vmul.f32 %v3045, 1.442695
        %v3278 = vpow.pop %v3277
        %v3279 = vmul.f32 %v3046, 1.442695
        %v3280 = vpow.pop %v3279
        %v3281 = vmul.f32 %v3047, 1.442695
        %v3282 = vpow.pop %v3281
        %v3283 = vmul.f32 %v3048, 1.442695
        %v3284 = vpow.pop %v3283
        %v3285 = vmul.f32 %v3049, 1.442695
        %v3286 = vpow.pop %v3285
        %v3287 = vmul.f32 %v3050, 1.442695
        %v3288 = vpow.pop %v3287
        %v3289 = vmul.f32 %v3051, 1.442695
        %v3290 = vpow.pop %v3289
        %v3291 = vmul.f32 %v3052, 1.442695
        %v3292 = vpow.pop %v3291
        %v3293 = vmul.f32 %v3053, 1.442695
        %v3294 = vpow.pop %v3293
        %v3295 = vmul.f32 %v3054, 1.442695
        %v3296 = vpow.pop %v3295
        %v3297 = vmul.f32 %v3055, 1.442695
        %v3298 = vpow.pop %v3297
        %v3299 = vmul.f32 %v3056, 1.442695
        %v3300 = vpow.pop %v3299
        %v3301 = vmul.f32 %v3057, 1.442695
        %v3302 = vpow.pop %v3301
        %v3303 = vmul.f32 %v3058, 1.442695
        %v3304 = vpow.pop %v3303
        %v3305 = vmul.f32 %v3059, 1.442695
        %v3306 = vpow.pop %v3305
        %v3307 = vmul.f32 %v3060, 1.442695
        %v3308 = vpow.pop %v3307
        %v3309 = vmul.f32 %v3061, 1.442695
        %v3310 = vpow.pop %v3309
        %v3311 = vmul.f32 %v3062, 1.442695
        %v3312 = vpow.pop %v3311
        %v3313 = vmul.f32 %v3063, 1.442695
        %v3314 = vpow.pop %v3313
        %v3315 = vmul.f32 %v3064, 1.442695
        %v3316 = vpow.pop %v3315
        %v3317 = vmul.f32 %v3065, 1.442695
        %v3318 = vpow.pop %v3317
        %v3319 = vmul.f32 %v3066, 1.442695
        %v3320 = vpow.pop %v3319
        %v3321 = vmul.f32 %v3067, 1.442695
        %v3322 = vpow.pop %v3321
        %v3323 = vmul.f32 %v3068, 1.442695
        %v3324 = vpow.pop %v3323
        %v3325 = vadd.f32 %v3070, 1.0
        %v3326 = vadd.f32 %v3072, 1.0
        %v3327 = vadd.f32 %v3074, 1.0
        %v3328 = vadd.f32 %v3076, 1.0
        %v3329 = vadd.f32 %v3078, 1.0
        %v3330 = vadd.f32 %v3080, 1.0
        %v3331 = vadd.f32 %v3082, 1.0
        %v3332 = vadd.f32 %v3084, 1.0
        %v3333 = vadd.f32 %v3086, 1.0
        %v3334 = vadd.f32 %v3088, 1.0
        %v3335 = vadd.f32 %v3090, 1.0
        %v3336 = vadd.f32 %v3092, 1.0
        %v3337 = vadd.f32 %v3094, 1.0
        %v3338 = vadd.f32 %v3096, 1.0
        %v3339 = vadd.f32 %v3098, 1.0
        %v3340 = vadd.f32 %v3100, 1.0
        %v3341 = vadd.f32 %v3102, 1.0
        %v3342 = vadd.f32 %v3104, 1.0
        %v3343 = vadd.f32 %v3106, 1.0
        %v3344 = vadd.f32 %v3108, 1.0
        %v3345 = vadd.f32 %v3110, 1.0
        %v3346 = vadd.f32 %v3112, 1.0
        %v3347 = vadd.f32 %v3114, 1.0
        %v3348 = vadd.f32 %v3116, 1.0
        %v3349 = vadd.f32 %v3118, 1.0
        %v3350 = vadd.f32 %v3120, 1.0
        %v3351 = vadd.f32 %v3122, 1.0
        %v3352 = vadd.f32 %v3124, 1.0
        %v3353 = vadd.f32 %v3126, 1.0
        %v3354 = vadd.f32 %v3128, 1.0
        %v3355 = vadd.f32 %v3130, 1.0
        %v3356 = vadd.f32 %v3132, 1.0
        %v3357 = vadd.f32 %v3134, 1.0
        %v3358 = vadd.f32 %v3136, 1.0
        %v3359 = vadd.f32 %v3138, 1.0
        %v3360 = vadd.f32 %v3140, 1.0
        %v3361 = vadd.f32 %v3142, 1.0
        %v3362 = vadd.f32 %v3144, 1.0
        %v3363 = vadd.f32 %v3146, 1.0
        %v3364 = vadd.f32 %v3148, 1.0
        %v3365 = vadd.f32 %v3150, 1.0
        %v3366 = vadd.f32 %v3152, 1.0
        %v3367 = vadd.f32 %v3154, 1.0
        %v3368 = vadd.f32 %v3156, 1.0
        %v3369 = vadd.f32 %v3158, 1.0
        %v3370 = vadd.f32 %v3160, 1.0
        %v3371 = vadd.f32 %v3162, 1.0
        %v3372 = vadd.f32 %v3164, 1.0
        %v3373 = vadd.f32 %v3166, 1.0
        %v3374 = vadd.f32 %v3168, 1.0
        %v3375 = vadd.f32 %v3170, 1.0
        %v3376 = vadd.f32 %v3172, 1.0
        %v3377 = vadd.f32 %v3174, 1.0
        %v3378 = vadd.f32 %v3176, 1.0
        %v3379 = vadd.f32 %v3178, 1.0
        %v3380 = vadd.f32 %v3180, 1.0
        %v3381 = vadd.f32 %v3182, 1.0
        %v3382 = vadd.f32 %v3184, 1.0
        %v3383 = vadd.f32 %v3186, 1.0
        %v3384 = vadd.f32 %v3188, 1.0
        %v3385 = vadd.f32 %v3190, 1.0
        %v3386 = vadd.f32 %v3192, 1.0
        %v3387 = vadd.f32 %v3194, 1.0
        %v3388 = vadd.f32 %v3196, 1.0
        %v3389 = vadd.f32 %v3198, 1.0
        %v3390 = vadd.f32 %v3200, 1.0
        %v3391 = vadd.f32 %v3202, 1.0
        %v3392 = vadd.f32 %v3204, 1.0
        %v3393 = vadd.f32 %v3206, 1.0
        %v3394 = vadd.f32 %v3208, 1.0
        %v3395 = vadd.f32 %v3210, 1.0
        %v3396 = vadd.f32 %v3212, 1.0
        %v3397 = vadd.f32 %v3214, 1.0
        %v3398 = vadd.f32 %v3216, 1.0
        %v3399 = vadd.f32 %v3218, 1.0
        %v3400 = vadd.f32 %v3220, 1.0
        %v3401 = vadd.f32 %v3222, 1.0
        %v3402 = vadd.f32 %v3224, 1.0
        %v3403 = vadd.f32 %v3226, 1.0
        %v3404 = vadd.f32 %v3228, 1.0
        %v3405 = vadd.f32 %v3230, 1.0
        %v3406 = vadd.f32 %v3232, 1.0
        %v3407 = vadd.f32 %v3234, 1.0
        %v3408 = vadd.f32 %v3236, 1.0
        %v3409 = vadd.f32 %v3238, 1.0
        %v3410 = vadd.f32 %v3240, 1.0
        %v3411 = vadd.f32 %v3242, 1.0
        %v3412 = vadd.f32 %v3244, 1.0
        %v3413 = vadd.f32 %v3246, 1.0
        %v3414 = vadd.f32 %v3248, 1.0
        %v3415 = vadd.f32 %v3250, 1.0
        %v3416 = vadd.f32 %v3252, 1.0
        %v3417 = vadd.f32 %v3254, 1.0
        %v3418 = vadd.f32 %v3256, 1.0
        %v3419 = vadd.f32 %v3258, 1.0
        %v3420 = vadd.f32 %v3260, 1.0
        %v3421 = vadd.f32 %v3262, 1.0
        %v3422 = vadd.f32 %v3264, 1.0
        %v3423 = vadd.f32 %v3266, 1.0
        %v3424 = vadd.f32 %v3268, 1.0
        %v3425 = vadd.f32 %v3270, 1.0
        %v3426 = vadd.f32 %v3272, 1.0
        %v3427 = vadd.f32 %v3274, 1.0
        %v3428 = vadd.f32 %v3276, 1.0
        %v3429 = vadd.f32 %v3278, 1.0
        %v3430 = vadd.f32 %v3280, 1.0
        %v3431 = vadd.f32 %v3282, 1.0
        %v3432 = vadd.f32 %v3284, 1.0
        %v3433 = vadd.f32 %v3286, 1.0
        %v3434 = vadd.f32 %v3288, 1.0
        %v3435 = vadd.f32 %v3290, 1.0
        %v3436 = vadd.f32 %v3292, 1.0
        %v3437 = vadd.f32 %v3294, 1.0
        %v3438 = vadd.f32 %v3296, 1.0
        %v3439 = vadd.f32 %v3298, 1.0
        %v3440 = vadd.f32 %v3300, 1.0
        %v3441 = vadd.f32 %v3302, 1.0
        %v3442 = vadd.f32 %v3304, 1.0
        %v3443 = vadd.f32 %v3306, 1.0
        %v3444 = vadd.f32 %v3308, 1.0
        %v3445 = vadd.f32 %v3310, 1.0
        %v3446 = vadd.f32 %v3312, 1.0
        %v3447 = vadd.f32 %v3314, 1.0
        %v3448 = vadd.f32 %v3316, 1.0
        %v3449 = vadd.f32 %v3318, 1.0
        %v3450 = vadd.f32 %v3320, 1.0
        %v3451 = vadd.f32 %v3322, 1.0
        %v3452 = vadd.f32 %v3324, 1.0
        %v3453 = vrcp.pop %v3325
        %v3454 = vmul.f32 1.0, %v3453
        %v3455 = vrcp.pop %v3326
        %v3456 = vmul.f32 1.0, %v3455
        %v3457 = vrcp.pop %v3327
        %v3458 = vmul.f32 1.0, %v3457
        %v3459 = vrcp.pop %v3328
        %v3460 = vmul.f32 1.0, %v3459
        %v3461 = vrcp.pop %v3329
        %v3462 = vmul.f32 1.0, %v3461
        %v3463 = vrcp.pop %v3330
        %v3464 = vmul.f32 1.0, %v3463
        %v3465 = vrcp.pop %v3331
        %v3466 = vmul.f32 1.0, %v3465
        %v3467 = vrcp.pop %v3332
        %v3468 = vmul.f32 1.0, %v3467
        %v3469 = vrcp.pop %v3333
        %v3470 = vmul.f32 1.0, %v3469
        %v3471 = vrcp.pop %v3334
        %v3472 = vmul.f32 1.0, %v3471
        %v3473 = vrcp.pop %v3335
        %v3474 = vmul.f32 1.0, %v3473
        %v3475 = vrcp.pop %v3336
        %v3476 = vmul.f32 1.0, %v3475
        %v3477 = vrcp.pop %v3337
        %v3478 = vmul.f32 1.0, %v3477
        %v3479 = vrcp.pop %v3338
        %v3480 = vmul.f32 1.0, %v3479
        %v3481 = vrcp.pop %v3339
        %v3482 = vmul.f32 1.0, %v3481
        %v3483 = vrcp.pop %v3340
        %v3484 = vmul.f32 1.0, %v3483
        %v3485 = vrcp.pop %v3341
        %v3486 = vmul.f32 1.0, %v3485
        %v3487 = vrcp.pop %v3342
        %v3488 = vmul.f32 1.0, %v3487
        %v3489 = vrcp.pop %v3343
        %v3490 = vmul.f32 1.0, %v3489
        %v3491 = vrcp.pop %v3344
        %v3492 = vmul.f32 1.0, %v3491
        %v3493 = vrcp.pop %v3345
        %v3494 = vmul.f32 1.0, %v3493
        %v3495 = vrcp.pop %v3346
        %v3496 = vmul.f32 1.0, %v3495
        %v3497 = vrcp.pop %v3347
        %v3498 = vmul.f32 1.0, %v3497
        %v3499 = vrcp.pop %v3348
        %v3500 = vmul.f32 1.0, %v3499
        %v3501 = vrcp.pop %v3349
        %v3502 = vmul.f32 1.0, %v3501
        %v3503 = vrcp.pop %v3350
        %v3504 = vmul.f32 1.0, %v3503
        %v3505 = vrcp.pop %v3351
        %v3506 = vmul.f32 1.0, %v3505
        %v3507 = vrcp.pop %v3352
        %v3508 = vmul.f32 1.0, %v3507
        %v3509 = vrcp.pop %v3353
        %v3510 = vmul.f32 1.0, %v3509
        %v3511 = vrcp.pop %v3354
        %v3512 = vmul.f32 1.0, %v3511
        %v3513 = vrcp.pop %v3355
        %v3514 = vmul.f32 1.0, %v3513
        %v3515 = vrcp.pop %v3356
        %v3516 = vmul.f32 1.0, %v3515
        %v3517 = vrcp.pop %v3357
        %v3518 = vmul.f32 1.0, %v3517
        %v3519 = vrcp.pop %v3358
        %v3520 = vmul.f32 1.0, %v3519
        %v3521 = vrcp.pop %v3359
        %v3522 = vmul.f32 1.0, %v3521
        %v3523 = vrcp.pop %v3360
        %v3524 = vmul.f32 1.0, %v3523
        %v3525 = vrcp.pop %v3361
        %v3526 = vmul.f32 1.0, %v3525
        %v3527 = vrcp.pop %v3362
        %v3528 = vmul.f32 1.0, %v3527
        %v3529 = vrcp.pop %v3363
        %v3530 = vmul.f32 1.0, %v3529
        %v3531 = vrcp.pop %v3364
        %v3532 = vmul.f32 1.0, %v3531
        %v3533 = vrcp.pop %v3365
        %v3534 = vmul.f32 1.0, %v3533
        %v3535 = vrcp.pop %v3366
        %v3536 = vmul.f32 1.0, %v3535
        %v3537 = vrcp.pop %v3367
        %v3538 = vmul.f32 1.0, %v3537
        %v3539 = vrcp.pop %v3368
        %v3540 = vmul.f32 1.0, %v3539
        %v3541 = vrcp.pop %v3369
        %v3542 = vmul.f32 1.0, %v3541
        %v3543 = vrcp.pop %v3370
        %v3544 = vmul.f32 1.0, %v3543
        %v3545 = vrcp.pop %v3371
        %v3546 = vmul.f32 1.0, %v3545
        %v3547 = vrcp.pop %v3372
        %v3548 = vmul.f32 1.0, %v3547
        %v3549 = vrcp.pop %v3373
        %v3550 = vmul.f32 1.0, %v3549
        %v3551 = vrcp.pop %v3374
        %v3552 = vmul.f32 1.0, %v3551
        %v3553 = vrcp.pop %v3375
        %v3554 = vmul.f32 1.0, %v3553
        %v3555 = vrcp.pop %v3376
        %v3556 = vmul.f32 1.0, %v3555
        %v3557 = vrcp.pop %v3377
        %v3558 = vmul.f32 1.0, %v3557
        %v3559 = vrcp.pop %v3378
        %v3560 = vmul.f32 1.0, %v3559
        %v3561 = vrcp.pop %v3379
        %v3562 = vmul.f32 1.0, %v3561
        %v3563 = vrcp.pop %v3380
        %v3564 = vmul.f32 1.0, %v3563
        %v3565 = vrcp.pop %v3381
        %v3566 = vmul.f32 1.0, %v3565
        %v3567 = vrcp.pop %v3382
        %v3568 = vmul.f32 1.0, %v3567
        %v3569 = vrcp.pop %v3383
        %v3570 = vmul.f32 1.0, %v3569
        %v3571 = vrcp.pop %v3384
        %v3572 = vmul.f32 1.0, %v3571
        %v3573 = vrcp.pop %v3385
        %v3574 = vmul.f32 1.0, %v3573
        %v3575 = vrcp.pop %v3386
        %v3576 = vmul.f32 1.0, %v3575
        %v3577 = vrcp.pop %v3387
        %v3578 = vmul.f32 1.0, %v3577
        %v3579 = vrcp.pop %v3388
        %v3580 = vmul.f32 1.0, %v3579
        %v3581 = vrcp.pop %v3389
        %v3582 = vmul.f32 1.0, %v3581
        %v3583 = vrcp.pop %v3390
        %v3584 = vmul.f32 1.0, %v3583
        %v3585 = vrcp.pop %v3391
        %v3586 = vmul.f32 1.0, %v3585
        %v3587 = vrcp.pop %v3392
        %v3588 = vmul.f32 1.0, %v3587
        %v3589 = vrcp.pop %v3393
        %v3590 = vmul.f32 1.0, %v3589
        %v3591 = vrcp.pop %v3394
        %v3592 = vmul.f32 1.0, %v3591
        %v3593 = vrcp.pop %v3395
        %v3594 = vmul.f32 1.0, %v3593
        %v3595 = vrcp.pop %v3396
        %v3596 = vmul.f32 1.0, %v3595
        %v3597 = vrcp.pop %v3397
        %v3598 = vmul.f32 1.0, %v3597
        %v3599 = vrcp.pop %v3398
        %v3600 = vmul.f32 1.0, %v3599
        %v3601 = vrcp.pop %v3399
        %v3602 = vmul.f32 1.0, %v3601
        %v3603 = vrcp.pop %v3400
        %v3604 = vmul.f32 1.0, %v3603
        %v3605 = vrcp.pop %v3401
        %v3606 = vmul.f32 1.0, %v3605
        %v3607 = vrcp.pop %v3402
        %v3608 = vmul.f32 1.0, %v3607
        %v3609 = vrcp.pop %v3403
        %v3610 = vmul.f32 1.0, %v3609
        %v3611 = vrcp.pop %v3404
        %v3612 = vmul.f32 1.0, %v3611
        %v3613 = vrcp.pop %v3405
        %v3614 = vmul.f32 1.0, %v3613
        %v3615 = vrcp.pop %v3406
        %v3616 = vmul.f32 1.0, %v3615
        %v3617 = vrcp.pop %v3407
        %v3618 = vmul.f32 1.0, %v3617
        %v3619 = vrcp.pop %v3408
        %v3620 = vmul.f32 1.0, %v3619
        %v3621 = vrcp.pop %v3409
        %v3622 = vmul.f32 1.0, %v3621
        %v3623 = vrcp.pop %v3410
        %v3624 = vmul.f32 1.0, %v3623
        %v3625 = vrcp.pop %v3411
        %v3626 = vmul.f32 1.0, %v3625
        %v3627 = vrcp.pop %v3412
        %v3628 = vmul.f32 1.0, %v3627
        %v3629 = vrcp.pop %v3413
        %v3630 = vmul.f32 1.0, %v3629
        %v3631 = vrcp.pop %v3414
        %v3632 = vmul.f32 1.0, %v3631
        %v3633 = vrcp.pop %v3415
        %v3634 = vmul.f32 1.0, %v3633
        %v3635 = vrcp.pop %v3416
        %v3636 = vmul.f32 1.0, %v3635
        %v3637 = vrcp.pop %v3417
        %v3638 = vmul.f32 1.0, %v3637
        %v3639 = vrcp.pop %v3418
        %v3640 = vmul.f32 1.0, %v3639
        %v3641 = vrcp.pop %v3419
        %v3642 = vmul.f32 1.0, %v3641
        %v3643 = vrcp.pop %v3420
        %v3644 = vmul.f32 1.0, %v3643
        %v3645 = vrcp.pop %v3421
        %v3646 = vmul.f32 1.0, %v3645
        %v3647 = vrcp.pop %v3422
        %v3648 = vmul.f32 1.0, %v3647
        %v3649 = vrcp.pop %v3423
        %v3650 = vmul.f32 1.0, %v3649
        %v3651 = vrcp.pop %v3424
        %v3652 = vmul.f32 1.0, %v3651
        %v3653 = vrcp.pop %v3425
        %v3654 = vmul.f32 1.0, %v3653
        %v3655 = vrcp.pop %v3426
        %v3656 = vmul.f32 1.0, %v3655
        %v3657 = vrcp.pop %v3427
        %v3658 = vmul.f32 1.0, %v3657
        %v3659 = vrcp.pop %v3428
        %v3660 = vmul.f32 1.0, %v3659
        %v3661 = vrcp.pop %v3429
        %v3662 = vmul.f32 1.0, %v3661
        %v3663 = vrcp.pop %v3430
        %v3664 = vmul.f32 1.0, %v3663
        %v3665 = vrcp.pop %v3431
        %v3666 = vmul.f32 1.0, %v3665
        %v3667 = vrcp.pop %v3432
        %v3668 = vmul.f32 1.0, %v3667
        %v3669 = vrcp.pop %v3433
        %v3670 = vmul.f32 1.0, %v3669
        %v3671 = vrcp.pop %v3434
        %v3672 = vmul.f32 1.0, %v3671
        %v3673 = vrcp.pop %v3435
        %v3674 = vmul.f32 1.0, %v3673
        %v3675 = vrcp.pop %v3436
        %v3676 = vmul.f32 1.0, %v3675
        %v3677 = vrcp.pop %v3437
        %v3678 = vmul.f32 1.0, %v3677
        %v3679 = vrcp.pop %v3438
        %v3680 = vmul.f32 1.0, %v3679
        %v3681 = vrcp.pop %v3439
        %v3682 = vmul.f32 1.0, %v3681
        %v3683 = vrcp.pop %v3440
        %v3684 = vmul.f32 1.0, %v3683
        %v3685 = vrcp.pop %v3441
        %v3686 = vmul.f32 1.0, %v3685
        %v3687 = vrcp.pop %v3442
        %v3688 = vmul.f32 1.0, %v3687
        %v3689 = vrcp.pop %v3443
        %v3690 = vmul.f32 1.0, %v3689
        %v3691 = vrcp.pop %v3444
        %v3692 = vmul.f32 1.0, %v3691
        %v3693 = vrcp.pop %v3445
        %v3694 = vmul.f32 1.0, %v3693
        %v3695 = vrcp.pop %v3446
        %v3696 = vmul.f32 1.0, %v3695
        %v3697 = vrcp.pop %v3447
        %v3698 = vmul.f32 1.0, %v3697
        %v3699 = vrcp.pop %v3448
        %v3700 = vmul.f32 1.0, %v3699
        %v3701 = vrcp.pop %v3449
        %v3702 = vmul.f32 1.0, %v3701
        %v3703 = vrcp.pop %v3450
        %v3704 = vmul.f32 1.0, %v3703
        %v3705 = vrcp.pop %v3451
        %v3706 = vmul.f32 1.0, %v3705
        %v3707 = vrcp.pop %v3452
        %v3708 = vmul.f32 1.0, %v3707
        %v3709 = vmul.f32 %v2462, %v3454
        %v3710 = vmul.f32 %v2464, %v3456
        %v3711 = vmul.f32 %v2655, %v3458
        %v3712 = vmul.f32 %v2657, %v3460
        %v3713 = vmul.f32 %v2466, %v3462
        %v3714 = vmul.f32 %v2468, %v3464
        %v3715 = vmul.f32 %v2659, %v3466
        %v3716 = vmul.f32 %v2661, %v3468
        %v3717 = vmul.f32 %v2472, %v3470
        %v3718 = vmul.f32 %v2474, %v3472
        %v3719 = vmul.f32 %v2665, %v3474
        %v3720 = vmul.f32 %v2667, %v3476
        %v3721 = vmul.f32 %v2476, %v3478
        %v3722 = vmul.f32 %v2478, %v3480
        %v3723 = vmul.f32 %v2669, %v3482
        %v3724 = vmul.f32 %v2671, %v3484
        %v3725 = vmul.f32 %v2482, %v3486
        %v3726 = vmul.f32 %v2484, %v3488
        %v3727 = vmul.f32 %v2675, %v3490
        %v3728 = vmul.f32 %v2677, %v3492
        %v3729 = vmul.f32 %v2486, %v3494
        %v3730 = vmul.f32 %v2488, %v3496
        %v3731 = vmul.f32 %v2679, %v3498
        %v3732 = vmul.f32 %v2681, %v3500
        %v3733 = vmul.f32 %v2492, %v3502
        %v3734 = vmul.f32 %v2494, %v3504
        %v3735 = vmul.f32 %v2685, %v3506
        %v3736 = vmul.f32 %v2687, %v3508
        %v3737 = vmul.f32 %v2496, %v3510
        %v3738 = vmul.f32 %v2498, %v3512
        %v3739 = vmul.f32 %v2689, %v3514
        %v3740 = vmul.f32 %v2691, %v3516
        %v3741 = vmul.f32 %v2502, %v3518
        %v3742 = vmul.f32 %v2504, %v3520
        %v3743 = vmul.f32 %v2695, %v3522
        %v3744 = vmul.f32 %v2697, %v3524
        %v3745 = vmul.f32 %v2506, %v3526
        %v3746 = vmul.f32 %v2508, %v3528
        %v3747 = vmul.f32 %v2699, %v3530
        %v3748 = vmul.f32 %v2701, %v3532
        %v3749 = vmul.f32 %v2512, %v3534
        %v3750 = vmul.f32 %v2514, %v3536
        %v3751 = vmul.f32 %v2705, %v3538
        %v3752 = vmul.f32 %v2707, %v3540
        %v3753 = vmul.f32 %v2516, %v3542
        %v3754 = vmul.f32 %v2518, %v3544
        %v3755 = vmul.f32 %v2709, %v3546
        %v3756 = vmul.f32 %v2711, %v3548
        %v3757 = vmul.f32 %v2522, %v3550
        %v3758 = vmul.f32 %v2524, %v3552
        %v3759 = vmul.f32 %v2715, %v3554
        %v3760 = vmul.f32 %v2717, %v3556
        %v3761 = vmul.f32 %v2526, %v3558
        %v3762 = vmul.f32 %v2528, %v3560
        %v3763 = vmul.f32 %v2719, %v3562
        %v3764 = vmul.f32 %v2721, %v3564
        %v3765 = vmul.f32 %v2532, %v3566
        %v3766 = vmul.f32 %v2534, %v3568
        %v3767 = vmul.f32 %v2725, %v3570
        %v3768 = vmul.f32 %v2727, %v3572
        %v3769 = vmul.f32 %v2536, %v3574
        %v3770 = vmul.f32 %v2538, %v3576
        %v3771 = vmul.f32 %v2729, %v3578
        %v3772 = vmul.f32 %v2731, %v3580
        %v3773 = vmul.f32 %v2542, %v3582
        %v3774 = vmul.f32 %v2544, %v3584
        %v3775 = vmul.f32 %v2735, %v3586
        %v3776 = vmul.f32 %v2737, %v3588
        %v3777 = vmul.f32 %v2546, %v3590
        %v3778 = vmul.f32 %v2548, %v3592
        %v3779 = vmul.f32 %v2739, %v3594
        %v3780 = vmul.f32 %v2741, %v3596
        %v3781 = vmul.f32 %v2552, %v3598
        %v3782 = vmul.f32 %v2554, %v3600
        %v3783 = vmul.f32 %v2745, %v3602
        %v3784 = vmul.f32 %v2747, %v3604
        %v3785 = vmul.f32 %v2556, %v3606
        %v3786 = vmul.f32 %v2558, %v3608
        %v3787 = vmul.f32 %v2749, %v3610
        %v3788 = vmul.f32 %v2751, %v3612
        %v3789 = vmul.f32 %v2562, %v3614
        %v3790 = vmul.f32 %v2564, %v3616
        %v3791 = vmul.f32 %v2755, %v3618
        %v3792 = vmul.f32 %v2757, %v3620
        %v3793 = vmul.f32 %v2566, %v3622
        %v3794 = vmul.f32 %v2568, %v3624
        %v3795 = vmul.f32 %v2759, %v3626
        %v3796 = vmul.f32 %v2761, %v3628
        %v3797 = vmul.f32 %v2572, %v3630
        %v3798 = vmul.f32 %v2574, %v3632
        %v3799 = vmul.f32 %v2765, %v3634
        %v3800 = vmul.f32 %v2767, %v3636
        %v3801 = vmul.f32 %v2576, %v3638
        %v3802 = vmul.f32 %v2578, %v3640
        %v3803 = vmul.f32 %v2769, %v3642
        %v3804 = vmul.f32 %v2771, %v3644
        %v3805 = vmul.f32 %v2582, %v3646
        %v3806 = vmul.f32 %v2584, %v3648
        %v3807 = vmul.f32 %v2775, %v3650
        %v3808 = vmul.f32 %v2777, %v3652
        %v3809 = vmul.f32 %v2586, %v3654
        %v3810 = vmul.f32 %v2588, %v3656
        %v3811 = vmul.f32 %v2779, %v3658
        %v3812 = vmul.f32 %v2781, %v3660
        %v3813 = vmul.f32 %v2592, %v3662
        %v3814 = vmul.f32 %v2594, %v3664
        %v3815 = vmul.f32 %v2785, %v3666
        %v3816 = vmul.f32 %v2787, %v3668
        %v3817 = vmul.f32 %v2596, %v3670
        %v3818 = vmul.f32 %v2598, %v3672
        %v3819 = vmul.f32 %v2789, %v3674
        %v3820 = vmul.f32 %v2791, %v3676
        %v3821 = vmul.f32 %v2602, %v3678
        %v3822 = vmul.f32 %v2604, %v3680
        %v3823 = vmul.f32 %v2795, %v3682
        %v3824 = vmul.f32 %v2797, %v3684
        %v3825 = vmul.f32 %v2606, %v3686
        %v3826 = vmul.f32 %v2608, %v3688
        %v3827 = vmul.f32 %v2799, %v3690
        %v3828 = vmul.f32 %v2801, %v3692
        %v3829 = vmul.f32 %v2612, %v3694
        %v3830 = vmul.f32 %v2614, %v3696
        %v3831 = vmul.f32 %v2805, %v3698
        %v3832 = vmul.f32 %v2807, %v3700
        %v3833 = vmul.f32 %v2616, %v3702
        %v3834 = vmul.f32 %v2618, %v3704
        %v3835 = vmul.f32 %v2809, %v3706
        %v3836 = vmul.f32 %v2811, %v3708
        %v3837 = vpack.c.bf16 %v3713, %v3709
        %v3838 = vpack.c.bf16 %v3714, %v3710
        %v3839 = vpack.c.bf16 %v3715, %v3711
        %v3840 = vpack.c.bf16 %v3716, %v3712
        %v3841 = vpack.c.bf16 %v3721, %v3717
        %v3842 = vpack.c.bf16 %v3722, %v3718
        %v3843 = vpack.c.bf16 %v3723, %v3719
        %v3844 = vpack.c.bf16 %v3724, %v3720
        %v3845 = vpack.c.bf16 %v3729, %v3725
        %v3846 = vpack.c.bf16 %v3730, %v3726
        %v3847 = vpack.c.bf16 %v3731, %v3727
        %v3848 = vpack.c.bf16 %v3732, %v3728
        %v3849 = vpack.c.bf16 %v3737, %v3733
        %v3850 = vpack.c.bf16 %v3738, %v3734
        %v3851 = vpack.c.bf16 %v3739, %v3735
        %v3852 = vpack.c.bf16 %v3740, %v3736
        %v3853 = vpack.c.bf16 %v3745, %v3741
        %v3854 = vpack.c.bf16 %v3746, %v3742
        %v3855 = vpack.c.bf16 %v3747, %v3743
        %v3856 = vpack.c.bf16 %v3748, %v3744
        %v3857 = vpack.c.bf16 %v3753, %v3749
        %v3858 = vpack.c.bf16 %v3754, %v3750
        %v3859 = vpack.c.bf16 %v3755, %v3751
        %v3860 = vpack.c.bf16 %v3756, %v3752
        %v3861 = vpack.c.bf16 %v3761, %v3757
        %v3862 = vpack.c.bf16 %v3762, %v3758
        %v3863 = vpack.c.bf16 %v3763, %v3759
        %v3864 = vpack.c.bf16 %v3764, %v3760
        %v3865 = vpack.c.bf16 %v3769, %v3765
        %v3866 = vpack.c.bf16 %v3770, %v3766
        %v3867 = vpack.c.bf16 %v3771, %v3767
        %v3868 = vpack.c.bf16 %v3772, %v3768
        %v3869 = vpack.c.bf16 %v3777, %v3773
        %v3870 = vpack.c.bf16 %v3778, %v3774
        %v3871 = vpack.c.bf16 %v3779, %v3775
        %v3872 = vpack.c.bf16 %v3780, %v3776
        %v3873 = vpack.c.bf16 %v3785, %v3781
        %v3874 = vpack.c.bf16 %v3786, %v3782
        %v3875 = vpack.c.bf16 %v3787, %v3783
        %v3876 = vpack.c.bf16 %v3788, %v3784
        %v3877 = vpack.c.bf16 %v3793, %v3789
        %v3878 = vpack.c.bf16 %v3794, %v3790
        %v3879 = vpack.c.bf16 %v3795, %v3791
        %v3880 = vpack.c.bf16 %v3796, %v3792
        %v3881 = vpack.c.bf16 %v3801, %v3797
        %v3882 = vpack.c.bf16 %v3802, %v3798
        %v3883 = vpack.c.bf16 %v3803, %v3799
        %v3884 = vpack.c.bf16 %v3804, %v3800
        %v3885 = vpack.c.bf16 %v3809, %v3805
        %v3886 = vpack.c.bf16 %v3810, %v3806
        %v3887 = vpack.c.bf16 %v3811, %v3807
        %v3888 = vpack.c.bf16 %v3812, %v3808
        %v3889 = vpack.c.bf16 %v3817, %v3813
        %v3890 = vpack.c.bf16 %v3818, %v3814
        %v3891 = vpack.c.bf16 %v3819, %v3815
        %v3892 = vpack.c.bf16 %v3820, %v3816
        %v3893 = vpack.c.bf16 %v3825, %v3821
        %v3894 = vpack.c.bf16 %v3826, %v3822
        %v3895 = vpack.c.bf16 %v3827, %v3823
        %v3896 = vpack.c.bf16 %v3828, %v3824
        %v3897 = vpack.c.bf16 %v3833, %v3829
        %v3898 = vpack.c.bf16 %v3834, %v3830
        %v3899 = vpack.c.bf16 %v3835, %v3831
        %v3900 = vpack.c.bf16 %v3836, %v3832
        %v3901 = vld [vmem:[%s8] sm:$0xf]
        %v3902 = vld [vmem:[%s8 + $0x4] sm:$0xf]
        %v3903 = vld [vmem:[%s8 + $0x8] sm:$0xf]
        %v3904 = vld [vmem:[%s8 + $0xc] sm:$0xf]
        %v3905 = vld [vmem:[%s8 + $0x10] sm:$0xf]
        %v3906 = vld [vmem:[%s8 + $0x14] sm:$0xf]
        %v3907 = vld [vmem:[%s8 + $0x18] sm:$0xf]
        %v3908 = vld [vmem:[%s8 + $0x1c] sm:$0xf]
        %v3909 = vld [vmem:[%s8 + $0x20] sm:$0xf]
        %v3910 = vld [vmem:[%s8 + $0x24] sm:$0xf]
        %v3911 = vld [vmem:[%s8 + $0x28] sm:$0xf]
        %v3912 = vld [vmem:[%s8 + $0x2c] sm:$0xf]
        %v3913 = vld [vmem:[%s8 + $0x30] sm:$0xf]
        %v3914 = vld [vmem:[%s8 + $0x34] sm:$0xf]
        %v3915 = vld [vmem:[%s8 + $0x38] sm:$0xf]
        %v3916 = vld [vmem:[%s8 + $0x3c] sm:$0xf]
        %v3917 = vld [vmem:[%s8 + $0x40] sm:$0xf]
        %v3918 = vld [vmem:[%s8 + $0x44] sm:$0xf]
        %v3919 = vld [vmem:[%s8 + $0x48] sm:$0xf]
        %v3920 = vld [vmem:[%s8 + $0x4c] sm:$0xf]
        %v3921 = vld [vmem:[%s8 + $0x50] sm:$0xf]
        %v3922 = vld [vmem:[%s8 + $0x54] sm:$0xf]
        %v3923 = vld [vmem:[%s8 + $0x58] sm:$0xf]
        %v3924 = vld [vmem:[%s8 + $0x5c] sm:$0xf]
        %v3925 = vld [vmem:[%s8 + $0x60] sm:$0xf]
        %v3926 = vld [vmem:[%s8 + $0x64] sm:$0xf]
        %v3927 = vld [vmem:[%s8 + $0x68] sm:$0xf]
        %v3928 = vld [vmem:[%s8 + $0x6c] sm:$0xf]
        %v3929 = vld [vmem:[%s8 + $0x70] sm:$0xf]
        %v3930 = vld [vmem:[%s8 + $0x74] sm:$0xf]
        %v3931 = vld [vmem:[%s8 + $0x78] sm:$0xf]
        %v3932 = vld [vmem:[%s8 + $0x7c] sm:$0xf]
        %v3933 = vld [vmem:[%s8 + $0x80] sm:$0xf]
        %v3934 = vld [vmem:[%s8 + $0x84] sm:$0xf]
        %v3935 = vld [vmem:[%s8 + $0x88] sm:$0xf]
        %v3936 = vld [vmem:[%s8 + $0x8c] sm:$0xf]
        %v3937 = vld [vmem:[%s8 + $0x90] sm:$0xf]
        %v3938 = vld [vmem:[%s8 + $0x94] sm:$0xf]
        %v3939 = vld [vmem:[%s8 + $0x98] sm:$0xf]
        %v3940 = vld [vmem:[%s8 + $0x9c] sm:$0xf]
        %v3941 = vld [vmem:[%s8 + $0xa0] sm:$0xf]
        %v3942 = vld [vmem:[%s8 + $0xa4] sm:$0xf]
        %v3943 = vld [vmem:[%s8 + $0xa8] sm:$0xf]
        %v3944 = vld [vmem:[%s8 + $0xac] sm:$0xf]
        %v3945 = vld [vmem:[%s8 + $0xb0] sm:$0xf]
        %v3946 = vld [vmem:[%s8 + $0xb4] sm:$0xf]
        %v3947 = vld [vmem:[%s8 + $0xb8] sm:$0xf]
        %v3948 = vld [vmem:[%s8 + $0xbc] sm:$0xf]
        %v3949 = vld [vmem:[%s8 + $0xc0] sm:$0xf]
        %v3950 = vld [vmem:[%s8 + $0xc4] sm:$0xf]
        %v3951 = vld [vmem:[%s8 + $0xc8] sm:$0xf]
        %v3952 = vld [vmem:[%s8 + $0xcc] sm:$0xf]
        %v3953 = vld [vmem:[%s8 + $0xd0] sm:$0xf]
        %v3954 = vld [vmem:[%s8 + $0xd4] sm:$0xf]
        %v3955 = vld [vmem:[%s8 + $0xd8] sm:$0xf]
        %v3956 = vld [vmem:[%s8 + $0xdc] sm:$0xf]
        %v3957 = vld [vmem:[%s8 + $0xe0] sm:$0xf]
        %v3958 = vld [vmem:[%s8 + $0xe4] sm:$0xf]
        %v3959 = vld [vmem:[%s8 + $0xe8] sm:$0xf]
        %v3960 = vld [vmem:[%s8 + $0xec] sm:$0xf]
        %v3961 = vld [vmem:[%s8 + $0xf0] sm:$0xf]
        %v3962 = vld [vmem:[%s8 + $0xf4] sm:$0xf]
        %v3963 = vld [vmem:[%s8 + $0xf8] sm:$0xf]
        %v3964 = vld [vmem:[%s8 + $0xfc] sm:$0xf]
        %v3965 = vld [vmem:[%s9] sm:$0x1]
        %v3967 = vlaneseq
        %v3968 = vshrl.u32 %v3967, 7
        %v3969 = vsub.s32 0, %v3968
        %v3970 = vrot.slane %v3965, %v3969
        %v4036 = vunpack.c.l.b16 %v3901
        %v4037 = vunpack.c.l.b16 %v3902
        %v4038 = vunpack.c.l.b16 %v3903
        %v4039 = vunpack.c.l.b16 %v3904
        %v4040 = vunpack.c.l.b16 %v3905
        %v4041 = vunpack.c.l.b16 %v3906
        %v4042 = vunpack.c.l.b16 %v3907
        %v4043 = vunpack.c.l.b16 %v3908
        %v4044 = vunpack.c.l.b16 %v3909
        %v4045 = vunpack.c.l.b16 %v3910
        %v4046 = vunpack.c.l.b16 %v3911
        %v4047 = vunpack.c.l.b16 %v3912
        %v4048 = vunpack.c.l.b16 %v3913
        %v4049 = vunpack.c.l.b16 %v3914
        %v4050 = vunpack.c.l.b16 %v3915
        %v4051 = vunpack.c.l.b16 %v3916
        %v4052 = vunpack.c.l.b16 %v3917
        %v4053 = vunpack.c.l.b16 %v3918
        %v4054 = vunpack.c.l.b16 %v3919
        %v4055 = vunpack.c.l.b16 %v3920
        %v4056 = vunpack.c.l.b16 %v3921
        %v4057 = vunpack.c.l.b16 %v3922
        %v4058 = vunpack.c.l.b16 %v3923
        %v4059 = vunpack.c.l.b16 %v3924
        %v4060 = vunpack.c.l.b16 %v3925
        %v4061 = vunpack.c.l.b16 %v3926
        %v4062 = vunpack.c.l.b16 %v3927
        %v4063 = vunpack.c.l.b16 %v3928
        %v4064 = vunpack.c.l.b16 %v3929
        %v4065 = vunpack.c.l.b16 %v3930
        %v4066 = vunpack.c.l.b16 %v3931
        %v4067 = vunpack.c.l.b16 %v3932
        %v4068 = vunpack.c.l.b16 %v3933
        %v4069 = vunpack.c.l.b16 %v3934
        %v4070 = vunpack.c.l.b16 %v3935
        %v4071 = vunpack.c.l.b16 %v3936
        %v4072 = vunpack.c.l.b16 %v3937
        %v4073 = vunpack.c.l.b16 %v3938
        %v4074 = vunpack.c.l.b16 %v3939
        %v4075 = vunpack.c.l.b16 %v3940
        %v4076 = vunpack.c.l.b16 %v3941
        %v4077 = vunpack.c.l.b16 %v3942
        %v4078 = vunpack.c.l.b16 %v3943
        %v4079 = vunpack.c.l.b16 %v3944
        %v4080 = vunpack.c.l.b16 %v3945
        %v4081 = vunpack.c.l.b16 %v3946
        %v4082 = vunpack.c.l.b16 %v3947
        %v4083 = vunpack.c.l.b16 %v3948
        %v4084 = vunpack.c.l.b16 %v3949
        %v4085 = vunpack.c.l.b16 %v3950
        %v4086 = vunpack.c.l.b16 %v3951
        %v4087 = vunpack.c.l.b16 %v3952
        %v4088 = vunpack.c.l.b16 %v3953
        %v4089 = vunpack.c.l.b16 %v3954
        %v4090 = vunpack.c.l.b16 %v3955
        %v4091 = vunpack.c.l.b16 %v3956
        %v4092 = vunpack.c.l.b16 %v3957
        %v4093 = vunpack.c.l.b16 %v3958
        %v4094 = vunpack.c.l.b16 %v3959
        %v4095 = vunpack.c.l.b16 %v3960
        %v4096 = vunpack.c.l.b16 %v3961
        %v4097 = vunpack.c.l.b16 %v3962
        %v4098 = vunpack.c.l.b16 %v3963
        %v4099 = vunpack.c.l.b16 %v3964
        %v4100 = vpack.c.b16 %v4037, %v4036
        %v4101 = vpack.c.b16 %v4039, %v4038
        %v4102 = vpack.c.b16 %v4041, %v4040
        %v4103 = vpack.c.b16 %v4043, %v4042
        %v4104 = vpack.c.b16 %v4045, %v4044
        %v4105 = vpack.c.b16 %v4047, %v4046
        %v4106 = vpack.c.b16 %v4049, %v4048
        %v4107 = vpack.c.b16 %v4051, %v4050
        %v4108 = vpack.c.b16 %v4053, %v4052
        %v4109 = vpack.c.b16 %v4055, %v4054
        %v4110 = vpack.c.b16 %v4057, %v4056
        %v4111 = vpack.c.b16 %v4059, %v4058
        %v4112 = vpack.c.b16 %v4061, %v4060
        %v4113 = vpack.c.b16 %v4063, %v4062
        %v4114 = vpack.c.b16 %v4065, %v4064
        %v4115 = vpack.c.b16 %v4067, %v4066
        %v4116 = vpack.c.b16 %v4069, %v4068
        %v4117 = vpack.c.b16 %v4071, %v4070
        %v4118 = vpack.c.b16 %v4073, %v4072
        %v4119 = vpack.c.b16 %v4075, %v4074
        %v4120 = vpack.c.b16 %v4077, %v4076
        %v4121 = vpack.c.b16 %v4079, %v4078
        %v4122 = vpack.c.b16 %v4081, %v4080
        %v4123 = vpack.c.b16 %v4083, %v4082
        %v4124 = vpack.c.b16 %v4085, %v4084
        %v4125 = vpack.c.b16 %v4087, %v4086
        %v4126 = vpack.c.b16 %v4089, %v4088
        %v4127 = vpack.c.b16 %v4091, %v4090
        %v4128 = vpack.c.b16 %v4093, %v4092
        %v4129 = vpack.c.b16 %v4095, %v4094
        %v4130 = vpack.c.b16 %v4097, %v4096
        %v4131 = vpack.c.b16 %v4099, %v4098
        %4164 = vmatprep.subr.bf16.mxu0 0
        %4165 = vmatpush1.bf16.msra.mxu0 %v4100
        %4166 = vmatprep.subr.bf16.mxu0 0
        %4167 = vmatpush1.bf16.msra.mxu0 %v4101
        %4168 = vmatprep.subr.bf16.mxu0 0
        %4169 = vmatpush1.bf16.msra.mxu0 %v4102
        %4170 = vmatprep.subr.bf16.mxu0 0
        %4171 = vmatpush1.bf16.msra.mxu0 %v4103
        %4172 = vmatprep.subr.bf16.mxu0 0
        %4173 = vmatpush1.bf16.msra.mxu0 %v4104
        %4174 = vmatprep.subr.bf16.mxu0 0
        %4175 = vmatpush1.bf16.msra.mxu0 %v4105
        %4176 = vmatprep.subr.bf16.mxu0 0
        %4177 = vmatpush1.bf16.msra.mxu0 %v4106
        %4178 = vmatprep.subr.bf16.mxu0 0
        %4179 = vmatpush1.bf16.msra.mxu0 %v4107
        %4180 = vmatprep.subr.bf16.mxu0 0
        %4181 = vmatpush1.bf16.msra.mxu0 %v4108
        %4182 = vmatprep.subr.bf16.mxu0 0
        %4183 = vmatpush1.bf16.msra.mxu0 %v4109
        %4184 = vmatprep.subr.bf16.mxu0 0
        %4185 = vmatpush1.bf16.msra.mxu0 %v4110
        %4186 = vmatprep.subr.bf16.mxu0 0
        %4187 = vmatpush1.bf16.msra.mxu0 %v4111
        %4188 = vmatprep.subr.bf16.mxu0 0
        %4189 = vmatpush1.bf16.msra.mxu0 %v4112
        %4190 = vmatprep.subr.bf16.mxu0 0
        %4191 = vmatpush1.bf16.msra.mxu0 %v4113
        %4192 = vmatprep.subr.bf16.mxu0 0
        %4193 = vmatpush1.bf16.msra.mxu0 %v4114
        %4194 = vmatprep.subr.bf16.mxu0 0
        %4195 = vmatpush1.bf16.msra.mxu0 %v4115
        %4196 = vmatprep.mubr.bf16.mxu0 %v3838
        %4197 = vmatmul.mubr.bf16.gmra.mrb[0].mxu0 %v3837
        %v4198 = vpop.f32.mrb[0].mxu0
        %v4199 = vadd.f32 %v3970, %v4198
        %v4200 = vpop.f32.mrb[0].mxu0
        %v4201 = vpop.f32.mrb[0].mxu0
        %v4202 = vadd.f32 %v3970, %v4201
        %v4203 = vpop.f32.mrb[0].mxu0
        %4204 = vmatprep.mubr.bf16.mxu0 %v3842
        %4205 = vmatmul.mubr.bf16.gmra.mrb[0].mxu0 %v3841
        %v4206 = vpop.f32.mrb[0].mxu0
        %v4207 = vadd.f32 %v3970, %v4206
        %v4208 = vpop.f32.mrb[0].mxu0
        %v4209 = vpop.f32.mrb[0].mxu0
        %v4210 = vadd.f32 %v3970, %v4209
        %v4211 = vpop.f32.mrb[0].mxu0
        %4212 = vmatprep.mubr.bf16.mxu0 %v3846
        %4213 = vmatmul.mubr.bf16.gmra.mrb[0].mxu0 %v3845
        %v4214 = vpop.f32.mrb[0].mxu0
        %v4215 = vadd.f32 %v3970, %v4214
        %v4216 = vpop.f32.mrb[0].mxu0
        %v4217 = vpop.f32.mrb[0].mxu0
        %v4218 = vadd.f32 %v3970, %v4217
        %v4219 = vpop.f32.mrb[0].mxu0
        %4220 = vmatprep.mubr.bf16.mxu0 %v3850
        %4221 = vmatmul.mubr.bf16.gmra.mrb[0].mxu0 %v3849
        %v4222 = vpop.f32.mrb[0].mxu0
        %v4223 = vadd.f32 %v3970, %v4222
        %v4224 = vpop.f32.mrb[0].mxu0
        %v4225 = vpop.f32.mrb[0].mxu0
        %v4226 = vadd.f32 %v3970, %v4225
        %v4227 = vpop.f32.mrb[0].mxu0
        %4228 = vmatprep.mubr.bf16.mxu0 %v3854
        %4229 = vmatmul.mubr.bf16.gmra.mrb[0].mxu0 %v3853
        %v4230 = vpop.f32.mrb[0].mxu0
        %v4231 = vadd.f32 %v3970, %v4230
        %v4232 = vpop.f32.mrb[0].mxu0
        %v4233 = vpop.f32.mrb[0].mxu0
        %v4234 = vadd.f32 %v3970, %v4233
        %v4235 = vpop.f32.mrb[0].mxu0
        %4236 = vmatprep.mubr.bf16.mxu0 %v3858
        %4237 = vmatmul.mubr.bf16.gmra.mrb[0].mxu0 %v3857
        %v4238 = vpop.f32.mrb[0].mxu0
        %v4239 = vadd.f32 %v3970, %v4238
        %v4240 = vpop.f32.mrb[0].mxu0
        %v4241 = vpop.f32.mrb[0].mxu0
        %v4242 = vadd.f32 %v3970, %v4241
        %v4243 = vpop.f32.mrb[0].mxu0
        %4244 = vmatprep.mubr.bf16.mxu0 %v3862
        %4245 = vmatmul.mubr.bf16.gmra.mrb[0].mxu0 %v3861
        %v4246 = vpop.f32.mrb[0].mxu0
        %v4247 = vadd.f32 %v3970, %v4246
        %v4248 = vpop.f32.mrb[0].mxu0
        %v4249 = vpop.f32.mrb[0].mxu0
        %v4250 = vadd.f32 %v3970, %v4249
        %v4251 = vpop.f32.mrb[0].mxu0
        %4252 = vmatprep.mubr.bf16.mxu0 %v3866
        %4253 = vmatmul.mubr.bf16.gmra.mrb[0].mxu0 %v3865
        %v4254 = vpop.f32.mrb[0].mxu0
        %v4255 = vadd.f32 %v3970, %v4254
        %v4256 = vpop.f32.mrb[0].mxu0
        %v4257 = vpop.f32.mrb[0].mxu0
        %v4258 = vadd.f32 %v3970, %v4257
        %v4259 = vpop.f32.mrb[0].mxu0
        %4260 = vmatprep.mubr.bf16.mxu0 %v3870
        %4261 = vmatmul.mubr.bf16.gmra.mrb[0].mxu0 %v3869
        %v4262 = vpop.f32.mrb[0].mxu0
        %v4263 = vadd.f32 %v3970, %v4262
        %v4264 = vpop.f32.mrb[0].mxu0
        %v4265 = vpop.f32.mrb[0].mxu0
        %v4266 = vadd.f32 %v3970, %v4265
        %v4267 = vpop.f32.mrb[0].mxu0
        %4268 = vmatprep.mubr.bf16.mxu0 %v3874
        %4269 = vmatmul.mubr.bf16.gmra.mrb[0].mxu0 %v3873
        %v4270 = vpop.f32.mrb[0].mxu0
        %v4271 = vadd.f32 %v3970, %v4270
        %v4272 = vpop.f32.mrb[0].mxu0
        %v4273 = vpop.f32.mrb[0].mxu0
        %v4274 = vadd.f32 %v3970, %v4273
        %v4275 = vpop.f32.mrb[0].mxu0
        %4276 = vmatprep.mubr.bf16.mxu0 %v3878
        %4277 = vmatmul.mubr.bf16.gmra.mrb[0].mxu0 %v3877
        %v4278 = vpop.f32.mrb[0].mxu0
        %v4279 = vadd.f32 %v3970, %v4278
        %v4280 = vpop.f32.mrb[0].mxu0
        %v4281 = vpop.f32.mrb[0].mxu0
        %v4282 = vadd.f32 %v3970, %v4281
        %v4283 = vpop.f32.mrb[0].mxu0
        %4284 = vmatprep.mubr.bf16.mxu0 %v3882
        %4285 = vmatmul.mubr.bf16.gmra.mrb[0].mxu0 %v3881
        %v4286 = vpop.f32.mrb[0].mxu0
        %v4287 = vadd.f32 %v3970, %v4286
        %v4288 = vpop.f32.mrb[0].mxu0
        %v4289 = vpop.f32.mrb[0].mxu0
        %v4290 = vadd.f32 %v3970, %v4289
        %v4291 = vpop.f32.mrb[0].mxu0
        %4292 = vmatprep.mubr.bf16.mxu0 %v3886
        %4293 = vmatmul.mubr.bf16.gmra.mrb[0].mxu0 %v3885
        %v4294 = vpop.f32.mrb[0].mxu0
        %v4295 = vadd.f32 %v3970, %v4294
        %v4296 = vpop.f32.mrb[0].mxu0
        %v4297 = vpop.f32.mrb[0].mxu0
        %v4298 = vadd.f32 %v3970, %v4297
        %v4299 = vpop.f32.mrb[0].mxu0
        %4300 = vmatprep.mubr.bf16.mxu0 %v3890
        %4301 = vmatmul.mubr.bf16.gmra.mrb[0].mxu0 %v3889
        %v4302 = vpop.f32.mrb[0].mxu0
        %v4303 = vadd.f32 %v3970, %v4302
        %v4304 = vpop.f32.mrb[0].mxu0
        %v4305 = vpop.f32.mrb[0].mxu0
        %v4306 = vadd.f32 %v3970, %v4305
        %v4307 = vpop.f32.mrb[0].mxu0
        %4308 = vmatprep.mubr.bf16.mxu0 %v3894
        %4309 = vmatmul.mubr.bf16.gmra.mrb[0].mxu0 %v3893
        %v4310 = vpop.f32.mrb[0].mxu0
        %v4311 = vadd.f32 %v3970, %v4310
        %v4312 = vpop.f32.mrb[0].mxu0
        %v4313 = vpop.f32.mrb[0].mxu0
        %v4314 = vadd.f32 %v3970, %v4313
        %v4315 = vpop.f32.mrb[0].mxu0
        %4316 = vmatprep.mubr.bf16.mxu0 %v3898
        %4317 = vmatmul.mubr.bf16.gmra.mrb[0].mxu0 %v3897
        %v4318 = vpop.f32.mrb[0].mxu0
        %v4319 = vadd.f32 %v3970, %v4318
        %v4320 = vpop.f32.mrb[0].mxu0
        %v4321 = vpop.f32.mrb[0].mxu0
        %v4322 = vadd.f32 %v3970, %v4321
        %v4323 = vpop.f32.mrb[0].mxu0
        %4324 = vdwg.mxu0
        %4325 = vmatprep.subr.bf16.mxu0 0
        %4326 = vmatpush1.bf16.msra.mxu0 %v4116
        %4327 = vmatprep.subr.bf16.mxu0 0
        %4328 = vmatpush1.bf16.msra.mxu0 %v4117
        %4329 = vmatprep.subr.bf16.mxu0 0
        %4330 = vmatpush1.bf16.msra.mxu0 %v4118
        %4331 = vmatprep.subr.bf16.mxu0 0
        %4332 = vmatpush1.bf16.msra.mxu0 %v4119
        %4333 = vmatprep.subr.bf16.mxu0 0
        %4334 = vmatpush1.bf16.msra.mxu0 %v4120
        %4335 = vmatprep.subr.bf16.mxu0 0
        %4336 = vmatpush1.bf16.msra.mxu0 %v4121
        %4337 = vmatprep.subr.bf16.mxu0 0
        %4338 = vmatpush1.bf16.msra.mxu0 %v4122
        %4339 = vmatprep.subr.bf16.mxu0 0
        %4340 = vmatpush1.bf16.msra.mxu0 %v4123
        %4341 = vmatprep.subr.bf16.mxu0 0
        %4342 = vmatpush1.bf16.msra.mxu0 %v4124
        %4343 = vmatprep.subr.bf16.mxu0 0
        %4344 = vmatpush1.bf16.msra.mxu0 %v4125
        %4345 = vmatprep.subr.bf16.mxu0 0
        %4346 = vmatpush1.bf16.msra.mxu0 %v4126
        %4347 = vmatprep.subr.bf16.mxu0 0
        %4348 = vmatpush1.bf16.msra.mxu0 %v4127
        %4349 = vmatprep.subr.bf16.mxu0 0
        %4350 = vmatpush1.bf16.msra.mxu0 %v4128
        %4351 = vmatprep.subr.bf16.mxu0 0
        %4352 = vmatpush1.bf16.msra.mxu0 %v4129
        %4353 = vmatprep.subr.bf16.mxu0 0
        %4354 = vmatpush1.bf16.msra.mxu0 %v4130
        %4355 = vmatprep.subr.bf16.mxu0 0
        %4356 = vmatpush1.bf16.msra.mxu0 %v4131
        %4357 = vmatprep.mubr.bf16.mxu0 %v3840
        %4358 = vmatmul.mubr.bf16.gmra.mrb[0].mxu0 %v3839
        %v4359 = vpop.f32.mrb[0].mxu0
        %v4360 = vadd.f32 %v4199, %v4359
        %v4361 = vpop.f32.mrb[0].mxu0
        %v4362 = vpop.f32.mrb[0].mxu0
        %v4363 = vadd.f32 %v4202, %v4362
        %v4364 = vpop.f32.mrb[0].mxu0
        %4365 = vmatprep.mubr.bf16.mxu0 %v3844
        %4366 = vmatmul.mubr.bf16.gmra.mrb[0].mxu0 %v3843
        %v4367 = vpop.f32.mrb[0].mxu0
        %v4368 = vadd.f32 %v4207, %v4367
        %v4369 = vpop.f32.mrb[0].mxu0
        %v4370 = vpop.f32.mrb[0].mxu0
        %v4371 = vadd.f32 %v4210, %v4370
        %v4372 = vpop.f32.mrb[0].mxu0
        %4373 = vmatprep.mubr.bf16.mxu0 %v3848
        %4374 = vmatmul.mubr.bf16.gmra.mrb[0].mxu0 %v3847
        %v4375 = vpop.f32.mrb[0].mxu0
        %v4376 = vadd.f32 %v4215, %v4375
        %v4377 = vpop.f32.mrb[0].mxu0
        %v4378 = vpop.f32.mrb[0].mxu0
        %v4379 = vadd.f32 %v4218, %v4378
        %v4380 = vpop.f32.mrb[0].mxu0
        %4381 = vmatprep.mubr.bf16.mxu0 %v3852
        %4382 = vmatmul.mubr.bf16.gmra.mrb[0].mxu0 %v3851
        %v4383 = vpop.f32.mrb[0].mxu0
        %v4384 = vadd.f32 %v4223, %v4383
        %v4385 = vpop.f32.mrb[0].mxu0
        %v4386 = vpop.f32.mrb[0].mxu0
        %v4387 = vadd.f32 %v4226, %v4386
        %v4388 = vpop.f32.mrb[0].mxu0
        %4389 = vmatprep.mubr.bf16.mxu0 %v3856
        %4390 = vmatmul.mubr.bf16.gmra.mrb[0].mxu0 %v3855
        %v4391 = vpop.f32.mrb[0].mxu0
        %v4392 = vadd.f32 %v4231, %v4391
        %v4393 = vpop.f32.mrb[0].mxu0
        %v4394 = vpop.f32.mrb[0].mxu0
        %v4395 = vadd.f32 %v4234, %v4394
        %v4396 = vpop.f32.mrb[0].mxu0
        %4397 = vmatprep.mubr.bf16.mxu0 %v3860
        %4398 = vmatmul.mubr.bf16.gmra.mrb[0].mxu0 %v3859
        %v4399 = vpop.f32.mrb[0].mxu0
        %v4400 = vadd.f32 %v4239, %v4399
        %v4401 = vpop.f32.mrb[0].mxu0
        %v4402 = vpop.f32.mrb[0].mxu0
        %v4403 = vadd.f32 %v4242, %v4402
        %v4404 = vpop.f32.mrb[0].mxu0
        %4405 = vmatprep.mubr.bf16.mxu0 %v3864
        %4406 = vmatmul.mubr.bf16.gmra.mrb[0].mxu0 %v3863
        %v4407 = vpop.f32.mrb[0].mxu0
        %v4408 = vadd.f32 %v4247, %v4407
        %v4409 = vpop.f32.mrb[0].mxu0
        %v4410 = vpop.f32.mrb[0].mxu0
        %v4411 = vadd.f32 %v4250, %v4410
        %v4412 = vpop.f32.mrb[0].mxu0
        %4413 = vmatprep.mubr.bf16.mxu0 %v3868
        %4414 = vmatmul.mubr.bf16.gmra.mrb[0].mxu0 %v3867
        %v4415 = vpop.f32.mrb[0].mxu0
        %v4416 = vadd.f32 %v4255, %v4415
        %v4417 = vpop.f32.mrb[0].mxu0
        %v4418 = vpop.f32.mrb[0].mxu0
        %v4419 = vadd.f32 %v4258, %v4418
        %v4420 = vpop.f32.mrb[0].mxu0
        %4421 = vmatprep.mubr.bf16.mxu0 %v3872
        %4422 = vmatmul.mubr.bf16.gmra.mrb[0].mxu0 %v3871
        %v4423 = vpop.f32.mrb[0].mxu0
        %v4424 = vadd.f32 %v4263, %v4423
        %v4425 = vpop.f32.mrb[0].mxu0
        %v4426 = vpop.f32.mrb[0].mxu0
        %v4427 = vadd.f32 %v4266, %v4426
        %v4428 = vpop.f32.mrb[0].mxu0
        %4429 = vmatprep.mubr.bf16.mxu0 %v3876
        %4430 = vmatmul.mubr.bf16.gmra.mrb[0].mxu0 %v3875
        %v4431 = vpop.f32.mrb[0].mxu0
        %v4432 = vadd.f32 %v4271, %v4431
        %v4433 = vpop.f32.mrb[0].mxu0
        %v4434 = vpop.f32.mrb[0].mxu0
        %v4435 = vadd.f32 %v4274, %v4434
        %v4436 = vpop.f32.mrb[0].mxu0
        %4437 = vmatprep.mubr.bf16.mxu0 %v3880
        %4438 = vmatmul.mubr.bf16.gmra.mrb[0].mxu0 %v3879
        %v4439 = vpop.f32.mrb[0].mxu0
        %v4440 = vadd.f32 %v4279, %v4439
        %v4441 = vpop.f32.mrb[0].mxu0
        %v4442 = vpop.f32.mrb[0].mxu0
        %v4443 = vadd.f32 %v4282, %v4442
        %v4444 = vpop.f32.mrb[0].mxu0
        %4445 = vmatprep.mubr.bf16.mxu0 %v3884
        %4446 = vmatmul.mubr.bf16.gmra.mrb[0].mxu0 %v3883
        %v4447 = vpop.f32.mrb[0].mxu0
        %v4448 = vadd.f32 %v4287, %v4447
        %v4449 = vpop.f32.mrb[0].mxu0
        %v4450 = vpop.f32.mrb[0].mxu0
        %v4451 = vadd.f32 %v4290, %v4450
        %v4452 = vpop.f32.mrb[0].mxu0
        %4453 = vmatprep.mubr.bf16.mxu0 %v3888
        %4454 = vmatmul.mubr.bf16.gmra.mrb[0].mxu0 %v3887
        %v4455 = vpop.f32.mrb[0].mxu0
        %v4456 = vadd.f32 %v4295, %v4455
        %v4457 = vpop.f32.mrb[0].mxu0
        %v4458 = vpop.f32.mrb[0].mxu0
        %v4459 = vadd.f32 %v4298, %v4458
        %v4460 = vpop.f32.mrb[0].mxu0
        %4461 = vmatprep.mubr.bf16.mxu0 %v3892
        %4462 = vmatmul.mubr.bf16.gmra.mrb[0].mxu0 %v3891
        %v4463 = vpop.f32.mrb[0].mxu0
        %v4464 = vadd.f32 %v4303, %v4463
        %v4465 = vpop.f32.mrb[0].mxu0
        %v4466 = vpop.f32.mrb[0].mxu0
        %v4467 = vadd.f32 %v4306, %v4466
        %v4468 = vpop.f32.mrb[0].mxu0
        %4469 = vmatprep.mubr.bf16.mxu0 %v3896
        %4470 = vmatmul.mubr.bf16.gmra.mrb[0].mxu0 %v3895
        %v4471 = vpop.f32.mrb[0].mxu0
        %v4472 = vadd.f32 %v4311, %v4471
        %v4473 = vpop.f32.mrb[0].mxu0
        %v4474 = vpop.f32.mrb[0].mxu0
        %v4475 = vadd.f32 %v4314, %v4474
        %v4476 = vpop.f32.mrb[0].mxu0
        %4477 = vmatprep.mubr.bf16.mxu0 %v3900
        %4478 = vmatmul.mubr.bf16.gmra.mrb[0].mxu0 %v3899
        %v4479 = vpop.f32.mrb[0].mxu0
        %v4480 = vadd.f32 %v4319, %v4479
        %v4481 = vpop.f32.mrb[0].mxu0
        %v4482 = vpop.f32.mrb[0].mxu0
        %v4483 = vadd.f32 %v4322, %v4482
        %v4484 = vpop.f32.mrb[0].mxu0
        %4485 = vdwg.mxu0
        %vm4486 = vcmask 64512
        %4487 = vst.msk [vmem:[%s419] sm:$0xff] %vm4486, %v4360
        %4488 = vst.msk [vmem:[%s419 + $0x8] sm:$0xff] %vm4486, %v4363
        %4489 = vst.msk [vmem:[%s419 + $0x10] sm:$0xff] %vm4486, %v4368
        %4490 = vst.msk [vmem:[%s419 + $0x18] sm:$0xff] %vm4486, %v4371
        %4491 = vst.msk [vmem:[%s419 + $0x20] sm:$0xff] %vm4486, %v4376
        %4492 = vst.msk [vmem:[%s419 + $0x28] sm:$0xff] %vm4486, %v4379
        %4493 = vst.msk [vmem:[%s419 + $0x30] sm:$0xff] %vm4486, %v4384
        %4494 = vst.msk [vmem:[%s419 + $0x38] sm:$0xff] %vm4486, %v4387
        %4495 = vst.msk [vmem:[%s419 + $0x40] sm:$0xff] %vm4486, %v4392
        %4496 = vst.msk [vmem:[%s419 + $0x48] sm:$0xff] %vm4486, %v4395
        %4497 = vst.msk [vmem:[%s419 + $0x50] sm:$0xff] %vm4486, %v4400
        %4498 = vst.msk [vmem:[%s419 + $0x58] sm:$0xff] %vm4486, %v4403
        %4499 = vst.msk [vmem:[%s419 + $0x60] sm:$0xff] %vm4486, %v4408
        %4500 = vst.msk [vmem:[%s419 + $0x68] sm:$0xff] %vm4486, %v4411
        %4501 = vst.msk [vmem:[%s419 + $0x70] sm:$0xff] %vm4486, %v4416
        %4502 = vst.msk [vmem:[%s419 + $0x78] sm:$0xff] %vm4486, %v4419
        %4503 = vst.msk [vmem:[%s419 + $0x80] sm:$0xff] %vm4486, %v4424
        %4504 = vst.msk [vmem:[%s419 + $0x88] sm:$0xff] %vm4486, %v4427
        %4505 = vst.msk [vmem:[%s419 + $0x90] sm:$0xff] %vm4486, %v4432
        %4506 = vst.msk [vmem:[%s419 + $0x98] sm:$0xff] %vm4486, %v4435
        %4507 = vst.msk [vmem:[%s419 + $0xa0] sm:$0xff] %vm4486, %v4440
        %4508 = vst.msk [vmem:[%s419 + $0xa8] sm:$0xff] %vm4486, %v4443
        %4509 = vst.msk [vmem:[%s419 + $0xb0] sm:$0xff] %vm4486, %v4448
        %4510 = vst.msk [vmem:[%s419 + $0xb8] sm:$0xff] %vm4486, %v4451
        %4511 = vst.msk [vmem:[%s419 + $0xc0] sm:$0xff] %vm4486, %v4456
        %4512 = vst.msk [vmem:[%s419 + $0xc8] sm:$0xff] %vm4486, %v4459
        %4513 = vst.msk [vmem:[%s419 + $0xd0] sm:$0xff] %vm4486, %v4464
        %4514 = vst.msk [vmem:[%s419 + $0xd8] sm:$0xff] %vm4486, %v4467
        %4515 = vst.msk [vmem:[%s419 + $0xe0] sm:$0xff] %vm4486, %v4472
        %4516 = vst.msk [vmem:[%s419 + $0xe8] sm:$0xff] %vm4486, %v4475
        %4517 = vst.msk [vmem:[%s419 + $0xf0] sm:$0xff] %vm4486, %v4480
        %4518 = vst.msk [vmem:[%s419 + $0xf8] sm:$0xff] %vm4486, %v4483
        %s4519 = sand.u32 %s258, 1
        %s4520 = sand.u32 %s258, 1
        %s4521 = smul.addr %s4520, 256
        %s4522 = scalar_lea.vmem [#allocation7], %s4521
        // Predicated region
        $region69: #{tpu_custom_call.1} parent=59 // pred_check
          %p4523 = pneg %p268
        $region70: #{tpu_custom_call.1} parent=59 // pred_check_branch
          %4525 = sbr.rel (%p4523) target = $region72
        $region71: #{tpu_custom_call.1} parent=59 // pred_region
          %s4526 = smul.u32 4, %s25
          %s4527 = smul.addr %s4526, 8
          %s4528 = scalar_lea.vmem %s10, %s4527
          // Predicated region
          $region73: #{tpu_custom_call.1} parent=71 // pred_check
            _
          $region74: #{tpu_custom_call.1} parent=71 // pred_check_branch
            %4530 = sbr.rel (0) target = $region76
          $region75: #{tpu_custom_call.1} parent=71 // pred_region
            // Predicated region
            $region77: #{tpu_custom_call.1} parent=75 // pred_check
              _
            $region78: #{tpu_custom_call.1} parent=75 // pred_check_branch
              %4532 = sbr.rel (0) target = $region80
            $region79: #{tpu_custom_call.1} parent=75 // pred_region
              // Predicated region
              $region92: #{tpu_custom_call.1} parent=79 // pred_check
                _
              $region93: #{tpu_custom_call.1} parent=79 // pred_check_branch
                %4609 = sbr.rel (0) target = $region95
              $region94: #{tpu_custom_call.1} parent=79 // pred_region
                loop: start=0, step=1, limit=1
                $region96: #{tpu_custom_call.1} parent=94 // loop_pre_header
                  _
                $region97: #{tpu_custom_call.1} parent=94 // loop_header
                  %s4611 = sphi 0, %s4615
                  %p4612 = scmp.ge.s32.totalorder %s4611, 1
                  %s4616 = sphi %s4522, %s4522
                  %s4617 = sphi %s4528, %s4528
                $region98: #{tpu_custom_call.1} parent=94 // loop_header_branch
                  %4614 = sbr.rel (%p4612) target = $region102
                $region99: #{tpu_custom_call.1} parent=94 // loop_body
                  %v4618 = vld [vmem:[%s4616] sm:$0xff]
                  %4619 = vst [vmem:[%s4617] sm:$0xff] %v4618
                  %v4620 = vld [vmem:[%s4616 + $0x8] sm:$0xff]
                  %4621 = vst [vmem:[%s4617 + $0x8] sm:$0xff] %v4620
                  %v4622 = vld [vmem:[%s4616 + $0x10] sm:$0xff]
                  %4623 = vst [vmem:[%s4617 + $0x10] sm:$0xff] %v4622
                  %v4624 = vld [vmem:[%s4616 + $0x18] sm:$0xff]
                  %4625 = vst [vmem:[%s4617 + $0x18] sm:$0xff] %v4624
                  %v4626 = vld [vmem:[%s4616 + $0x20] sm:$0xff]
                  %4627 = vst [vmem:[%s4617 + $0x80] sm:$0xff] %v4626
                  %v4628 = vld [vmem:[%s4616 + $0x28] sm:$0xff]
                  %4629 = vst [vmem:[%s4617 + $0x88] sm:$0xff] %v4628
                  %v4630 = vld [vmem:[%s4616 + $0x30] sm:$0xff]
                  %4631 = vst [vmem:[%s4617 + $0x90] sm:$0xff] %v4630
                  %v4632 = vld [vmem:[%s4616 + $0x38] sm:$0xff]
                  %4633 = vst [vmem:[%s4617 + $0x98] sm:$0xff] %v4632
                  %v4634 = vld [vmem:[%s4616 + $0x40] sm:$0xff]
                  %4635 = vst [vmem:[%s4617 + $0x100] sm:$0xff] %v4634
                  %v4636 = vld [vmem:[%s4616 + $0x48] sm:$0xff]
                  %4637 = vst [vmem:[%s4617 + $0x108] sm:$0xff] %v4636
                  %v4638 = vld [vmem:[%s4616 + $0x50] sm:$0xff]
                  %4639 = vst [vmem:[%s4617 + $0x110] sm:$0xff] %v4638
                  %v4640 = vld [vmem:[%s4616 + $0x58] sm:$0xff]
                  %4641 = vst [vmem:[%s4617 + $0x118] sm:$0xff] %v4640
                  %v4642 = vld [vmem:[%s4616 + $0x60] sm:$0xff]
                  %4643 = vst [vmem:[%s4617 + $0x180] sm:$0xff] %v4642
                  %v4644 = vld [vmem:[%s4616 + $0x68] sm:$0xff]
                  %4645 = vst [vmem:[%s4617 + $0x188] sm:$0xff] %v4644
                  %v4646 = vld [vmem:[%s4616 + $0x70] sm:$0xff]
                  %4647 = vst [vmem:[%s4617 + $0x190] sm:$0xff] %v4646
                  %v4648 = vld [vmem:[%s4616 + $0x78] sm:$0xff]
                  %4649 = vst [vmem:[%s4617 + $0x198] sm:$0xff] %v4648
                  %v4650 = vld [vmem:[%s4616 + $0x80] sm:$0xff]
                  %4651 = vst [vmem:[%s4617 + $0x200] sm:$0xff] %v4650
                  %v4652 = vld [vmem:[%s4616 + $0x88] sm:$0xff]
                  %4653 = vst [vmem:[%s4617 + $0x208] sm:$0xff] %v4652
                  %v4654 = vld [vmem:[%s4616 + $0x90] sm:$0xff]
                  %4655 = vst [vmem:[%s4617 + $0x210] sm:$0xff] %v4654
                  %v4656 = vld [vmem:[%s4616 + $0x98] sm:$0xff]
                  %4657 = vst [vmem:[%s4617 + $0x218] sm:$0xff] %v4656
                  %v4658 = vld [vmem:[%s4616 + $0xa0] sm:$0xff]
                  %4659 = vst [vmem:[%s4617 + $0x280] sm:$0xff] %v4658
                  %v4660 = vld [vmem:[%s4616 + $0xa8] sm:$0xff]
                  %4661 = vst [vmem:[%s4617 + $0x288] sm:$0xff] %v4660
                  %v4662 = vld [vmem:[%s4616 + $0xb0] sm:$0xff]
                  %4663 = vst [vmem:[%s4617 + $0x290] sm:$0xff] %v4662
                  %v4664 = vld [vmem:[%s4616 + $0xb8] sm:$0xff]
                  %4665 = vst [vmem:[%s4617 + $0x298] sm:$0xff] %v4664
                  %v4666 = vld [vmem:[%s4616 + $0xc0] sm:$0xff]
                  %4667 = vst [vmem:[%s4617 + $0x300] sm:$0xff] %v4666
                  %v4668 = vld [vmem:[%s4616 + $0xc8] sm:$0xff]
                  %4669 = vst [vmem:[%s4617 + $0x308] sm:$0xff] %v4668
                  %v4670 = vld [vmem:[%s4616 + $0xd0] sm:$0xff]
                  %4671 = vst [vmem:[%s4617 + $0x310] sm:$0xff] %v4670
                  %v4672 = vld [vmem:[%s4616 + $0xd8] sm:$0xff]
                  %4673 = vst [vmem:[%s4617 + $0x318] sm:$0xff] %v4672
                  %v4674 = vld [vmem:[%s4616 + $0xe0] sm:$0xff]
                  %4675 = vst [vmem:[%s4617 + $0x380] sm:$0xff] %v4674
                  %v4676 = vld [vmem:[%s4616 + $0xe8] sm:$0xff]
                  %4677 = vst [vmem:[%s4617 + $0x388] sm:$0xff] %v4676
                  %v4678 = vld [vmem:[%s4616 + $0xf0] sm:$0xff]
                  %4679 = vst [vmem:[%s4617 + $0x390] sm:$0xff] %v4678
                  %v4680 = vld [vmem:[%s4616 + $0xf8] sm:$0xff]
                  %4681 = vst [vmem:[%s4617 + $0x398] sm:$0xff] %v4680
                $region100: #{tpu_custom_call.1} parent=94 // loop_footer
                  %s4615 = sadd.s32 1, %s4611
                $region101: #{tpu_custom_call.1} parent=94 // loop_footer_branch
                  %4610 = sbr.rel target = $region97
                $region102: #{tpu_custom_call.1} parent=94 // loop_exit
                  _
              $region95: #{tpu_custom_call.1} parent=79 // pred_fallthru
                _
              // Predicated region
              $region103: #{tpu_custom_call.1} parent=79 // pred_check
                _
              $region104: #{tpu_custom_call.1} parent=79 // pred_check_branch
                %4683 = sbr.rel target = $region106
              $region105: #{tpu_custom_call.1} parent=79 // pred_region
                _
              $region106: #{tpu_custom_call.1} parent=79 // pred_fallthru
                _
            $region80: #{tpu_custom_call.1} parent=75 // pred_fallthru
              _
            // Predicated region
            $region81: #{tpu_custom_call.1} parent=75 // pred_check
              _
            $region82: #{tpu_custom_call.1} parent=75 // pred_check_branch
              %4534 = sbr.rel target = $region84
            $region83: #{tpu_custom_call.1} parent=75 // pred_region
              loop: start=0, step=1, limit=1
              $region85: #{tpu_custom_call.1} parent=83 // loop_pre_header
                _
              $region86: #{tpu_custom_call.1} parent=83 // loop_header
                %s4537 = sphi 0, %s4541
                %p4538 = scmp.ge.s32.totalorder %s4537, 1
                %s4542 = sphi %s4522, %s4522
                %s4543 = sphi %s4528, %s4528
              $region87: #{tpu_custom_call.1} parent=83 // loop_header_branch
                %4540 = sbr.rel (%p4538) target = $region91
              $region88: #{tpu_custom_call.1} parent=83 // loop_body
                %v4544 = vld [vmem:[%s4542] sm:$0xff]
                %4545 = vst [vmem:[%s4543] sm:$0xff] %v4544
                %v4546 = vld [vmem:[%s4542 + $0x8] sm:$0xff]
                %4547 = vst [vmem:[%s4543 + $0x8] sm:$0xff] %v4546
                %v4548 = vld [vmem:[%s4542 + $0x10] sm:$0xff]
                %4549 = vst [vmem:[%s4543 + $0x10] sm:$0xff] %v4548
                %v4550 = vld [vmem:[%s4542 + $0x18] sm:$0xff]
                %4551 = vst [vmem:[%s4543 + $0x18] sm:$0xff] %v4550
                %v4552 = vld [vmem:[%s4542 + $0x20] sm:$0xff]
                %4553 = vst [vmem:[%s4543 + $0x80] sm:$0xff] %v4552
                %v4554 = vld [vmem:[%s4542 + $0x28] sm:$0xff]
                %4555 = vst [vmem:[%s4543 + $0x88] sm:$0xff] %v4554
                %v4556 = vld [vmem:[%s4542 + $0x30] sm:$0xff]
                %4557 = vst [vmem:[%s4543 + $0x90] sm:$0xff] %v4556
                %v4558 = vld [vmem:[%s4542 + $0x38] sm:$0xff]
                %4559 = vst [vmem:[%s4543 + $0x98] sm:$0xff] %v4558
                %v4560 = vld [vmem:[%s4542 + $0x40] sm:$0xff]
                %4561 = vst [vmem:[%s4543 + $0x100] sm:$0xff] %v4560
                %v4562 = vld [vmem:[%s4542 + $0x48] sm:$0xff]
                %4563 = vst [vmem:[%s4543 + $0x108] sm:$0xff] %v4562
                %v4564 = vld [vmem:[%s4542 + $0x50] sm:$0xff]
                %4565 = vst [vmem:[%s4543 + $0x110] sm:$0xff] %v4564
                %v4566 = vld [vmem:[%s4542 + $0x58] sm:$0xff]
                %4567 = vst [vmem:[%s4543 + $0x118] sm:$0xff] %v4566
                %v4568 = vld [vmem:[%s4542 + $0x60] sm:$0xff]
                %4569 = vst [vmem:[%s4543 + $0x180] sm:$0xff] %v4568
                %v4570 = vld [vmem:[%s4542 + $0x68] sm:$0xff]
                %4571 = vst [vmem:[%s4543 + $0x188] sm:$0xff] %v4570
                %v4572 = vld [vmem:[%s4542 + $0x70] sm:$0xff]
                %4573 = vst [vmem:[%s4543 + $0x190] sm:$0xff] %v4572
                %v4574 = vld [vmem:[%s4542 + $0x78] sm:$0xff]
                %4575 = vst [vmem:[%s4543 + $0x198] sm:$0xff] %v4574
                %v4576 = vld [vmem:[%s4542 + $0x80] sm:$0xff]
                %4577 = vst [vmem:[%s4543 + $0x200] sm:$0xff] %v4576
                %v4578 = vld [vmem:[%s4542 + $0x88] sm:$0xff]
                %4579 = vst [vmem:[%s4543 + $0x208] sm:$0xff] %v4578
                %v4580 = vld [vmem:[%s4542 + $0x90] sm:$0xff]
                %4581 = vst [vmem:[%s4543 + $0x210] sm:$0xff] %v4580
                %v4582 = vld [vmem:[%s4542 + $0x98] sm:$0xff]
                %4583 = vst [vmem:[%s4543 + $0x218] sm:$0xff] %v4582
                %v4584 = vld [vmem:[%s4542 + $0xa0] sm:$0xff]
                %4585 = vst [vmem:[%s4543 + $0x280] sm:$0xff] %v4584
                %v4586 = vld [vmem:[%s4542 + $0xa8] sm:$0xff]
                %4587 = vst [vmem:[%s4543 + $0x288] sm:$0xff] %v4586
                %v4588 = vld [vmem:[%s4542 + $0xb0] sm:$0xff]
                %4589 = vst [vmem:[%s4543 + $0x290] sm:$0xff] %v4588
                %v4590 = vld [vmem:[%s4542 + $0xb8] sm:$0xff]
                %4591 = vst [vmem:[%s4543 + $0x298] sm:$0xff] %v4590
                %v4592 = vld [vmem:[%s4542 + $0xc0] sm:$0xff]
                %4593 = vst [vmem:[%s4543 + $0x300] sm:$0xff] %v4592
                %v4594 = vld [vmem:[%s4542 + $0xc8] sm:$0xff]
                %4595 = vst [vmem:[%s4543 + $0x308] sm:$0xff] %v4594
                %v4596 = vld [vmem:[%s4542 + $0xd0] sm:$0xff]
                %4597 = vst [vmem:[%s4543 + $0x310] sm:$0xff] %v4596
                %v4598 = vld [vmem:[%s4542 + $0xd8] sm:$0xff]
                %4599 = vst [vmem:[%s4543 + $0x318] sm:$0xff] %v4598
                %v4600 = vld [vmem:[%s4542 + $0xe0] sm:$0xff]
                %4601 = vst [vmem:[%s4543 + $0x380] sm:$0xff] %v4600
                %v4602 = vld [vmem:[%s4542 + $0xe8] sm:$0xff]
                %4603 = vst [vmem:[%s4543 + $0x388] sm:$0xff] %v4602
                %v4604 = vld [vmem:[%s4542 + $0xf0] sm:$0xff]
                %4605 = vst [vmem:[%s4543 + $0x390] sm:$0xff] %v4604
                %v4606 = vld [vmem:[%s4542 + $0xf8] sm:$0xff]
                %4607 = vst [vmem:[%s4543 + $0x398] sm:$0xff] %v4606
              $region89: #{tpu_custom_call.1} parent=83 // loop_footer
                %s4541 = sadd.s32 1, %s4537
              $region90: #{tpu_custom_call.1} parent=83 // loop_footer_branch
                %4536 = sbr.rel target = $region86
              $region91: #{tpu_custom_call.1} parent=83 // loop_exit
                _
            $region84: #{tpu_custom_call.1} parent=75 // pred_fallthru
              _
          $region76: #{tpu_custom_call.1} parent=71 // pred_fallthru
            _
          %4684 = vnop
        $region72: #{tpu_custom_call.1} parent=59 // pred_fallthru
          _
      $region60: #{tpu_custom_call.1} parent=5 // pred_fallthru
        _
      %p4685 = scmp.le.s32.totalorder 2, %s20
      // Predicated region
      $region107: #{tpu_custom_call.1} parent=5 // pred_check
        %p4686 = pneg %p4685
      $region108: #{tpu_custom_call.1} parent=5 // pred_check_branch
        %4688 = sbr.rel (%p4686) target = $region110
      $region109: #{tpu_custom_call.1} parent=5 // pred_region
        %s4689 = ssub.s32 %s20, 2
        // Predicated region
        $region111: #{tpu_custom_call.1} parent=109 // pred_check
          %p4690 = pneg %p274
        $region112: #{tpu_custom_call.1} parent=109 // pred_check_branch
          %4692 = sbr.rel (%p4690) target = $region114
        $region113: #{tpu_custom_call.1} parent=109 // pred_region
          %s4693 = sand.u32 %s259, 1
          %s4694 = sand.u32 %s259, 1
          %s4695 = smul.addr %s4694, 256
          %s4696 = scalar_lea.vmem [#allocation7], %s4695
        $region114: #{tpu_custom_call.1} parent=109 // pred_fallthru
          _
      $region110: #{tpu_custom_call.1} parent=5 // pred_fallthru
        _
    $region6: #{tpu_custom_call.1} parent=1 // loop_footer
      %s24 = sadd.s32 1, %s20
    $region7: #{tpu_custom_call.1} parent=1 // loop_footer_branch
      %19 = sbr.rel target = $region3
    $region8: #{tpu_custom_call.1} parent=1 // loop_exit
      _
    %4697 = vsyncpa [#allocation4], 1
    %s4698 = scalar_lea.sflag [#allocation4], 1
    %4699 = vsyncpa %s4698, 1
    %4700 = vsyncpa [#allocation5], 1
    %s4701 = scalar_lea.sflag [#allocation5], 1
    %4702 = vsyncpa %s4701, 1

</llo_original>
